<compile_context>
chip_gen: v7x
topology: tpu7x:2x2x1
jax: 0.10.0
libtpu: 0.0.40
codegen_flags: <defaults>
</compile_context>

<pallas_src>
import jax
import jax.numpy as jnp
from jax import lax
from jax.experimental import pallas as pl
from jax.experimental.pallas import tpu as pltpu

VOCAB = 2000   # vocabulary size
EMBD = 100     # embedding dim
LATENT = 70    # GRU hidden dim

EP = 128       # padded embedding dim (lane-aligned)
HP = 128       # padded hidden dim (lane-aligned)
VP = 2048      # padded vocab used for the packed Linear weights (lane-aligned)

NEG_BIG = -1e30  # mask value for padded logit columns


# ----------------------------------------------------------------------------
# Fused kernel: in-kernel embedding row gather (DMA) -> hoisted input
# projection -> unrolled GRU recurrence -> Linear + masked LogSoftmax.
# PyTorch GRU gate order [r, z, n]:
#   r = sigmoid(x W_ir + b_ir + h W_hr + b_hr)
#   z = sigmoid(x W_iz + b_iz + h W_hz + b_hz)
#   n = tanh  (x W_in + b_in + r * (h W_hn + b_hn))
#   h' = (1 - z) * n + z * h
# ----------------------------------------------------------------------------
def make_gru_speech_kernel(B, T):
    N = B * T

    def kernel(tok_ref, emb_hbm, wi_ref, bi_ref, wh_ref, bh_ref, wo_ref, bo_ref,
               out_ref, emb_vmem, gx_scr, h_all_scr, dma_sems):
        f32 = jnp.float32

        # (0) Fused embedding lookup: one 512 B row-DMA per (t, b) token.
        #     Rows land time-major (row = t*B + b) so per-step slices of the
        #     hoisted projection are contiguous.  Issue all DMAs, then wait.
        copies = []
        for i in range(N):
            t, b = divmod(i, B)
            tok = tok_ref[b, t]                               # scalar from SMEM
            cp = pltpu.make_async_copy(emb_hbm.at[tok], emb_vmem.at[i],
                                       dma_sems.at[i])
            cp.start()
            copies.append(cp)
        for cp in copies:
            cp.wait()

        # (1) Hoisted input projection for every (t, b) row: ONE matmul.
        #     gx rows are time-major: row = t*B + b, columns = [r | z | n].
        gx_scr[...] = (
            jnp.dot(emb_vmem[...], wi_ref[...], preferred_element_type=f32)
            + bi_ref[...])

        # Hoist loop-invariant values out of the recurrence (JAX does not CSE
        # broadcast_in_dim or ref loads inside unrolled loops).
        w_h = wh_ref[...]                                     # (HP, 3*HP)
        b_h = jnp.broadcast_to(bh_ref[...], (B, 3 * HP))

        # (2) Recurrence, fully unrolled (T is small & static): one matmul +
        #     elementwise gate math per step.
        h = jnp.zeros((B, HP), f32)
        for t in range(T):
            gx_t = gx_scr[pl.ds(t * B, B), :]                 # (B, 3*HP)
            gh = jnp.dot(h, w_h, preferred_element_type=f32) + b_h
            r = jax.nn.sigmoid(gx_t[:, 0:HP] + gh[:, 0:HP])
            z = jax.nn.sigmoid(gx_t[:, HP:2 * HP] + gh[:, HP:2 * HP])
            n = jnp.tanh(gx_t[:, 2 * HP:3 * HP] + r * gh[:, 2 * HP:3 * HP])
            h = (1.0 - z) * n + z * h
            # Scatter into batch-major layout (row = b*T + t) so the final
            # output needs no XLA transpose, only a free reshape outside.
            for b in range(B):
                h_all_scr[pl.ds(b * T + t, 1), :] = h[b:b + 1, :]

        # (3) Fused output projection + log-softmax over the (padded) vocab,
        #     storing only the real VOCAB columns.
        logits = (jnp.dot(h_all_scr[...], wo_ref[...],
                          preferred_element_type=f32) + bo_ref[...])
        col = lax.broadcasted_iota(jnp.int32, logits.shape, 1)
        logits = jnp.where(col < VOCAB, logits, NEG_BIG)      # mask padded cols
        m = jnp.max(logits, axis=-1, keepdims=True)
        shifted = logits - m
        lse = jnp.log(jnp.sum(jnp.exp(shifted), axis=-1, keepdims=True))
        res = shifted - lse                                   # (N, VP)
        out_ref[...] = res[:, :VOCAB]                         # (N, VOCAB)

    return kernel


def gru_speech_fused(tokens, emb_p, w_i, b_i, w_h, b_h, w_out, b_out, *, B, T):
    N = B * T
    vmem = lambda: pl.BlockSpec(memory_space=pltpu.MemorySpace.VMEM)
    return pl.pallas_call(
        make_gru_speech_kernel(B, T),
        out_shape=jax.ShapeDtypeStruct((N, VOCAB), jnp.float32),
        in_specs=[
            pl.BlockSpec(memory_space=pltpu.MemorySpace.SMEM),  # token ids (B, T)
            pl.BlockSpec(memory_space=pl.ANY),                  # emb table in HBM
            vmem(), vmem(), vmem(), vmem(), vmem(), vmem(),     # packed weights
        ],
        out_specs=pl.BlockSpec(memory_space=pltpu.MemorySpace.VMEM),
        scratch_shapes=[
            pltpu.VMEM((N, EP), jnp.float32),        # gathered embedding rows
            pltpu.VMEM((N, 3 * HP), jnp.float32),    # hoisted input-gate acts
            pltpu.VMEM((N, HP), jnp.float32),        # all hidden states (batch-major)
            pltpu.SemaphoreType.DMA((N,)),           # one sem per row gather
        ],
    )(tokens, emb_p, w_i, b_i, w_h, b_h, w_out, b_out)


# ----------------------------------------------------------------------------
# Full forward: the ONLY post-kernel op is a free reshape (batch-major rows).
# ----------------------------------------------------------------------------
@jax.jit
def gru_speech_forward(x, params):
    B, T = x.shape
    logp = gru_speech_fused(
        x.astype(jnp.int32), params["emb"], params["w_i"], params["b_i"],
        params["w_h"], params["b_h"], params["w_out"], params["b_out"],
        B=B, T=T)                                      # (B*T, VOCAB) batch-major
    return logp.reshape(B, T, VOCAB)


# ----------------------------------------------------------------------------
# Host-side (done once): pack / zero-pad parameters into lane-aligned slabs.
# padding_idx=3 semantics of nn.Embedding are carried by the zeroed row in the
# table itself (forward is a plain lookup).
# ----------------------------------------------------------------------------
def pack_params(emb_w, gru, w_lin, b_lin):
    emb_p = jnp.zeros((VOCAB, EP), jnp.float32).at[:, :EMBD].set(emb_w)
    w_i = jnp.zeros((EP, 3 * HP), jnp.float32)
    w_h = jnp.zeros((HP, 3 * HP), jnp.float32)
    b_i = jnp.zeros((1, 3 * HP), jnp.float32)
    b_h = jnp.zeros((1, 3 * HP), jnp.float32)
    gates = [("wir", "whr", "bir", "bhr"),
             ("wiz", "whz", "biz", "bhz"),
             ("win", "whn", "bin", "bhn")]
    for g, (ki, kh, kbi, kbh) in enumerate(gates):
        c0 = g * HP
        w_i = w_i.at[:EMBD, c0:c0 + LATENT].set(gru[ki])
        w_h = w_h.at[:LATENT, c0:c0 + LATENT].set(gru[kh])
        b_i = b_i.at[0, c0:c0 + LATENT].set(gru[kbi])
        b_h = b_h.at[0, c0:c0 + LATENT].set(gru[kbh])
    w_out = jnp.zeros((HP, VP), jnp.float32).at[:LATENT, :VOCAB].set(w_lin)
    b_out = jnp.zeros((1, VP), jnp.float32).at[0, :VOCAB].set(b_lin)
    return dict(emb=emb_p, w_i=w_i, b_i=b_i, w_h=w_h, b_h=b_h,
                w_out=w_out, b_out=b_out)


# ----------------------------------------------------------------------------
# Pure-JAX reference (unpadded) for correctness checking.
# ----------------------------------------------------------------------------
@jax.jit
def reference_forward(x, emb_w, gru, w_lin, b_lin):
    B, T = x.shape
    emb = jnp.take(emb_w, x, axis=0)                      # (B, T, E)

    def cell(h, x_t):
        r = jax.nn.sigmoid(x_t @ gru["wir"] + gru["bir"] + h @ gru["whr"] + gru["bhr"])
        z = jax.nn.sigmoid(x_t @ gru["wiz"] + gru["biz"] + h @ gru["whz"] + gru["bhz"])
        n = jnp.tanh(x_t @ gru["win"] + gru["bin"] + r * (h @ gru["whn"] + gru["bhn"]))
        h_new = (1.0 - z) * n + z * h
        return h_new, h_new

    h0 = jnp.zeros((B, LATENT), jnp.float32)
    _, hs = lax.scan(cell, h0, jnp.transpose(emb, (1, 0, 2)))   # (T, B, H)
    h_bth = jnp.transpose(hs, (1, 0, 2))                        # (B, T, H)
    logits = h_bth @ w_lin + b_lin
    return jax.nn.log_softmax(logits, axis=-1)


if __name__ == "__main__":
    B, T = 2, 8
    key = jax.random.PRNGKey(0)
    keys = jax.random.split(key, 20)

    # Embedding table: N(0,1) init, padding_idx=3 row zeroed (like nn.Embedding).
    emb_w = jax.random.normal(keys[0], (VOCAB, EMBD), jnp.float32)
    emb_w = emb_w.at[3].set(0.0)

    kscale = 1.0 / (LATENT ** 0.5)

    def u(k, shape):
        return jax.random.uniform(k, shape, jnp.float32, -kscale, kscale)

    gru = dict(
        wir=u(keys[1], (EMBD, LATENT)), wiz=u(keys[2], (EMBD, LATENT)),
        win=u(keys[3], (EMBD, LATENT)),
        whr=u(keys[4], (LATENT, LATENT)), whz=u(keys[5], (LATENT, LATENT)),
        whn=u(keys[6], (LATENT, LATENT)),
        bir=u(keys[7], (LATENT,)), biz=u(keys[8], (LATENT,)),
        bin=u(keys[9], (LATENT,)),
        bhr=u(keys[10], (LATENT,)), bhz=u(keys[11], (LATENT,)),
        bhn=u(keys[12], (LATENT,)),
    )
    w_lin = u(keys[13], (LATENT, VOCAB))   # Linear weight, stored transposed
    b_lin = u(keys[14], (VOCAB,))
    x = jax.random.randint(keys[15], (B, T), 0, VOCAB, jnp.int32)

    params = pack_params(emb_w, gru, w_lin, b_lin)

    out = gru_speech_forward(x, params)
    out = jax.block_until_ready(out)

    assert out.shape == (B, T, VOCAB), out.shape
    # LogSoftmax sanity: probabilities over the real vocab must sum to 1.
    prob_sums = jnp.sum(jnp.exp(out), axis=-1)
    assert bool(jnp.all(jnp.abs(prob_sums - 1.0) < 1e-3)), prob_sums

    # Numerical check against a pure-JAX reference (loose tolerance: both paths
    # use default TPU matmul precision).
    ref = reference_forward(x, emb_w, gru, w_lin, b_lin)
    max_err = float(jnp.max(jnp.abs(out - ref)))
    assert max_err < 5e-2, f"max abs error vs reference: {max_err}"

    print("KERNEL_OK")
</pallas_src>

<mosaic_0001>
module attributes {stable_mosaic.version = 11 : i64} {
  func.func @kernel(%arg0: memref<2x8xi32, #tpu.memory_space<smem>>, %arg1: memref<2000x128xf32, #tpu.memory_space<any>>, %arg2: memref<128x384xf32, #tpu.memory_space<vmem>>, %arg3: memref<1x384xf32, #tpu.memory_space<vmem>>, %arg4: memref<128x384xf32, #tpu.memory_space<vmem>>, %arg5: memref<1x384xf32, #tpu.memory_space<vmem>>, %arg6: memref<128x2048xf32, #tpu.memory_space<vmem>>, %arg7: memref<1x2048xf32, #tpu.memory_space<vmem>>, %arg8: memref<16x2000xf32, #tpu.memory_space<vmem>>, %arg9: memref<16x128xf32, #tpu.memory_space<vmem>>, %arg10: memref<16x384xf32, #tpu.memory_space<vmem>>, %arg11: memref<16x128xf32, #tpu.memory_space<vmem>>, %arg12: memref<16x!tpu.dma_semaphore, #tpu.memory_space<semaphore_mem>>) attributes {dimension_semantics = [], scalar_prefetch = 0 : i64, scratch_operands = 4 : i64, tpu.core_type = #tpu.core_type<tc>} {
    %c0 = arith.constant 0 : index
    %c0_0 = arith.constant 0 : index
    %0 = memref.load %arg0[%c0, %c0_0] : memref<2x8xi32, #tpu.memory_space<smem>>
    %c0_i32 = arith.constant 0 : i32
    %c0_i32_1 = arith.constant 0 : i32
    %c0_i32_2 = arith.constant 0 : i32
    %1 = tpu.memref_slice %arg1[%0, %c0_i32_2] : memref<2000x128xf32, #tpu.memory_space<any>> -> memref<1x128xf32, #tpu.memory_space<any>>
    %2 = tpu.memref_squeeze %1 : memref<1x128xf32, #tpu.memory_space<any>> -> memref<128xf32, #tpu.memory_space<any>>
    %c0_i32_3 = arith.constant 0 : i32
    %3 = tpu.memref_slice %arg9[%c0_i32, %c0_i32_3] : memref<16x128xf32, #tpu.memory_space<vmem>> -> memref<1x128xf32, #tpu.memory_space<vmem>>
    %4 = tpu.memref_squeeze %3 : memref<1x128xf32, #tpu.memory_space<vmem>> -> memref<128xf32, #tpu.memory_space<vmem>>
    %5 = tpu.memref_slice %arg12[%c0_i32_1] : memref<16x!tpu.dma_semaphore, #tpu.memory_space<semaphore_mem>> -> memref<1x!tpu.dma_semaphore, #tpu.memory_space<semaphore_mem>>
    %6 = tpu.memref_squeeze %5 : memref<1x!tpu.dma_semaphore, #tpu.memory_space<semaphore_mem>> -> memref<!tpu.dma_semaphore, #tpu.memory_space<semaphore_mem>>
    tpu.enqueue_dma source(%2 : memref<128xf32, #tpu.memory_space<any>>) target(%4 : memref<128xf32, #tpu.memory_space<vmem>>) target_semaphore(%6 : memref<!tpu.dma_semaphore, #tpu.memory_space<semaphore_mem>>)
    %c1 = arith.constant 1 : index
    %c0_4 = arith.constant 0 : index
    %7 = memref.load %arg0[%c1, %c0_4] : memref<2x8xi32, #tpu.memory_space<smem>>
    %c1_i32 = arith.constant 1 : i32
    %c1_i32_5 = arith.constant 1 : i32
    %c0_i32_6 = arith.constant 0 : i32
    %8 = tpu.memref_slice %arg1[%7, %c0_i32_6] : memref<2000x128xf32, #tpu.memory_space<any>> -> memref<1x128xf32, #tpu.memory_space<any>>
    %9 = tpu.memref_squeeze %8 : memref<1x128xf32, #tpu.memory_space<any>> -> memref<128xf32, #tpu.memory_space<any>>
    %c0_i32_7 = arith.constant 0 : i32
    %10 = tpu.memref_slice %arg9[%c1_i32, %c0_i32_7] : memref<16x128xf32, #tpu.memory_space<vmem>> -> memref<1x128xf32, #tpu.memory_space<vmem>>
    %11 = tpu.memref_squeeze %10 : memref<1x128xf32, #tpu.memory_space<vmem>> -> memref<128xf32, #tpu.memory_space<vmem>>
    %12 = tpu.memref_slice %arg12[%c1_i32_5] : memref<16x!tpu.dma_semaphore, #tpu.memory_space<semaphore_mem>> -> memref<1x!tpu.dma_semaphore, #tpu.memory_space<semaphore_mem>>
    %13 = tpu.memref_squeeze %12 : memref<1x!tpu.dma_semaphore, #tpu.memory_space<semaphore_mem>> -> memref<!tpu.dma_semaphore, #tpu.memory_space<semaphore_mem>>
    tpu.enqueue_dma source(%9 : memref<128xf32, #tpu.memory_space<any>>) target(%11 : memref<128xf32, #tpu.memory_space<vmem>>) target_semaphore(%13 : memref<!tpu.dma_semaphore, #tpu.memory_space<semaphore_mem>>)
    %c0_8 = arith.constant 0 : index
    %c1_9 = arith.constant 1 : index
    %14 = memref.load %arg0[%c0_8, %c1_9] : memref<2x8xi32, #tpu.memory_space<smem>>
    %c2_i32 = arith.constant 2 : i32
    %c2_i32_10 = arith.constant 2 : i32
    %c0_i32_11 = arith.constant 0 : i32
    %15 = tpu.memref_slice %arg1[%14, %c0_i32_11] : memref<2000x128xf32, #tpu.memory_space<any>> -> memref<1x128xf32, #tpu.memory_space<any>>
    %16 = tpu.memref_squeeze %15 : memref<1x128xf32, #tpu.memory_space<any>> -> memref<128xf32, #tpu.memory_space<any>>
    %c0_i32_12 = arith.constant 0 : i32
    %17 = tpu.memref_slice %arg9[%c2_i32, %c0_i32_12] : memref<16x128xf32, #tpu.memory_space<vmem>> -> memref<1x128xf32, #tpu.memory_space<vmem>>
    %18 = tpu.memref_squeeze %17 : memref<1x128xf32, #tpu.memory_space<vmem>> -> memref<128xf32, #tpu.memory_space<vmem>>
    %19 = tpu.memref_slice %arg12[%c2_i32_10] : memref<16x!tpu.dma_semaphore, #tpu.memory_space<semaphore_mem>> -> memref<1x!tpu.dma_semaphore, #tpu.memory_space<semaphore_mem>>
    %20 = tpu.memref_squeeze %19 : memref<1x!tpu.dma_semaphore, #tpu.memory_space<semaphore_mem>> -> memref<!tpu.dma_semaphore, #tpu.memory_space<semaphore_mem>>
    tpu.enqueue_dma source(%16 : memref<128xf32, #tpu.memory_space<any>>) target(%18 : memref<128xf32, #tpu.memory_space<vmem>>) target_semaphore(%20 : memref<!tpu.dma_semaphore, #tpu.memory_space<semaphore_mem>>)
    %c1_13 = arith.constant 1 : index
    %c1_14 = arith.constant 1 : index
    %21 = memref.load %arg0[%c1_13, %c1_14] : memref<2x8xi32, #tpu.memory_space<smem>>
    %c3_i32 = arith.constant 3 : i32
    %c3_i32_15 = arith.constant 3 : i32
    %c0_i32_16 = arith.constant 0 : i32
    %22 = tpu.memref_slice %arg1[%21, %c0_i32_16] : memref<2000x128xf32, #tpu.memory_space<any>> -> memref<1x128xf32, #tpu.memory_space<any>>
    %23 = tpu.memref_squeeze %22 : memref<1x128xf32, #tpu.memory_space<any>> -> memref<128xf32, #tpu.memory_space<any>>
    %c0_i32_17 = arith.constant 0 : i32
    %24 = tpu.memref_slice %arg9[%c3_i32, %c0_i32_17] : memref<16x128xf32, #tpu.memory_space<vmem>> -> memref<1x128xf32, #tpu.memory_space<vmem>>
    %25 = tpu.memref_squeeze %24 : memref<1x128xf32, #tpu.memory_space<vmem>> -> memref<128xf32, #tpu.memory_space<vmem>>
    %26 = tpu.memref_slice %arg12[%c3_i32_15] : memref<16x!tpu.dma_semaphore, #tpu.memory_space<semaphore_mem>> -> memref<1x!tpu.dma_semaphore, #tpu.memory_space<semaphore_mem>>
    %27 = tpu.memref_squeeze %26 : memref<1x!tpu.dma_semaphore, #tpu.memory_space<semaphore_mem>> -> memref<!tpu.dma_semaphore, #tpu.memory_space<semaphore_mem>>
    tpu.enqueue_dma source(%23 : memref<128xf32, #tpu.memory_space<any>>) target(%25 : memref<128xf32, #tpu.memory_space<vmem>>) target_semaphore(%27 : memref<!tpu.dma_semaphore, #tpu.memory_space<semaphore_mem>>)
    %c0_18 = arith.constant 0 : index
    %c2 = arith.constant 2 : index
    %28 = memref.load %arg0[%c0_18, %c2] : memref<2x8xi32, #tpu.memory_space<smem>>
    %c4_i32 = arith.constant 4 : i32
    %c4_i32_19 = arith.constant 4 : i32
    %c0_i32_20 = arith.constant 0 : i32
    %29 = tpu.memref_slice %arg1[%28, %c0_i32_20] : memref<2000x128xf32, #tpu.memory_space<any>> -> memref<1x128xf32, #tpu.memory_space<any>>
    %30 = tpu.memref_squeeze %29 : memref<1x128xf32, #tpu.memory_space<any>> -> memref<128xf32, #tpu.memory_space<any>>
    %c0_i32_21 = arith.constant 0 : i32
    %31 = tpu.memref_slice %arg9[%c4_i32, %c0_i32_21] : memref<16x128xf32, #tpu.memory_space<vmem>> -> memref<1x128xf32, #tpu.memory_space<vmem>>
    %32 = tpu.memref_squeeze %31 : memref<1x128xf32, #tpu.memory_space<vmem>> -> memref<128xf32, #tpu.memory_space<vmem>>
    %33 = tpu.memref_slice %arg12[%c4_i32_19] : memref<16x!tpu.dma_semaphore, #tpu.memory_space<semaphore_mem>> -> memref<1x!tpu.dma_semaphore, #tpu.memory_space<semaphore_mem>>
    %34 = tpu.memref_squeeze %33 : memref<1x!tpu.dma_semaphore, #tpu.memory_space<semaphore_mem>> -> memref<!tpu.dma_semaphore, #tpu.memory_space<semaphore_mem>>
    tpu.enqueue_dma source(%30 : memref<128xf32, #tpu.memory_space<any>>) target(%32 : memref<128xf32, #tpu.memory_space<vmem>>) target_semaphore(%34 : memref<!tpu.dma_semaphore, #tpu.memory_space<semaphore_mem>>)
    %c1_22 = arith.constant 1 : index
    %c2_23 = arith.constant 2 : index
    %35 = memref.load %arg0[%c1_22, %c2_23] : memref<2x8xi32, #tpu.memory_space<smem>>
    %c5_i32 = arith.constant 5 : i32
    %c5_i32_24 = arith.constant 5 : i32
    %c0_i32_25 = arith.constant 0 : i32
    %36 = tpu.memref_slice %arg1[%35, %c0_i32_25] : memref<2000x128xf32, #tpu.memory_space<any>> -> memref<1x128xf32, #tpu.memory_space<any>>
    %37 = tpu.memref_squeeze %36 : memref<1x128xf32, #tpu.memory_space<any>> -> memref<128xf32, #tpu.memory_space<any>>
    %c0_i32_26 = arith.constant 0 : i32
    %38 = tpu.memref_slice %arg9[%c5_i32, %c0_i32_26] : memref<16x128xf32, #tpu.memory_space<vmem>> -> memref<1x128xf32, #tpu.memory_space<vmem>>
    %39 = tpu.memref_squeeze %38 : memref<1x128xf32, #tpu.memory_space<vmem>> -> memref<128xf32, #tpu.memory_space<vmem>>
    %40 = tpu.memref_slice %arg12[%c5_i32_24] : memref<16x!tpu.dma_semaphore, #tpu.memory_space<semaphore_mem>> -> memref<1x!tpu.dma_semaphore, #tpu.memory_space<semaphore_mem>>
    %41 = tpu.memref_squeeze %40 : memref<1x!tpu.dma_semaphore, #tpu.memory_space<semaphore_mem>> -> memref<!tpu.dma_semaphore, #tpu.memory_space<semaphore_mem>>
    tpu.enqueue_dma source(%37 : memref<128xf32, #tpu.memory_space<any>>) target(%39 : memref<128xf32, #tpu.memory_space<vmem>>) target_semaphore(%41 : memref<!tpu.dma_semaphore, #tpu.memory_space<semaphore_mem>>)
    %c0_27 = arith.constant 0 : index
    %c3 = arith.constant 3 : index
    %42 = memref.load %arg0[%c0_27, %c3] : memref<2x8xi32, #tpu.memory_space<smem>>
    %c6_i32 = arith.constant 6 : i32
    %c6_i32_28 = arith.constant 6 : i32
    %c0_i32_29 = arith.constant 0 : i32
    %43 = tpu.memref_slice %arg1[%42, %c0_i32_29] : memref<2000x128xf32, #tpu.memory_space<any>> -> memref<1x128xf32, #tpu.memory_space<any>>
    %44 = tpu.memref_squeeze %43 : memref<1x128xf32, #tpu.memory_space<any>> -> memref<128xf32, #tpu.memory_space<any>>
    %c0_i32_30 = arith.constant 0 : i32
    %45 = tpu.memref_slice %arg9[%c6_i32, %c0_i32_30] : memref<16x128xf32, #tpu.memory_space<vmem>> -> memref<1x128xf32, #tpu.memory_space<vmem>>
    %46 = tpu.memref_squeeze %45 : memref<1x128xf32, #tpu.memory_space<vmem>> -> memref<128xf32, #tpu.memory_space<vmem>>
    %47 = tpu.memref_slice %arg12[%c6_i32_28] : memref<16x!tpu.dma_semaphore, #tpu.memory_space<semaphore_mem>> -> memref<1x!tpu.dma_semaphore, #tpu.memory_space<semaphore_mem>>
    %48 = tpu.memref_squeeze %47 : memref<1x!tpu.dma_semaphore, #tpu.memory_space<semaphore_mem>> -> memref<!tpu.dma_semaphore, #tpu.memory_space<semaphore_mem>>
    tpu.enqueue_dma source(%44 : memref<128xf32, #tpu.memory_space<any>>) target(%46 : memref<128xf32, #tpu.memory_space<vmem>>) target_semaphore(%48 : memref<!tpu.dma_semaphore, #tpu.memory_space<semaphore_mem>>)
    %c1_31 = arith.constant 1 : index
    %c3_32 = arith.constant 3 : index
    %49 = memref.load %arg0[%c1_31, %c3_32] : memref<2x8xi32, #tpu.memory_space<smem>>
    %c7_i32 = arith.constant 7 : i32
    %c7_i32_33 = arith.constant 7 : i32
    %c0_i32_34 = arith.constant 0 : i32
    %50 = tpu.memref_slice %arg1[%49, %c0_i32_34] : memref<2000x128xf32, #tpu.memory_space<any>> -> memref<1x128xf32, #tpu.memory_space<any>>
    %51 = tpu.memref_squeeze %50 : memref<1x128xf32, #tpu.memory_space<any>> -> memref<128xf32, #tpu.memory_space<any>>
    %c0_i32_35 = arith.constant 0 : i32
    %52 = tpu.memref_slice %arg9[%c7_i32, %c0_i32_35] : memref<16x128xf32, #tpu.memory_space<vmem>> -> memref<1x128xf32, #tpu.memory_space<vmem>>
    %53 = tpu.memref_squeeze %52 : memref<1x128xf32, #tpu.memory_space<vmem>> -> memref<128xf32, #tpu.memory_space<vmem>>
    %54 = tpu.memref_slice %arg12[%c7_i32_33] : memref<16x!tpu.dma_semaphore, #tpu.memory_space<semaphore_mem>> -> memref<1x!tpu.dma_semaphore, #tpu.memory_space<semaphore_mem>>
    %55 = tpu.memref_squeeze %54 : memref<1x!tpu.dma_semaphore, #tpu.memory_space<semaphore_mem>> -> memref<!tpu.dma_semaphore, #tpu.memory_space<semaphore_mem>>
    tpu.enqueue_dma source(%51 : memref<128xf32, #tpu.memory_space<any>>) target(%53 : memref<128xf32, #tpu.memory_space<vmem>>) target_semaphore(%55 : memref<!tpu.dma_semaphore, #tpu.memory_space<semaphore_mem>>)
    %c0_36 = arith.constant 0 : index
    %c4 = arith.constant 4 : index
    %56 = memref.load %arg0[%c0_36, %c4] : memref<2x8xi32, #tpu.memory_space<smem>>
    %c8_i32 = arith.constant 8 : i32
    %c8_i32_37 = arith.constant 8 : i32
    %c0_i32_38 = arith.constant 0 : i32
    %57 = tpu.memref_slice %arg1[%56, %c0_i32_38] : memref<2000x128xf32, #tpu.memory_space<any>> -> memref<1x128xf32, #tpu.memory_space<any>>
    %58 = tpu.memref_squeeze %57 : memref<1x128xf32, #tpu.memory_space<any>> -> memref<128xf32, #tpu.memory_space<any>>
    %c0_i32_39 = arith.constant 0 : i32
    %59 = tpu.memref_slice %arg9[%c8_i32, %c0_i32_39] : memref<16x128xf32, #tpu.memory_space<vmem>> -> memref<1x128xf32, #tpu.memory_space<vmem>>
    %60 = tpu.memref_squeeze %59 : memref<1x128xf32, #tpu.memory_space<vmem>> -> memref<128xf32, #tpu.memory_space<vmem>>
    %61 = tpu.memref_slice %arg12[%c8_i32_37] : memref<16x!tpu.dma_semaphore, #tpu.memory_space<semaphore_mem>> -> memref<1x!tpu.dma_semaphore, #tpu.memory_space<semaphore_mem>>
    %62 = tpu.memref_squeeze %61 : memref<1x!tpu.dma_semaphore, #tpu.memory_space<semaphore_mem>> -> memref<!tpu.dma_semaphore, #tpu.memory_space<semaphore_mem>>
    tpu.enqueue_dma source(%58 : memref<128xf32, #tpu.memory_space<any>>) target(%60 : memref<128xf32, #tpu.memory_space<vmem>>) target_semaphore(%62 : memref<!tpu.dma_semaphore, #tpu.memory_space<semaphore_mem>>)
    %c1_40 = arith.constant 1 : index
    %c4_41 = arith.constant 4 : index
    %63 = memref.load %arg0[%c1_40, %c4_41] : memref<2x8xi32, #tpu.memory_space<smem>>
    %c9_i32 = arith.constant 9 : i32
    %c9_i32_42 = arith.constant 9 : i32
    %c0_i32_43 = arith.constant 0 : i32
    %64 = tpu.memref_slice %arg1[%63, %c0_i32_43] : memref<2000x128xf32, #tpu.memory_space<any>> -> memref<1x128xf32, #tpu.memory_space<any>>
    %65 = tpu.memref_squeeze %64 : memref<1x128xf32, #tpu.memory_space<any>> -> memref<128xf32, #tpu.memory_space<any>>
    %c0_i32_44 = arith.constant 0 : i32
    %66 = tpu.memref_slice %arg9[%c9_i32, %c0_i32_44] : memref<16x128xf32, #tpu.memory_space<vmem>> -> memref<1x128xf32, #tpu.memory_space<vmem>>
    %67 = tpu.memref_squeeze %66 : memref<1x128xf32, #tpu.memory_space<vmem>> -> memref<128xf32, #tpu.memory_space<vmem>>
    %68 = tpu.memref_slice %arg12[%c9_i32_42] : memref<16x!tpu.dma_semaphore, #tpu.memory_space<semaphore_mem>> -> memref<1x!tpu.dma_semaphore, #tpu.memory_space<semaphore_mem>>
    %69 = tpu.memref_squeeze %68 : memref<1x!tpu.dma_semaphore, #tpu.memory_space<semaphore_mem>> -> memref<!tpu.dma_semaphore, #tpu.memory_space<semaphore_mem>>
    tpu.enqueue_dma source(%65 : memref<128xf32, #tpu.memory_space<any>>) target(%67 : memref<128xf32, #tpu.memory_space<vmem>>) target_semaphore(%69 : memref<!tpu.dma_semaphore, #tpu.memory_space<semaphore_mem>>)
    %c0_45 = arith.constant 0 : index
    %c5 = arith.constant 5 : index
    %70 = memref.load %arg0[%c0_45, %c5] : memref<2x8xi32, #tpu.memory_space<smem>>
    %c10_i32 = arith.constant 10 : i32
    %c10_i32_46 = arith.constant 10 : i32
    %c0_i32_47 = arith.constant 0 : i32
    %71 = tpu.memref_slice %arg1[%70, %c0_i32_47] : memref<2000x128xf32, #tpu.memory_space<any>> -> memref<1x128xf32, #tpu.memory_space<any>>
    %72 = tpu.memref_squeeze %71 : memref<1x128xf32, #tpu.memory_space<any>> -> memref<128xf32, #tpu.memory_space<any>>
    %c0_i32_48 = arith.constant 0 : i32
    %73 = tpu.memref_slice %arg9[%c10_i32, %c0_i32_48] : memref<16x128xf32, #tpu.memory_space<vmem>> -> memref<1x128xf32, #tpu.memory_space<vmem>>
    %74 = tpu.memref_squeeze %73 : memref<1x128xf32, #tpu.memory_space<vmem>> -> memref<128xf32, #tpu.memory_space<vmem>>
    %75 = tpu.memref_slice %arg12[%c10_i32_46] : memref<16x!tpu.dma_semaphore, #tpu.memory_space<semaphore_mem>> -> memref<1x!tpu.dma_semaphore, #tpu.memory_space<semaphore_mem>>
    %76 = tpu.memref_squeeze %75 : memref<1x!tpu.dma_semaphore, #tpu.memory_space<semaphore_mem>> -> memref<!tpu.dma_semaphore, #tpu.memory_space<semaphore_mem>>
    tpu.enqueue_dma source(%72 : memref<128xf32, #tpu.memory_space<any>>) target(%74 : memref<128xf32, #tpu.memory_space<vmem>>) target_semaphore(%76 : memref<!tpu.dma_semaphore, #tpu.memory_space<semaphore_mem>>)
    %c1_49 = arith.constant 1 : index
    %c5_50 = arith.constant 5 : index
    %77 = memref.load %arg0[%c1_49, %c5_50] : memref<2x8xi32, #tpu.memory_space<smem>>
    %c11_i32 = arith.constant 11 : i32
    %c11_i32_51 = arith.constant 11 : i32
    %c0_i32_52 = arith.constant 0 : i32
    %78 = tpu.memref_slice %arg1[%77, %c0_i32_52] : memref<2000x128xf32, #tpu.memory_space<any>> -> memref<1x128xf32, #tpu.memory_space<any>>
    %79 = tpu.memref_squeeze %78 : memref<1x128xf32, #tpu.memory_space<any>> -> memref<128xf32, #tpu.memory_space<any>>
    %c0_i32_53 = arith.constant 0 : i32
    %80 = tpu.memref_slice %arg9[%c11_i32, %c0_i32_53] : memref<16x128xf32, #tpu.memory_space<vmem>> -> memref<1x128xf32, #tpu.memory_space<vmem>>
    %81 = tpu.memref_squeeze %80 : memref<1x128xf32, #tpu.memory_space<vmem>> -> memref<128xf32, #tpu.memory_space<vmem>>
    %82 = tpu.memref_slice %arg12[%c11_i32_51] : memref<16x!tpu.dma_semaphore, #tpu.memory_space<semaphore_mem>> -> memref<1x!tpu.dma_semaphore, #tpu.memory_space<semaphore_mem>>
    %83 = tpu.memref_squeeze %82 : memref<1x!tpu.dma_semaphore, #tpu.memory_space<semaphore_mem>> -> memref<!tpu.dma_semaphore, #tpu.memory_space<semaphore_mem>>
    tpu.enqueue_dma source(%79 : memref<128xf32, #tpu.memory_space<any>>) target(%81 : memref<128xf32, #tpu.memory_space<vmem>>) target_semaphore(%83 : memref<!tpu.dma_semaphore, #tpu.memory_space<semaphore_mem>>)
    %c0_54 = arith.constant 0 : index
    %c6 = arith.constant 6 : index
    %84 = memref.load %arg0[%c0_54, %c6] : memref<2x8xi32, #tpu.memory_space<smem>>
    %c12_i32 = arith.constant 12 : i32
    %c12_i32_55 = arith.constant 12 : i32
    %c0_i32_56 = arith.constant 0 : i32
    %85 = tpu.memref_slice %arg1[%84, %c0_i32_56] : memref<2000x128xf32, #tpu.memory_space<any>> -> memref<1x128xf32, #tpu.memory_space<any>>
    %86 = tpu.memref_squeeze %85 : memref<1x128xf32, #tpu.memory_space<any>> -> memref<128xf32, #tpu.memory_space<any>>
    %c0_i32_57 = arith.constant 0 : i32
    %87 = tpu.memref_slice %arg9[%c12_i32, %c0_i32_57] : memref<16x128xf32, #tpu.memory_space<vmem>> -> memref<1x128xf32, #tpu.memory_space<vmem>>
    %88 = tpu.memref_squeeze %87 : memref<1x128xf32, #tpu.memory_space<vmem>> -> memref<128xf32, #tpu.memory_space<vmem>>
    %89 = tpu.memref_slice %arg12[%c12_i32_55] : memref<16x!tpu.dma_semaphore, #tpu.memory_space<semaphore_mem>> -> memref<1x!tpu.dma_semaphore, #tpu.memory_space<semaphore_mem>>
    %90 = tpu.memref_squeeze %89 : memref<1x!tpu.dma_semaphore, #tpu.memory_space<semaphore_mem>> -> memref<!tpu.dma_semaphore, #tpu.memory_space<semaphore_mem>>
    tpu.enqueue_dma source(%86 : memref<128xf32, #tpu.memory_space<any>>) target(%88 : memref<128xf32, #tpu.memory_space<vmem>>) target_semaphore(%90 : memref<!tpu.dma_semaphore, #tpu.memory_space<semaphore_mem>>)
    %c1_58 = arith.constant 1 : index
    %c6_59 = arith.constant 6 : index
    %91 = memref.load %arg0[%c1_58, %c6_59] : memref<2x8xi32, #tpu.memory_space<smem>>
    %c13_i32 = arith.constant 13 : i32
    %c13_i32_60 = arith.constant 13 : i32
    %c0_i32_61 = arith.constant 0 : i32
    %92 = tpu.memref_slice %arg1[%91, %c0_i32_61] : memref<2000x128xf32, #tpu.memory_space<any>> -> memref<1x128xf32, #tpu.memory_space<any>>
    %93 = tpu.memref_squeeze %92 : memref<1x128xf32, #tpu.memory_space<any>> -> memref<128xf32, #tpu.memory_space<any>>
    %c0_i32_62 = arith.constant 0 : i32
    %94 = tpu.memref_slice %arg9[%c13_i32, %c0_i32_62] : memref<16x128xf32, #tpu.memory_space<vmem>> -> memref<1x128xf32, #tpu.memory_space<vmem>>
    %95 = tpu.memref_squeeze %94 : memref<1x128xf32, #tpu.memory_space<vmem>> -> memref<128xf32, #tpu.memory_space<vmem>>
    %96 = tpu.memref_slice %arg12[%c13_i32_60] : memref<16x!tpu.dma_semaphore, #tpu.memory_space<semaphore_mem>> -> memref<1x!tpu.dma_semaphore, #tpu.memory_space<semaphore_mem>>
    %97 = tpu.memref_squeeze %96 : memref<1x!tpu.dma_semaphore, #tpu.memory_space<semaphore_mem>> -> memref<!tpu.dma_semaphore, #tpu.memory_space<semaphore_mem>>
    tpu.enqueue_dma source(%93 : memref<128xf32, #tpu.memory_space<any>>) target(%95 : memref<128xf32, #tpu.memory_space<vmem>>) target_semaphore(%97 : memref<!tpu.dma_semaphore, #tpu.memory_space<semaphore_mem>>)
    %c0_63 = arith.constant 0 : index
    %c7 = arith.constant 7 : index
    %98 = memref.load %arg0[%c0_63, %c7] : memref<2x8xi32, #tpu.memory_space<smem>>
    %c14_i32 = arith.constant 14 : i32
    %c14_i32_64 = arith.constant 14 : i32
    %c0_i32_65 = arith.constant 0 : i32
    %99 = tpu.memref_slice %arg1[%98, %c0_i32_65] : memref<2000x128xf32, #tpu.memory_space<any>> -> memref<1x128xf32, #tpu.memory_space<any>>
    %100 = tpu.memref_squeeze %99 : memref<1x128xf32, #tpu.memory_space<any>> -> memref<128xf32, #tpu.memory_space<any>>
    %c0_i32_66 = arith.constant 0 : i32
    %101 = tpu.memref_slice %arg9[%c14_i32, %c0_i32_66] : memref<16x128xf32, #tpu.memory_space<vmem>> -> memref<1x128xf32, #tpu.memory_space<vmem>>
    %102 = tpu.memref_squeeze %101 : memref<1x128xf32, #tpu.memory_space<vmem>> -> memref<128xf32, #tpu.memory_space<vmem>>
    %103 = tpu.memref_slice %arg12[%c14_i32_64] : memref<16x!tpu.dma_semaphore, #tpu.memory_space<semaphore_mem>> -> memref<1x!tpu.dma_semaphore, #tpu.memory_space<semaphore_mem>>
    %104 = tpu.memref_squeeze %103 : memref<1x!tpu.dma_semaphore, #tpu.memory_space<semaphore_mem>> -> memref<!tpu.dma_semaphore, #tpu.memory_space<semaphore_mem>>
    tpu.enqueue_dma source(%100 : memref<128xf32, #tpu.memory_space<any>>) target(%102 : memref<128xf32, #tpu.memory_space<vmem>>) target_semaphore(%104 : memref<!tpu.dma_semaphore, #tpu.memory_space<semaphore_mem>>)
    %c1_67 = arith.constant 1 : index
    %c7_68 = arith.constant 7 : index
    %105 = memref.load %arg0[%c1_67, %c7_68] : memref<2x8xi32, #tpu.memory_space<smem>>
    %c15_i32 = arith.constant 15 : i32
    %c15_i32_69 = arith.constant 15 : i32
    %c0_i32_70 = arith.constant 0 : i32
    %106 = tpu.memref_slice %arg1[%105, %c0_i32_70] : memref<2000x128xf32, #tpu.memory_space<any>> -> memref<1x128xf32, #tpu.memory_space<any>>
    %107 = tpu.memref_squeeze %106 : memref<1x128xf32, #tpu.memory_space<any>> -> memref<128xf32, #tpu.memory_space<any>>
    %c0_i32_71 = arith.constant 0 : i32
    %108 = tpu.memref_slice %arg9[%c15_i32, %c0_i32_71] : memref<16x128xf32, #tpu.memory_space<vmem>> -> memref<1x128xf32, #tpu.memory_space<vmem>>
    %109 = tpu.memref_squeeze %108 : memref<1x128xf32, #tpu.memory_space<vmem>> -> memref<128xf32, #tpu.memory_space<vmem>>
    %110 = tpu.memref_slice %arg12[%c15_i32_69] : memref<16x!tpu.dma_semaphore, #tpu.memory_space<semaphore_mem>> -> memref<1x!tpu.dma_semaphore, #tpu.memory_space<semaphore_mem>>
    %111 = tpu.memref_squeeze %110 : memref<1x!tpu.dma_semaphore, #tpu.memory_space<semaphore_mem>> -> memref<!tpu.dma_semaphore, #tpu.memory_space<semaphore_mem>>
    tpu.enqueue_dma source(%107 : memref<128xf32, #tpu.memory_space<any>>) target(%109 : memref<128xf32, #tpu.memory_space<vmem>>) target_semaphore(%111 : memref<!tpu.dma_semaphore, #tpu.memory_space<semaphore_mem>>)
    %c0_i32_72 = arith.constant 0 : i32
    %c0_i32_73 = arith.constant 0 : i32
    %c0_i32_74 = arith.constant 0 : i32
    %112 = tpu.memref_slice %arg1[%0, %c0_i32_74] : memref<2000x128xf32, #tpu.memory_space<any>> -> memref<1x128xf32, #tpu.memory_space<any>>
    %113 = tpu.memref_squeeze %112 : memref<1x128xf32, #tpu.memory_space<any>> -> memref<128xf32, #tpu.memory_space<any>>
    %c0_i32_75 = arith.constant 0 : i32
    %114 = tpu.memref_slice %arg9[%c0_i32_72, %c0_i32_75] : memref<16x128xf32, #tpu.memory_space<vmem>> -> memref<1x128xf32, #tpu.memory_space<vmem>>
    %115 = tpu.memref_squeeze %114 : memref<1x128xf32, #tpu.memory_space<vmem>> -> memref<128xf32, #tpu.memory_space<vmem>>
    %116 = tpu.memref_slice %arg12[%c0_i32_73] : memref<16x!tpu.dma_semaphore, #tpu.memory_space<semaphore_mem>> -> memref<1x!tpu.dma_semaphore, #tpu.memory_space<semaphore_mem>>
    %117 = tpu.memref_squeeze %116 : memref<1x!tpu.dma_semaphore, #tpu.memory_space<semaphore_mem>> -> memref<!tpu.dma_semaphore, #tpu.memory_space<semaphore_mem>>
    tpu.wait_dma2 semaphore(%117 : memref<!tpu.dma_semaphore, #tpu.memory_space<semaphore_mem>>) src(%113 : memref<128xf32, #tpu.memory_space<any>>) dst(%115 : memref<128xf32, #tpu.memory_space<vmem>>)
    %c1_i32_76 = arith.constant 1 : i32
    %c1_i32_77 = arith.constant 1 : i32
    %c0_i32_78 = arith.constant 0 : i32
    %118 = tpu.memref_slice %arg1[%7, %c0_i32_78] : memref<2000x128xf32, #tpu.memory_space<any>> -> memref<1x128xf32, #tpu.memory_space<any>>
    %119 = tpu.memref_squeeze %118 : memref<1x128xf32, #tpu.memory_space<any>> -> memref<128xf32, #tpu.memory_space<any>>
    %c0_i32_79 = arith.constant 0 : i32
    %120 = tpu.memref_slice %arg9[%c1_i32_76, %c0_i32_79] : memref<16x128xf32, #tpu.memory_space<vmem>> -> memref<1x128xf32, #tpu.memory_space<vmem>>
    %121 = tpu.memref_squeeze %120 : memref<1x128xf32, #tpu.memory_space<vmem>> -> memref<128xf32, #tpu.memory_space<vmem>>
    %122 = tpu.memref_slice %arg12[%c1_i32_77] : memref<16x!tpu.dma_semaphore, #tpu.memory_space<semaphore_mem>> -> memref<1x!tpu.dma_semaphore, #tpu.memory_space<semaphore_mem>>
    %123 = tpu.memref_squeeze %122 : memref<1x!tpu.dma_semaphore, #tpu.memory_space<semaphore_mem>> -> memref<!tpu.dma_semaphore, #tpu.memory_space<semaphore_mem>>
    tpu.wait_dma2 semaphore(%123 : memref<!tpu.dma_semaphore, #tpu.memory_space<semaphore_mem>>) src(%119 : memref<128xf32, #tpu.memory_space<any>>) dst(%121 : memref<128xf32, #tpu.memory_space<vmem>>)
    %c2_i32_80 = arith.constant 2 : i32
    %c2_i32_81 = arith.constant 2 : i32
    %c0_i32_82 = arith.constant 0 : i32
    %124 = tpu.memref_slice %arg1[%14, %c0_i32_82] : memref<2000x128xf32, #tpu.memory_space<any>> -> memref<1x128xf32, #tpu.memory_space<any>>
    %125 = tpu.memref_squeeze %124 : memref<1x128xf32, #tpu.memory_space<any>> -> memref<128xf32, #tpu.memory_space<any>>
    %c0_i32_83 = arith.constant 0 : i32
    %126 = tpu.memref_slice %arg9[%c2_i32_80, %c0_i32_83] : memref<16x128xf32, #tpu.memory_space<vmem>> -> memref<1x128xf32, #tpu.memory_space<vmem>>
    %127 = tpu.memref_squeeze %126 : memref<1x128xf32, #tpu.memory_space<vmem>> -> memref<128xf32, #tpu.memory_space<vmem>>
    %128 = tpu.memref_slice %arg12[%c2_i32_81] : memref<16x!tpu.dma_semaphore, #tpu.memory_space<semaphore_mem>> -> memref<1x!tpu.dma_semaphore, #tpu.memory_space<semaphore_mem>>
    %129 = tpu.memref_squeeze %128 : memref<1x!tpu.dma_semaphore, #tpu.memory_space<semaphore_mem>> -> memref<!tpu.dma_semaphore, #tpu.memory_space<semaphore_mem>>
    tpu.wait_dma2 semaphore(%129 : memref<!tpu.dma_semaphore, #tpu.memory_space<semaphore_mem>>) src(%125 : memref<128xf32, #tpu.memory_space<any>>) dst(%127 : memref<128xf32, #tpu.memory_space<vmem>>)
    %c3_i32_84 = arith.constant 3 : i32
    %c3_i32_85 = arith.constant 3 : i32
    %c0_i32_86 = arith.constant 0 : i32
    %130 = tpu.memref_slice %arg1[%21, %c0_i32_86] : memref<2000x128xf32, #tpu.memory_space<any>> -> memref<1x128xf32, #tpu.memory_space<any>>
    %131 = tpu.memref_squeeze %130 : memref<1x128xf32, #tpu.memory_space<any>> -> memref<128xf32, #tpu.memory_space<any>>
    %c0_i32_87 = arith.constant 0 : i32
    %132 = tpu.memref_slice %arg9[%c3_i32_84, %c0_i32_87] : memref<16x128xf32, #tpu.memory_space<vmem>> -> memref<1x128xf32, #tpu.memory_space<vmem>>
    %133 = tpu.memref_squeeze %132 : memref<1x128xf32, #tpu.memory_space<vmem>> -> memref<128xf32, #tpu.memory_space<vmem>>
    %134 = tpu.memref_slice %arg12[%c3_i32_85] : memref<16x!tpu.dma_semaphore, #tpu.memory_space<semaphore_mem>> -> memref<1x!tpu.dma_semaphore, #tpu.memory_space<semaphore_mem>>
    %135 = tpu.memref_squeeze %134 : memref<1x!tpu.dma_semaphore, #tpu.memory_space<semaphore_mem>> -> memref<!tpu.dma_semaphore, #tpu.memory_space<semaphore_mem>>
    tpu.wait_dma2 semaphore(%135 : memref<!tpu.dma_semaphore, #tpu.memory_space<semaphore_mem>>) src(%131 : memref<128xf32, #tpu.memory_space<any>>) dst(%133 : memref<128xf32, #tpu.memory_space<vmem>>)
    %c4_i32_88 = arith.constant 4 : i32
    %c4_i32_89 = arith.constant 4 : i32
    %c0_i32_90 = arith.constant 0 : i32
    %136 = tpu.memref_slice %arg1[%28, %c0_i32_90] : memref<2000x128xf32, #tpu.memory_space<any>> -> memref<1x128xf32, #tpu.memory_space<any>>
    %137 = tpu.memref_squeeze %136 : memref<1x128xf32, #tpu.memory_space<any>> -> memref<128xf32, #tpu.memory_space<any>>
    %c0_i32_91 = arith.constant 0 : i32
    %138 = tpu.memref_slice %arg9[%c4_i32_88, %c0_i32_91] : memref<16x128xf32, #tpu.memory_space<vmem>> -> memref<1x128xf32, #tpu.memory_space<vmem>>
    %139 = tpu.memref_squeeze %138 : memref<1x128xf32, #tpu.memory_space<vmem>> -> memref<128xf32, #tpu.memory_space<vmem>>
    %140 = tpu.memref_slice %arg12[%c4_i32_89] : memref<16x!tpu.dma_semaphore, #tpu.memory_space<semaphore_mem>> -> memref<1x!tpu.dma_semaphore, #tpu.memory_space<semaphore_mem>>
    %141 = tpu.memref_squeeze %140 : memref<1x!tpu.dma_semaphore, #tpu.memory_space<semaphore_mem>> -> memref<!tpu.dma_semaphore, #tpu.memory_space<semaphore_mem>>
    tpu.wait_dma2 semaphore(%141 : memref<!tpu.dma_semaphore, #tpu.memory_space<semaphore_mem>>) src(%137 : memref<128xf32, #tpu.memory_space<any>>) dst(%139 : memref<128xf32, #tpu.memory_space<vmem>>)
    %c5_i32_92 = arith.constant 5 : i32
    %c5_i32_93 = arith.constant 5 : i32
    %c0_i32_94 = arith.constant 0 : i32
    %142 = tpu.memref_slice %arg1[%35, %c0_i32_94] : memref<2000x128xf32, #tpu.memory_space<any>> -> memref<1x128xf32, #tpu.memory_space<any>>
    %143 = tpu.memref_squeeze %142 : memref<1x128xf32, #tpu.memory_space<any>> -> memref<128xf32, #tpu.memory_space<any>>
    %c0_i32_95 = arith.constant 0 : i32
    %144 = tpu.memref_slice %arg9[%c5_i32_92, %c0_i32_95] : memref<16x128xf32, #tpu.memory_space<vmem>> -> memref<1x128xf32, #tpu.memory_space<vmem>>
    %145 = tpu.memref_squeeze %144 : memref<1x128xf32, #tpu.memory_space<vmem>> -> memref<128xf32, #tpu.memory_space<vmem>>
    %146 = tpu.memref_slice %arg12[%c5_i32_93] : memref<16x!tpu.dma_semaphore, #tpu.memory_space<semaphore_mem>> -> memref<1x!tpu.dma_semaphore, #tpu.memory_space<semaphore_mem>>
    %147 = tpu.memref_squeeze %146 : memref<1x!tpu.dma_semaphore, #tpu.memory_space<semaphore_mem>> -> memref<!tpu.dma_semaphore, #tpu.memory_space<semaphore_mem>>
    tpu.wait_dma2 semaphore(%147 : memref<!tpu.dma_semaphore, #tpu.memory_space<semaphore_mem>>) src(%143 : memref<128xf32, #tpu.memory_space<any>>) dst(%145 : memref<128xf32, #tpu.memory_space<vmem>>)
    %c6_i32_96 = arith.constant 6 : i32
    %c6_i32_97 = arith.constant 6 : i32
    %c0_i32_98 = arith.constant 0 : i32
    %148 = tpu.memref_slice %arg1[%42, %c0_i32_98] : memref<2000x128xf32, #tpu.memory_space<any>> -> memref<1x128xf32, #tpu.memory_space<any>>
    %149 = tpu.memref_squeeze %148 : memref<1x128xf32, #tpu.memory_space<any>> -> memref<128xf32, #tpu.memory_space<any>>
    %c0_i32_99 = arith.constant 0 : i32
    %150 = tpu.memref_slice %arg9[%c6_i32_96, %c0_i32_99] : memref<16x128xf32, #tpu.memory_space<vmem>> -> memref<1x128xf32, #tpu.memory_space<vmem>>
    %151 = tpu.memref_squeeze %150 : memref<1x128xf32, #tpu.memory_space<vmem>> -> memref<128xf32, #tpu.memory_space<vmem>>
    %152 = tpu.memref_slice %arg12[%c6_i32_97] : memref<16x!tpu.dma_semaphore, #tpu.memory_space<semaphore_mem>> -> memref<1x!tpu.dma_semaphore, #tpu.memory_space<semaphore_mem>>
    %153 = tpu.memref_squeeze %152 : memref<1x!tpu.dma_semaphore, #tpu.memory_space<semaphore_mem>> -> memref<!tpu.dma_semaphore, #tpu.memory_space<semaphore_mem>>
    tpu.wait_dma2 semaphore(%153 : memref<!tpu.dma_semaphore, #tpu.memory_space<semaphore_mem>>) src(%149 : memref<128xf32, #tpu.memory_space<any>>) dst(%151 : memref<128xf32, #tpu.memory_space<vmem>>)
    %c7_i32_100 = arith.constant 7 : i32
    %c7_i32_101 = arith.constant 7 : i32
    %c0_i32_102 = arith.constant 0 : i32
    %154 = tpu.memref_slice %arg1[%49, %c0_i32_102] : memref<2000x128xf32, #tpu.memory_space<any>> -> memref<1x128xf32, #tpu.memory_space<any>>
    %155 = tpu.memref_squeeze %154 : memref<1x128xf32, #tpu.memory_space<any>> -> memref<128xf32, #tpu.memory_space<any>>
    %c0_i32_103 = arith.constant 0 : i32
    %156 = tpu.memref_slice %arg9[%c7_i32_100, %c0_i32_103] : memref<16x128xf32, #tpu.memory_space<vmem>> -> memref<1x128xf32, #tpu.memory_space<vmem>>
    %157 = tpu.memref_squeeze %156 : memref<1x128xf32, #tpu.memory_space<vmem>> -> memref<128xf32, #tpu.memory_space<vmem>>
    %158 = tpu.memref_slice %arg12[%c7_i32_101] : memref<16x!tpu.dma_semaphore, #tpu.memory_space<semaphore_mem>> -> memref<1x!tpu.dma_semaphore, #tpu.memory_space<semaphore_mem>>
    %159 = tpu.memref_squeeze %158 : memref<1x!tpu.dma_semaphore, #tpu.memory_space<semaphore_mem>> -> memref<!tpu.dma_semaphore, #tpu.memory_space<semaphore_mem>>
    tpu.wait_dma2 semaphore(%159 : memref<!tpu.dma_semaphore, #tpu.memory_space<semaphore_mem>>) src(%155 : memref<128xf32, #tpu.memory_space<any>>) dst(%157 : memref<128xf32, #tpu.memory_space<vmem>>)
    %c8_i32_104 = arith.constant 8 : i32
    %c8_i32_105 = arith.constant 8 : i32
    %c0_i32_106 = arith.constant 0 : i32
    %160 = tpu.memref_slice %arg1[%56, %c0_i32_106] : memref<2000x128xf32, #tpu.memory_space<any>> -> memref<1x128xf32, #tpu.memory_space<any>>
    %161 = tpu.memref_squeeze %160 : memref<1x128xf32, #tpu.memory_space<any>> -> memref<128xf32, #tpu.memory_space<any>>
    %c0_i32_107 = arith.constant 0 : i32
    %162 = tpu.memref_slice %arg9[%c8_i32_104, %c0_i32_107] : memref<16x128xf32, #tpu.memory_space<vmem>> -> memref<1x128xf32, #tpu.memory_space<vmem>>
    %163 = tpu.memref_squeeze %162 : memref<1x128xf32, #tpu.memory_space<vmem>> -> memref<128xf32, #tpu.memory_space<vmem>>
    %164 = tpu.memref_slice %arg12[%c8_i32_105] : memref<16x!tpu.dma_semaphore, #tpu.memory_space<semaphore_mem>> -> memref<1x!tpu.dma_semaphore, #tpu.memory_space<semaphore_mem>>
    %165 = tpu.memref_squeeze %164 : memref<1x!tpu.dma_semaphore, #tpu.memory_space<semaphore_mem>> -> memref<!tpu.dma_semaphore, #tpu.memory_space<semaphore_mem>>
    tpu.wait_dma2 semaphore(%165 : memref<!tpu.dma_semaphore, #tpu.memory_space<semaphore_mem>>) src(%161 : memref<128xf32, #tpu.memory_space<any>>) dst(%163 : memref<128xf32, #tpu.memory_space<vmem>>)
    %c9_i32_108 = arith.constant 9 : i32
    %c9_i32_109 = arith.constant 9 : i32
    %c0_i32_110 = arith.constant 0 : i32
    %166 = tpu.memref_slice %arg1[%63, %c0_i32_110] : memref<2000x128xf32, #tpu.memory_space<any>> -> memref<1x128xf32, #tpu.memory_space<any>>
    %167 = tpu.memref_squeeze %166 : memref<1x128xf32, #tpu.memory_space<any>> -> memref<128xf32, #tpu.memory_space<any>>
    %c0_i32_111 = arith.constant 0 : i32
    %168 = tpu.memref_slice %arg9[%c9_i32_108, %c0_i32_111] : memref<16x128xf32, #tpu.memory_space<vmem>> -> memref<1x128xf32, #tpu.memory_space<vmem>>
    %169 = tpu.memref_squeeze %168 : memref<1x128xf32, #tpu.memory_space<vmem>> -> memref<128xf32, #tpu.memory_space<vmem>>
    %170 = tpu.memref_slice %arg12[%c9_i32_109] : memref<16x!tpu.dma_semaphore, #tpu.memory_space<semaphore_mem>> -> memref<1x!tpu.dma_semaphore, #tpu.memory_space<semaphore_mem>>
    %171 = tpu.memref_squeeze %170 : memref<1x!tpu.dma_semaphore, #tpu.memory_space<semaphore_mem>> -> memref<!tpu.dma_semaphore, #tpu.memory_space<semaphore_mem>>
    tpu.wait_dma2 semaphore(%171 : memref<!tpu.dma_semaphore, #tpu.memory_space<semaphore_mem>>) src(%167 : memref<128xf32, #tpu.memory_space<any>>) dst(%169 : memref<128xf32, #tpu.memory_space<vmem>>)
    %c10_i32_112 = arith.constant 10 : i32
    %c10_i32_113 = arith.constant 10 : i32
    %c0_i32_114 = arith.constant 0 : i32
    %172 = tpu.memref_slice %arg1[%70, %c0_i32_114] : memref<2000x128xf32, #tpu.memory_space<any>> -> memref<1x128xf32, #tpu.memory_space<any>>
    %173 = tpu.memref_squeeze %172 : memref<1x128xf32, #tpu.memory_space<any>> -> memref<128xf32, #tpu.memory_space<any>>
    %c0_i32_115 = arith.constant 0 : i32
    %174 = tpu.memref_slice %arg9[%c10_i32_112, %c0_i32_115] : memref<16x128xf32, #tpu.memory_space<vmem>> -> memref<1x128xf32, #tpu.memory_space<vmem>>
    %175 = tpu.memref_squeeze %174 : memref<1x128xf32, #tpu.memory_space<vmem>> -> memref<128xf32, #tpu.memory_space<vmem>>
    %176 = tpu.memref_slice %arg12[%c10_i32_113] : memref<16x!tpu.dma_semaphore, #tpu.memory_space<semaphore_mem>> -> memref<1x!tpu.dma_semaphore, #tpu.memory_space<semaphore_mem>>
    %177 = tpu.memref_squeeze %176 : memref<1x!tpu.dma_semaphore, #tpu.memory_space<semaphore_mem>> -> memref<!tpu.dma_semaphore, #tpu.memory_space<semaphore_mem>>
    tpu.wait_dma2 semaphore(%177 : memref<!tpu.dma_semaphore, #tpu.memory_space<semaphore_mem>>) src(%173 : memref<128xf32, #tpu.memory_space<any>>) dst(%175 : memref<128xf32, #tpu.memory_space<vmem>>)
    %c11_i32_116 = arith.constant 11 : i32
    %c11_i32_117 = arith.constant 11 : i32
    %c0_i32_118 = arith.constant 0 : i32
    %178 = tpu.memref_slice %arg1[%77, %c0_i32_118] : memref<2000x128xf32, #tpu.memory_space<any>> -> memref<1x128xf32, #tpu.memory_space<any>>
    %179 = tpu.memref_squeeze %178 : memref<1x128xf32, #tpu.memory_space<any>> -> memref<128xf32, #tpu.memory_space<any>>
    %c0_i32_119 = arith.constant 0 : i32
    %180 = tpu.memref_slice %arg9[%c11_i32_116, %c0_i32_119] : memref<16x128xf32, #tpu.memory_space<vmem>> -> memref<1x128xf32, #tpu.memory_space<vmem>>
    %181 = tpu.memref_squeeze %180 : memref<1x128xf32, #tpu.memory_space<vmem>> -> memref<128xf32, #tpu.memory_space<vmem>>
    %182 = tpu.memref_slice %arg12[%c11_i32_117] : memref<16x!tpu.dma_semaphore, #tpu.memory_space<semaphore_mem>> -> memref<1x!tpu.dma_semaphore, #tpu.memory_space<semaphore_mem>>
    %183 = tpu.memref_squeeze %182 : memref<1x!tpu.dma_semaphore, #tpu.memory_space<semaphore_mem>> -> memref<!tpu.dma_semaphore, #tpu.memory_space<semaphore_mem>>
    tpu.wait_dma2 semaphore(%183 : memref<!tpu.dma_semaphore, #tpu.memory_space<semaphore_mem>>) src(%179 : memref<128xf32, #tpu.memory_space<any>>) dst(%181 : memref<128xf32, #tpu.memory_space<vmem>>)
    %c12_i32_120 = arith.constant 12 : i32
    %c12_i32_121 = arith.constant 12 : i32
    %c0_i32_122 = arith.constant 0 : i32
    %184 = tpu.memref_slice %arg1[%84, %c0_i32_122] : memref<2000x128xf32, #tpu.memory_space<any>> -> memref<1x128xf32, #tpu.memory_space<any>>
    %185 = tpu.memref_squeeze %184 : memref<1x128xf32, #tpu.memory_space<any>> -> memref<128xf32, #tpu.memory_space<any>>
    %c0_i32_123 = arith.constant 0 : i32
    %186 = tpu.memref_slice %arg9[%c12_i32_120, %c0_i32_123] : memref<16x128xf32, #tpu.memory_space<vmem>> -> memref<1x128xf32, #tpu.memory_space<vmem>>
    %187 = tpu.memref_squeeze %186 : memref<1x128xf32, #tpu.memory_space<vmem>> -> memref<128xf32, #tpu.memory_space<vmem>>
    %188 = tpu.memref_slice %arg12[%c12_i32_121] : memref<16x!tpu.dma_semaphore, #tpu.memory_space<semaphore_mem>> -> memref<1x!tpu.dma_semaphore, #tpu.memory_space<semaphore_mem>>
    %189 = tpu.memref_squeeze %188 : memref<1x!tpu.dma_semaphore, #tpu.memory_space<semaphore_mem>> -> memref<!tpu.dma_semaphore, #tpu.memory_space<semaphore_mem>>
    tpu.wait_dma2 semaphore(%189 : memref<!tpu.dma_semaphore, #tpu.memory_space<semaphore_mem>>) src(%185 : memref<128xf32, #tpu.memory_space<any>>) dst(%187 : memref<128xf32, #tpu.memory_space<vmem>>)
    %c13_i32_124 = arith.constant 13 : i32
    %c13_i32_125 = arith.constant 13 : i32
    %c0_i32_126 = arith.constant 0 : i32
    %190 = tpu.memref_slice %arg1[%91, %c0_i32_126] : memref<2000x128xf32, #tpu.memory_space<any>> -> memref<1x128xf32, #tpu.memory_space<any>>
    %191 = tpu.memref_squeeze %190 : memref<1x128xf32, #tpu.memory_space<any>> -> memref<128xf32, #tpu.memory_space<any>>
    %c0_i32_127 = arith.constant 0 : i32
    %192 = tpu.memref_slice %arg9[%c13_i32_124, %c0_i32_127] : memref<16x128xf32, #tpu.memory_space<vmem>> -> memref<1x128xf32, #tpu.memory_space<vmem>>
    %193 = tpu.memref_squeeze %192 : memref<1x128xf32, #tpu.memory_space<vmem>> -> memref<128xf32, #tpu.memory_space<vmem>>
    %194 = tpu.memref_slice %arg12[%c13_i32_125] : memref<16x!tpu.dma_semaphore, #tpu.memory_space<semaphore_mem>> -> memref<1x!tpu.dma_semaphore, #tpu.memory_space<semaphore_mem>>
    %195 = tpu.memref_squeeze %194 : memref<1x!tpu.dma_semaphore, #tpu.memory_space<semaphore_mem>> -> memref<!tpu.dma_semaphore, #tpu.memory_space<semaphore_mem>>
    tpu.wait_dma2 semaphore(%195 : memref<!tpu.dma_semaphore, #tpu.memory_space<semaphore_mem>>) src(%191 : memref<128xf32, #tpu.memory_space<any>>) dst(%193 : memref<128xf32, #tpu.memory_space<vmem>>)
    %c14_i32_128 = arith.constant 14 : i32
    %c14_i32_129 = arith.constant 14 : i32
    %c0_i32_130 = arith.constant 0 : i32
    %196 = tpu.memref_slice %arg1[%98, %c0_i32_130] : memref<2000x128xf32, #tpu.memory_space<any>> -> memref<1x128xf32, #tpu.memory_space<any>>
    %197 = tpu.memref_squeeze %196 : memref<1x128xf32, #tpu.memory_space<any>> -> memref<128xf32, #tpu.memory_space<any>>
    %c0_i32_131 = arith.constant 0 : i32
    %198 = tpu.memref_slice %arg9[%c14_i32_128, %c0_i32_131] : memref<16x128xf32, #tpu.memory_space<vmem>> -> memref<1x128xf32, #tpu.memory_space<vmem>>
    %199 = tpu.memref_squeeze %198 : memref<1x128xf32, #tpu.memory_space<vmem>> -> memref<128xf32, #tpu.memory_space<vmem>>
    %200 = tpu.memref_slice %arg12[%c14_i32_129] : memref<16x!tpu.dma_semaphore, #tpu.memory_space<semaphore_mem>> -> memref<1x!tpu.dma_semaphore, #tpu.memory_space<semaphore_mem>>
    %201 = tpu.memref_squeeze %200 : memref<1x!tpu.dma_semaphore, #tpu.memory_space<semaphore_mem>> -> memref<!tpu.dma_semaphore, #tpu.memory_space<semaphore_mem>>
    tpu.wait_dma2 semaphore(%201 : memref<!tpu.dma_semaphore, #tpu.memory_space<semaphore_mem>>) src(%197 : memref<128xf32, #tpu.memory_space<any>>) dst(%199 : memref<128xf32, #tpu.memory_space<vmem>>)
    %c15_i32_132 = arith.constant 15 : i32
    %c15_i32_133 = arith.constant 15 : i32
    %c0_i32_134 = arith.constant 0 : i32
    %202 = tpu.memref_slice %arg1[%105, %c0_i32_134] : memref<2000x128xf32, #tpu.memory_space<any>> -> memref<1x128xf32, #tpu.memory_space<any>>
    %203 = tpu.memref_squeeze %202 : memref<1x128xf32, #tpu.memory_space<any>> -> memref<128xf32, #tpu.memory_space<any>>
    %c0_i32_135 = arith.constant 0 : i32
    %204 = tpu.memref_slice %arg9[%c15_i32_132, %c0_i32_135] : memref<16x128xf32, #tpu.memory_space<vmem>> -> memref<1x128xf32, #tpu.memory_space<vmem>>
    %205 = tpu.memref_squeeze %204 : memref<1x128xf32, #tpu.memory_space<vmem>> -> memref<128xf32, #tpu.memory_space<vmem>>
    %206 = tpu.memref_slice %arg12[%c15_i32_133] : memref<16x!tpu.dma_semaphore, #tpu.memory_space<semaphore_mem>> -> memref<1x!tpu.dma_semaphore, #tpu.memory_space<semaphore_mem>>
    %207 = tpu.memref_squeeze %206 : memref<1x!tpu.dma_semaphore, #tpu.memory_space<semaphore_mem>> -> memref<!tpu.dma_semaphore, #tpu.memory_space<semaphore_mem>>
    tpu.wait_dma2 semaphore(%207 : memref<!tpu.dma_semaphore, #tpu.memory_space<semaphore_mem>>) src(%203 : memref<128xf32, #tpu.memory_space<any>>) dst(%205 : memref<128xf32, #tpu.memory_space<vmem>>)
    %c0_136 = arith.constant 0 : index
    %c0_137 = arith.constant 0 : index
    %208 = vector.load %arg9[%c0_136, %c0_137] : memref<16x128xf32, #tpu.memory_space<vmem>>, vector<16x128xf32>
    %c0_138 = arith.constant 0 : index
    %c0_139 = arith.constant 0 : index
    %209 = vector.load %arg2[%c0_138, %c0_139] : memref<128x384xf32, #tpu.memory_space<vmem>>, vector<128x384xf32>
    %cst = arith.constant dense<0.000000e+00> : vector<16x384xf32>
    %210 = tpu.matmul %208, %209, %cst {dimension_numbers = #tpu.dot_dimension_numbers<[1], [0], [0], [1], [0, 0, 1, 1], [], []>} : vector<16x128xf32>, vector<128x384xf32>, vector<16x384xf32> -> vector<16x384xf32>
    %c0_140 = arith.constant 0 : index
    %c0_141 = arith.constant 0 : index
    %211 = vector.load %arg3[%c0_140, %c0_141] : memref<1x384xf32, #tpu.memory_space<vmem>>, vector<1x384xf32>
    %212 = vector.broadcast %211 : vector<1x384xf32> to vector<16x384xf32>
    %213 = arith.addf %210, %212 : vector<16x384xf32>
    %c0_142 = arith.constant 0 : index
    %c0_143 = arith.constant 0 : index
    %214 = vector.load %arg10[%c0_142, %c0_143] : memref<16x384xf32, #tpu.memory_space<vmem>>, vector<16x384xf32>
    tpu.vector_store %arg10[%c0_142, %c0_143], %213 {strides = array<i32>} : memref<16x384xf32, #tpu.memory_space<vmem>>, vector<16x384xf32>,
    %c0_144 = arith.constant 0 : index
    %c0_145 = arith.constant 0 : index
    %215 = vector.load %arg4[%c0_144, %c0_145] : memref<128x384xf32, #tpu.memory_space<vmem>>, vector<128x384xf32>
    %c0_146 = arith.constant 0 : index
    %c0_147 = arith.constant 0 : index
    %216 = vector.load %arg5[%c0_146, %c0_147] : memref<1x384xf32, #tpu.memory_space<vmem>>, vector<1x384xf32>
    %217 = vector.shape_cast %216 : vector<1x384xf32> to vector<1x384xf32>
    %218 = vector.broadcast %217 : vector<1x384xf32> to vector<2x384xf32>
    %cst_148 = arith.constant 0.000000e+00 : f32
    %219 = vector.broadcast %cst_148 : f32 to vector<2x128xf32>
    %c0_149 = arith.constant 0 : index
    %c0_150 = arith.constant 0 : index
    %220 = vector.load %arg10[%c0_149, %c0_150] : memref<16x384xf32, #tpu.memory_space<vmem>>, vector<2x384xf32>
    %cst_151 = arith.constant dense<0.000000e+00> : vector<2x384xf32>
    %221 = tpu.matmul %219, %215, %cst_151 {dimension_numbers = #tpu.dot_dimension_numbers<[1], [0], [0], [1], [0, 0, 1, 1], [], []>} : vector<2x128xf32>, vector<128x384xf32>, vector<2x384xf32> -> vector<2x384xf32>
    %222 = arith.addf %221, %218 : vector<2x384xf32>
    %223 = vector.extract_strided_slice %220 {offsets = [0, 0], sizes = [2, 128], strides = [1, 1]} : vector<2x384xf32> to vector<2x128xf32>
    %224 = vector.extract_strided_slice %222 {offsets = [0, 0], sizes = [2, 128], strides = [1, 1]} : vector<2x384xf32> to vector<2x128xf32>
    %225 = arith.addf %223, %224 : vector<2x128xf32>
    %226 = arith.negf %225 : vector<2x128xf32>
    %227 = math.exp %226 : vector<2x128xf32>
    %cst_152 = arith.constant 1.000000e+00 : f32
    %228 = vector.broadcast %cst_152 : f32 to vector<2x128xf32>
    %229 = arith.addf %228, %227 : vector<2x128xf32>
    %230 = arith.divf %228, %229 : vector<2x128xf32>
    %231 = vector.extract_strided_slice %220 {offsets = [0, 128], sizes = [2, 128], strides = [1, 1]} : vector<2x384xf32> to vector<2x128xf32>
    %232 = vector.extract_strided_slice %222 {offsets = [0, 128], sizes = [2, 128], strides = [1, 1]} : vector<2x384xf32> to vector<2x128xf32>
    %233 = arith.addf %231, %232 : vector<2x128xf32>
    %234 = arith.negf %233 : vector<2x128xf32>
    %235 = math.exp %234 : vector<2x128xf32>
    %cst_153 = arith.constant 1.000000e+00 : f32
    %236 = vector.broadcast %cst_153 : f32 to vector<2x128xf32>
    %237 = arith.addf %236, %235 : vector<2x128xf32>
    %238 = arith.divf %236, %237 : vector<2x128xf32>
    %239 = vector.extract_strided_slice %220 {offsets = [0, 256], sizes = [2, 128], strides = [1, 1]} : vector<2x384xf32> to vector<2x128xf32>
    %240 = vector.extract_strided_slice %222 {offsets = [0, 256], sizes = [2, 128], strides = [1, 1]} : vector<2x384xf32> to vector<2x128xf32>
    %241 = arith.mulf %230, %240 : vector<2x128xf32>
    %242 = arith.addf %239, %241 : vector<2x128xf32>
    %243 = math.tanh %242 : vector<2x128xf32>
    %cst_154 = arith.constant 1.000000e+00 : f32
    %244 = vector.broadcast %cst_154 : f32 to vector<2x128xf32>
    %245 = arith.subf %244, %238 : vector<2x128xf32>
    %246 = arith.mulf %245, %243 : vector<2x128xf32>
    %247 = arith.mulf %238, %219 : vector<2x128xf32>
    %248 = arith.addf %246, %247 : vector<2x128xf32>
    %249 = vector.extract_strided_slice %248 {offsets = [0, 0], sizes = [1, 128], strides = [1, 1]} : vector<2x128xf32> to vector<1x128xf32>
    %c0_155 = arith.constant 0 : index
    %c0_156 = arith.constant 0 : index
    %250 = vector.load %arg11[%c0_155, %c0_156] : memref<16x128xf32, #tpu.memory_space<vmem>>, vector<1x128xf32>
    tpu.vector_store %arg11[%c0_155, %c0_156], %249 {strides = array<i32>} : memref<16x128xf32, #tpu.memory_space<vmem>>, vector<1x128xf32>,
    %251 = vector.extract_strided_slice %248 {offsets = [1, 0], sizes = [1, 128], strides = [1, 1]} : vector<2x128xf32> to vector<1x128xf32>
    %c8 = arith.constant 8 : index
    %c0_157 = arith.constant 0 : index
    %252 = vector.load %arg11[%c8, %c0_157] : memref<16x128xf32, #tpu.memory_space<vmem>>, vector<1x128xf32>
    tpu.vector_store %arg11[%c8, %c0_157], %251 {strides = array<i32>} : memref<16x128xf32, #tpu.memory_space<vmem>>, vector<1x128xf32>,
    %c2_158 = arith.constant 2 : index
    %c0_159 = arith.constant 0 : index
    %253 = vector.load %arg10[%c2_158, %c0_159] : memref<16x384xf32, #tpu.memory_space<vmem>>, vector<2x384xf32>
    %cst_160 = arith.constant dense<0.000000e+00> : vector<2x384xf32>
    %254 = tpu.matmul %248, %215, %cst_160 {dimension_numbers = #tpu.dot_dimension_numbers<[1], [0], [0], [1], [0, 0, 1, 1], [], []>} : vector<2x128xf32>, vector<128x384xf32>, vector<2x384xf32> -> vector<2x384xf32>
    %255 = arith.addf %254, %218 : vector<2x384xf32>
    %256 = vector.extract_strided_slice %253 {offsets = [0, 0], sizes = [2, 128], strides = [1, 1]} : vector<2x384xf32> to vector<2x128xf32>
    %257 = vector.extract_strided_slice %255 {offsets = [0, 0], sizes = [2, 128], strides = [1, 1]} : vector<2x384xf32> to vector<2x128xf32>
    %258 = arith.addf %256, %257 : vector<2x128xf32>
    %259 = arith.negf %258 : vector<2x128xf32>
    %260 = math.exp %259 : vector<2x128xf32>
    %cst_161 = arith.constant 1.000000e+00 : f32
    %261 = vector.broadcast %cst_161 : f32 to vector<2x128xf32>
    %262 = arith.addf %261, %260 : vector<2x128xf32>
    %263 = arith.divf %261, %262 : vector<2x128xf32>
    %264 = vector.extract_strided_slice %253 {offsets = [0, 128], sizes = [2, 128], strides = [1, 1]} : vector<2x384xf32> to vector<2x128xf32>
    %265 = vector.extract_strided_slice %255 {offsets = [0, 128], sizes = [2, 128], strides = [1, 1]} : vector<2x384xf32> to vector<2x128xf32>
    %266 = arith.addf %264, %265 : vector<2x128xf32>
    %267 = arith.negf %266 : vector<2x128xf32>
    %268 = math.exp %267 : vector<2x128xf32>
    %cst_162 = arith.constant 1.000000e+00 : f32
    %269 = vector.broadcast %cst_162 : f32 to vector<2x128xf32>
    %270 = arith.addf %269, %268 : vector<2x128xf32>
    %271 = arith.divf %269, %270 : vector<2x128xf32>
    %272 = vector.extract_strided_slice %253 {offsets = [0, 256], sizes = [2, 128], strides = [1, 1]} : vector<2x384xf32> to vector<2x128xf32>
    %273 = vector.extract_strided_slice %255 {offsets = [0, 256], sizes = [2, 128], strides = [1, 1]} : vector<2x384xf32> to vector<2x128xf32>
    %274 = arith.mulf %263, %273 : vector<2x128xf32>
    %275 = arith.addf %272, %274 : vector<2x128xf32>
    %276 = math.tanh %275 : vector<2x128xf32>
    %cst_163 = arith.constant 1.000000e+00 : f32
    %277 = vector.broadcast %cst_163 : f32 to vector<2x128xf32>
    %278 = arith.subf %277, %271 : vector<2x128xf32>
    %279 = arith.mulf %278, %276 : vector<2x128xf32>
    %280 = arith.mulf %271, %248 : vector<2x128xf32>
    %281 = arith.addf %279, %280 : vector<2x128xf32>
    %282 = vector.extract_strided_slice %281 {offsets = [0, 0], sizes = [1, 128], strides = [1, 1]} : vector<2x128xf32> to vector<1x128xf32>
    %c1_164 = arith.constant 1 : index
    %c0_165 = arith.constant 0 : index
    %283 = vector.load %arg11[%c1_164, %c0_165] : memref<16x128xf32, #tpu.memory_space<vmem>>, vector<1x128xf32>
    tpu.vector_store %arg11[%c1_164, %c0_165], %282 {strides = array<i32>} : memref<16x128xf32, #tpu.memory_space<vmem>>, vector<1x128xf32>,
    %284 = vector.extract_strided_slice %281 {offsets = [1, 0], sizes = [1, 128], strides = [1, 1]} : vector<2x128xf32> to vector<1x128xf32>
    %c9 = arith.constant 9 : index
    %c0_166 = arith.constant 0 : index
    %285 = vector.load %arg11[%c9, %c0_166] : memref<16x128xf32, #tpu.memory_space<vmem>>, vector<1x128xf32>
    tpu.vector_store %arg11[%c9, %c0_166], %284 {strides = array<i32>} : memref<16x128xf32, #tpu.memory_space<vmem>>, vector<1x128xf32>,
    %c4_167 = arith.constant 4 : index
    %c0_168 = arith.constant 0 : index
    %286 = vector.load %arg10[%c4_167, %c0_168] : memref<16x384xf32, #tpu.memory_space<vmem>>, vector<2x384xf32>
    %cst_169 = arith.constant dense<0.000000e+00> : vector<2x384xf32>
    %287 = tpu.matmul %281, %215, %cst_169 {dimension_numbers = #tpu.dot_dimension_numbers<[1], [0], [0], [1], [0, 0, 1, 1], [], []>} : vector<2x128xf32>, vector<128x384xf32>, vector<2x384xf32> -> vector<2x384xf32>
    %288 = arith.addf %287, %218 : vector<2x384xf32>
    %289 = vector.extract_strided_slice %286 {offsets = [0, 0], sizes = [2, 128], strides = [1, 1]} : vector<2x384xf32> to vector<2x128xf32>
    %290 = vector.extract_strided_slice %288 {offsets = [0, 0], sizes = [2, 128], strides = [1, 1]} : vector<2x384xf32> to vector<2x128xf32>
    %291 = arith.addf %289, %290 : vector<2x128xf32>
    %292 = arith.negf %291 : vector<2x128xf32>
    %293 = math.exp %292 : vector<2x128xf32>
    %cst_170 = arith.constant 1.000000e+00 : f32
    %294 = vector.broadcast %cst_170 : f32 to vector<2x128xf32>
    %295 = arith.addf %294, %293 : vector<2x128xf32>
    %296 = arith.divf %294, %295 : vector<2x128xf32>
    %297 = vector.extract_strided_slice %286 {offsets = [0, 128], sizes = [2, 128], strides = [1, 1]} : vector<2x384xf32> to vector<2x128xf32>
    %298 = vector.extract_strided_slice %288 {offsets = [0, 128], sizes = [2, 128], strides = [1, 1]} : vector<2x384xf32> to vector<2x128xf32>
    %299 = arith.addf %297, %298 : vector<2x128xf32>
    %300 = arith.negf %299 : vector<2x128xf32>
    %301 = math.exp %300 : vector<2x128xf32>
    %cst_171 = arith.constant 1.000000e+00 : f32
    %302 = vector.broadcast %cst_171 : f32 to vector<2x128xf32>
    %303 = arith.addf %302, %301 : vector<2x128xf32>
    %304 = arith.divf %302, %303 : vector<2x128xf32>
    %305 = vector.extract_strided_slice %286 {offsets = [0, 256], sizes = [2, 128], strides = [1, 1]} : vector<2x384xf32> to vector<2x128xf32>
    %306 = vector.extract_strided_slice %288 {offsets = [0, 256], sizes = [2, 128], strides = [1, 1]} : vector<2x384xf32> to vector<2x128xf32>
    %307 = arith.mulf %296, %306 : vector<2x128xf32>
    %308 = arith.addf %305, %307 : vector<2x128xf32>
    %309 = math.tanh %308 : vector<2x128xf32>
    %cst_172 = arith.constant 1.000000e+00 : f32
    %310 = vector.broadcast %cst_172 : f32 to vector<2x128xf32>
    %311 = arith.subf %310, %304 : vector<2x128xf32>
    %312 = arith.mulf %311, %309 : vector<2x128xf32>
    %313 = arith.mulf %304, %281 : vector<2x128xf32>
    %314 = arith.addf %312, %313 : vector<2x128xf32>
    %315 = vector.extract_strided_slice %314 {offsets = [0, 0], sizes = [1, 128], strides = [1, 1]} : vector<2x128xf32> to vector<1x128xf32>
    %c2_173 = arith.constant 2 : index
    %c0_174 = arith.constant 0 : index
    %316 = vector.load %arg11[%c2_173, %c0_174] : memref<16x128xf32, #tpu.memory_space<vmem>>, vector<1x128xf32>
    tpu.vector_store %arg11[%c2_173, %c0_174], %315 {strides = array<i32>} : memref<16x128xf32, #tpu.memory_space<vmem>>, vector<1x128xf32>,
    %317 = vector.extract_strided_slice %314 {offsets = [1, 0], sizes = [1, 128], strides = [1, 1]} : vector<2x128xf32> to vector<1x128xf32>
    %c10 = arith.constant 10 : index
    %c0_175 = arith.constant 0 : index
    %318 = vector.load %arg11[%c10, %c0_175] : memref<16x128xf32, #tpu.memory_space<vmem>>, vector<1x128xf32>
    tpu.vector_store %arg11[%c10, %c0_175], %317 {strides = array<i32>} : memref<16x128xf32, #tpu.memory_space<vmem>>, vector<1x128xf32>,
    %c6_176 = arith.constant 6 : index
    %c0_177 = arith.constant 0 : index
    %319 = vector.load %arg10[%c6_176, %c0_177] : memref<16x384xf32, #tpu.memory_space<vmem>>, vector<2x384xf32>
    %cst_178 = arith.constant dense<0.000000e+00> : vector<2x384xf32>
    %320 = tpu.matmul %314, %215, %cst_178 {dimension_numbers = #tpu.dot_dimension_numbers<[1], [0], [0], [1], [0, 0, 1, 1], [], []>} : vector<2x128xf32>, vector<128x384xf32>, vector<2x384xf32> -> vector<2x384xf32>
    %321 = arith.addf %320, %218 : vector<2x384xf32>
    %322 = vector.extract_strided_slice %319 {offsets = [0, 0], sizes = [2, 128], strides = [1, 1]} : vector<2x384xf32> to vector<2x128xf32>
    %323 = vector.extract_strided_slice %321 {offsets = [0, 0], sizes = [2, 128], strides = [1, 1]} : vector<2x384xf32> to vector<2x128xf32>
    %324 = arith.addf %322, %323 : vector<2x128xf32>
    %325 = arith.negf %324 : vector<2x128xf32>
    %326 = math.exp %325 : vector<2x128xf32>
    %cst_179 = arith.constant 1.000000e+00 : f32
    %327 = vector.broadcast %cst_179 : f32 to vector<2x128xf32>
    %328 = arith.addf %327, %326 : vector<2x128xf32>
    %329 = arith.divf %327, %328 : vector<2x128xf32>
    %330 = vector.extract_strided_slice %319 {offsets = [0, 128], sizes = [2, 128], strides = [1, 1]} : vector<2x384xf32> to vector<2x128xf32>
    %331 = vector.extract_strided_slice %321 {offsets = [0, 128], sizes = [2, 128], strides = [1, 1]} : vector<2x384xf32> to vector<2x128xf32>
    %332 = arith.addf %330, %331 : vector<2x128xf32>
    %333 = arith.negf %332 : vector<2x128xf32>
    %334 = math.exp %333 : vector<2x128xf32>
    %cst_180 = arith.constant 1.000000e+00 : f32
    %335 = vector.broadcast %cst_180 : f32 to vector<2x128xf32>
    %336 = arith.addf %335, %334 : vector<2x128xf32>
    %337 = arith.divf %335, %336 : vector<2x128xf32>
    %338 = vector.extract_strided_slice %319 {offsets = [0, 256], sizes = [2, 128], strides = [1, 1]} : vector<2x384xf32> to vector<2x128xf32>
    %339 = vector.extract_strided_slice %321 {offsets = [0, 256], sizes = [2, 128], strides = [1, 1]} : vector<2x384xf32> to vector<2x128xf32>
    %340 = arith.mulf %329, %339 : vector<2x128xf32>
    %341 = arith.addf %338, %340 : vector<2x128xf32>
    %342 = math.tanh %341 : vector<2x128xf32>
    %cst_181 = arith.constant 1.000000e+00 : f32
    %343 = vector.broadcast %cst_181 : f32 to vector<2x128xf32>
    %344 = arith.subf %343, %337 : vector<2x128xf32>
    %345 = arith.mulf %344, %342 : vector<2x128xf32>
    %346 = arith.mulf %337, %314 : vector<2x128xf32>
    %347 = arith.addf %345, %346 : vector<2x128xf32>
    %348 = vector.extract_strided_slice %347 {offsets = [0, 0], sizes = [1, 128], strides = [1, 1]} : vector<2x128xf32> to vector<1x128xf32>
    %c3_182 = arith.constant 3 : index
    %c0_183 = arith.constant 0 : index
    %349 = vector.load %arg11[%c3_182, %c0_183] : memref<16x128xf32, #tpu.memory_space<vmem>>, vector<1x128xf32>
    tpu.vector_store %arg11[%c3_182, %c0_183], %348 {strides = array<i32>} : memref<16x128xf32, #tpu.memory_space<vmem>>, vector<1x128xf32>,
    %350 = vector.extract_strided_slice %347 {offsets = [1, 0], sizes = [1, 128], strides = [1, 1]} : vector<2x128xf32> to vector<1x128xf32>
    %c11 = arith.constant 11 : index
    %c0_184 = arith.constant 0 : index
    %351 = vector.load %arg11[%c11, %c0_184] : memref<16x128xf32, #tpu.memory_space<vmem>>, vector<1x128xf32>
    tpu.vector_store %arg11[%c11, %c0_184], %350 {strides = array<i32>} : memref<16x128xf32, #tpu.memory_space<vmem>>, vector<1x128xf32>,
    %c8_185 = arith.constant 8 : index
    %c0_186 = arith.constant 0 : index
    %352 = vector.load %arg10[%c8_185, %c0_186] : memref<16x384xf32, #tpu.memory_space<vmem>>, vector<2x384xf32>
    %cst_187 = arith.constant dense<0.000000e+00> : vector<2x384xf32>
    %353 = tpu.matmul %347, %215, %cst_187 {dimension_numbers = #tpu.dot_dimension_numbers<[1], [0], [0], [1], [0, 0, 1, 1], [], []>} : vector<2x128xf32>, vector<128x384xf32>, vector<2x384xf32> -> vector<2x384xf32>
    %354 = arith.addf %353, %218 : vector<2x384xf32>
    %355 = vector.extract_strided_slice %352 {offsets = [0, 0], sizes = [2, 128], strides = [1, 1]} : vector<2x384xf32> to vector<2x128xf32>
    %356 = vector.extract_strided_slice %354 {offsets = [0, 0], sizes = [2, 128], strides = [1, 1]} : vector<2x384xf32> to vector<2x128xf32>
    %357 = arith.addf %355, %356 : vector<2x128xf32>
    %358 = arith.negf %357 : vector<2x128xf32>
    %359 = math.exp %358 : vector<2x128xf32>
    %cst_188 = arith.constant 1.000000e+00 : f32
    %360 = vector.broadcast %cst_188 : f32 to vector<2x128xf32>
    %361 = arith.addf %360, %359 : vector<2x128xf32>
    %362 = arith.divf %360, %361 : vector<2x128xf32>
    %363 = vector.extract_strided_slice %352 {offsets = [0, 128], sizes = [2, 128], strides = [1, 1]} : vector<2x384xf32> to vector<2x128xf32>
    %364 = vector.extract_strided_slice %354 {offsets = [0, 128], sizes = [2, 128], strides = [1, 1]} : vector<2x384xf32> to vector<2x128xf32>
    %365 = arith.addf %363, %364 : vector<2x128xf32>
    %366 = arith.negf %365 : vector<2x128xf32>
    %367 = math.exp %366 : vector<2x128xf32>
    %cst_189 = arith.constant 1.000000e+00 : f32
    %368 = vector.broadcast %cst_189 : f32 to vector<2x128xf32>
    %369 = arith.addf %368, %367 : vector<2x128xf32>
    %370 = arith.divf %368, %369 : vector<2x128xf32>
    %371 = vector.extract_strided_slice %352 {offsets = [0, 256], sizes = [2, 128], strides = [1, 1]} : vector<2x384xf32> to vector<2x128xf32>
    %372 = vector.extract_strided_slice %354 {offsets = [0, 256], sizes = [2, 128], strides = [1, 1]} : vector<2x384xf32> to vector<2x128xf32>
    %373 = arith.mulf %362, %372 : vector<2x128xf32>
    %374 = arith.addf %371, %373 : vector<2x128xf32>
    %375 = math.tanh %374 : vector<2x128xf32>
    %cst_190 = arith.constant 1.000000e+00 : f32
    %376 = vector.broadcast %cst_190 : f32 to vector<2x128xf32>
    %377 = arith.subf %376, %370 : vector<2x128xf32>
    %378 = arith.mulf %377, %375 : vector<2x128xf32>
    %379 = arith.mulf %370, %347 : vector<2x128xf32>
    %380 = arith.addf %378, %379 : vector<2x128xf32>
    %381 = vector.extract_strided_slice %380 {offsets = [0, 0], sizes = [1, 128], strides = [1, 1]} : vector<2x128xf32> to vector<1x128xf32>
    %c4_191 = arith.constant 4 : index
    %c0_192 = arith.constant 0 : index
    %382 = vector.load %arg11[%c4_191, %c0_192] : memref<16x128xf32, #tpu.memory_space<vmem>>, vector<1x128xf32>
    tpu.vector_store %arg11[%c4_191, %c0_192], %381 {strides = array<i32>} : memref<16x128xf32, #tpu.memory_space<vmem>>, vector<1x128xf32>,
    %383 = vector.extract_strided_slice %380 {offsets = [1, 0], sizes = [1, 128], strides = [1, 1]} : vector<2x128xf32> to vector<1x128xf32>
    %c12 = arith.constant 12 : index
    %c0_193 = arith.constant 0 : index
    %384 = vector.load %arg11[%c12, %c0_193] : memref<16x128xf32, #tpu.memory_space<vmem>>, vector<1x128xf32>
    tpu.vector_store %arg11[%c12, %c0_193], %383 {strides = array<i32>} : memref<16x128xf32, #tpu.memory_space<vmem>>, vector<1x128xf32>,
    %c10_194 = arith.constant 10 : index
    %c0_195 = arith.constant 0 : index
    %385 = vector.load %arg10[%c10_194, %c0_195] : memref<16x384xf32, #tpu.memory_space<vmem>>, vector<2x384xf32>
    %cst_196 = arith.constant dense<0.000000e+00> : vector<2x384xf32>
    %386 = tpu.matmul %380, %215, %cst_196 {dimension_numbers = #tpu.dot_dimension_numbers<[1], [0], [0], [1], [0, 0, 1, 1], [], []>} : vector<2x128xf32>, vector<128x384xf32>, vector<2x384xf32> -> vector<2x384xf32>
    %387 = arith.addf %386, %218 : vector<2x384xf32>
    %388 = vector.extract_strided_slice %385 {offsets = [0, 0], sizes = [2, 128], strides = [1, 1]} : vector<2x384xf32> to vector<2x128xf32>
    %389 = vector.extract_strided_slice %387 {offsets = [0, 0], sizes = [2, 128], strides = [1, 1]} : vector<2x384xf32> to vector<2x128xf32>
    %390 = arith.addf %388, %389 : vector<2x128xf32>
    %391 = arith.negf %390 : vector<2x128xf32>
    %392 = math.exp %391 : vector<2x128xf32>
    %cst_197 = arith.constant 1.000000e+00 : f32
    %393 = vector.broadcast %cst_197 : f32 to vector<2x128xf32>
    %394 = arith.addf %393, %392 : vector<2x128xf32>
    %395 = arith.divf %393, %394 : vector<2x128xf32>
    %396 = vector.extract_strided_slice %385 {offsets = [0, 128], sizes = [2, 128], strides = [1, 1]} : vector<2x384xf32> to vector<2x128xf32>
    %397 = vector.extract_strided_slice %387 {offsets = [0, 128], sizes = [2, 128], strides = [1, 1]} : vector<2x384xf32> to vector<2x128xf32>
    %398 = arith.addf %396, %397 : vector<2x128xf32>
    %399 = arith.negf %398 : vector<2x128xf32>
    %400 = math.exp %399 : vector<2x128xf32>
    %cst_198 = arith.constant 1.000000e+00 : f32
    %401 = vector.broadcast %cst_198 : f32 to vector<2x128xf32>
    %402 = arith.addf %401, %400 : vector<2x128xf32>
    %403 = arith.divf %401, %402 : vector<2x128xf32>
    %404 = vector.extract_strided_slice %385 {offsets = [0, 256], sizes = [2, 128], strides = [1, 1]} : vector<2x384xf32> to vector<2x128xf32>
    %405 = vector.extract_strided_slice %387 {offsets = [0, 256], sizes = [2, 128], strides = [1, 1]} : vector<2x384xf32> to vector<2x128xf32>
    %406 = arith.mulf %395, %405 : vector<2x128xf32>
    %407 = arith.addf %404, %406 : vector<2x128xf32>
    %408 = math.tanh %407 : vector<2x128xf32>
    %cst_199 = arith.constant 1.000000e+00 : f32
    %409 = vector.broadcast %cst_199 : f32 to vector<2x128xf32>
    %410 = arith.subf %409, %403 : vector<2x128xf32>
    %411 = arith.mulf %410, %408 : vector<2x128xf32>
    %412 = arith.mulf %403, %380 : vector<2x128xf32>
    %413 = arith.addf %411, %412 : vector<2x128xf32>
    %414 = vector.extract_strided_slice %413 {offsets = [0, 0], sizes = [1, 128], strides = [1, 1]} : vector<2x128xf32> to vector<1x128xf32>
    %c5_200 = arith.constant 5 : index
    %c0_201 = arith.constant 0 : index
    %415 = vector.load %arg11[%c5_200, %c0_201] : memref<16x128xf32, #tpu.memory_space<vmem>>, vector<1x128xf32>
    tpu.vector_store %arg11[%c5_200, %c0_201], %414 {strides = array<i32>} : memref<16x128xf32, #tpu.memory_space<vmem>>, vector<1x128xf32>,
    %416 = vector.extract_strided_slice %413 {offsets = [1, 0], sizes = [1, 128], strides = [1, 1]} : vector<2x128xf32> to vector<1x128xf32>
    %c13 = arith.constant 13 : index
    %c0_202 = arith.constant 0 : index
    %417 = vector.load %arg11[%c13, %c0_202] : memref<16x128xf32, #tpu.memory_space<vmem>>, vector<1x128xf32>
    tpu.vector_store %arg11[%c13, %c0_202], %416 {strides = array<i32>} : memref<16x128xf32, #tpu.memory_space<vmem>>, vector<1x128xf32>,
    %c12_203 = arith.constant 12 : index
    %c0_204 = arith.constant 0 : index
    %418 = vector.load %arg10[%c12_203, %c0_204] : memref<16x384xf32, #tpu.memory_space<vmem>>, vector<2x384xf32>
    %cst_205 = arith.constant dense<0.000000e+00> : vector<2x384xf32>
    %419 = tpu.matmul %413, %215, %cst_205 {dimension_numbers = #tpu.dot_dimension_numbers<[1], [0], [0], [1], [0, 0, 1, 1], [], []>} : vector<2x128xf32>, vector<128x384xf32>, vector<2x384xf32> -> vector<2x384xf32>
    %420 = arith.addf %419, %218 : vector<2x384xf32>
    %421 = vector.extract_strided_slice %418 {offsets = [0, 0], sizes = [2, 128], strides = [1, 1]} : vector<2x384xf32> to vector<2x128xf32>
    %422 = vector.extract_strided_slice %420 {offsets = [0, 0], sizes = [2, 128], strides = [1, 1]} : vector<2x384xf32> to vector<2x128xf32>
    %423 = arith.addf %421, %422 : vector<2x128xf32>
    %424 = arith.negf %423 : vector<2x128xf32>
    %425 = math.exp %424 : vector<2x128xf32>
    %cst_206 = arith.constant 1.000000e+00 : f32
    %426 = vector.broadcast %cst_206 : f32 to vector<2x128xf32>
    %427 = arith.addf %426, %425 : vector<2x128xf32>
    %428 = arith.divf %426, %427 : vector<2x128xf32>
    %429 = vector.extract_strided_slice %418 {offsets = [0, 128], sizes = [2, 128], strides = [1, 1]} : vector<2x384xf32> to vector<2x128xf32>
    %430 = vector.extract_strided_slice %420 {offsets = [0, 128], sizes = [2, 128], strides = [1, 1]} : vector<2x384xf32> to vector<2x128xf32>
    %431 = arith.addf %429, %430 : vector<2x128xf32>
    %432 = arith.negf %431 : vector<2x128xf32>
    %433 = math.exp %432 : vector<2x128xf32>
    %cst_207 = arith.constant 1.000000e+00 : f32
    %434 = vector.broadcast %cst_207 : f32 to vector<2x128xf32>
    %435 = arith.addf %434, %433 : vector<2x128xf32>
    %436 = arith.divf %434, %435 : vector<2x128xf32>
    %437 = vector.extract_strided_slice %418 {offsets = [0, 256], sizes = [2, 128], strides = [1, 1]} : vector<2x384xf32> to vector<2x128xf32>
    %438 = vector.extract_strided_slice %420 {offsets = [0, 256], sizes = [2, 128], strides = [1, 1]} : vector<2x384xf32> to vector<2x128xf32>
    %439 = arith.mulf %428, %438 : vector<2x128xf32>
    %440 = arith.addf %437, %439 : vector<2x128xf32>
    %441 = math.tanh %440 : vector<2x128xf32>
    %cst_208 = arith.constant 1.000000e+00 : f32
    %442 = vector.broadcast %cst_208 : f32 to vector<2x128xf32>
    %443 = arith.subf %442, %436 : vector<2x128xf32>
    %444 = arith.mulf %443, %441 : vector<2x128xf32>
    %445 = arith.mulf %436, %413 : vector<2x128xf32>
    %446 = arith.addf %444, %445 : vector<2x128xf32>
    %447 = vector.extract_strided_slice %446 {offsets = [0, 0], sizes = [1, 128], strides = [1, 1]} : vector<2x128xf32> to vector<1x128xf32>
    %c6_209 = arith.constant 6 : index
    %c0_210 = arith.constant 0 : index
    %448 = vector.load %arg11[%c6_209, %c0_210] : memref<16x128xf32, #tpu.memory_space<vmem>>, vector<1x128xf32>
    tpu.vector_store %arg11[%c6_209, %c0_210], %447 {strides = array<i32>} : memref<16x128xf32, #tpu.memory_space<vmem>>, vector<1x128xf32>,
    %449 = vector.extract_strided_slice %446 {offsets = [1, 0], sizes = [1, 128], strides = [1, 1]} : vector<2x128xf32> to vector<1x128xf32>
    %c14 = arith.constant 14 : index
    %c0_211 = arith.constant 0 : index
    %450 = vector.load %arg11[%c14, %c0_211] : memref<16x128xf32, #tpu.memory_space<vmem>>, vector<1x128xf32>
    tpu.vector_store %arg11[%c14, %c0_211], %449 {strides = array<i32>} : memref<16x128xf32, #tpu.memory_space<vmem>>, vector<1x128xf32>,
    %c14_212 = arith.constant 14 : index
    %c0_213 = arith.constant 0 : index
    %451 = vector.load %arg10[%c14_212, %c0_213] : memref<16x384xf32, #tpu.memory_space<vmem>>, vector<2x384xf32>
    %cst_214 = arith.constant dense<0.000000e+00> : vector<2x384xf32>
    %452 = tpu.matmul %446, %215, %cst_214 {dimension_numbers = #tpu.dot_dimension_numbers<[1], [0], [0], [1], [0, 0, 1, 1], [], []>} : vector<2x128xf32>, vector<128x384xf32>, vector<2x384xf32> -> vector<2x384xf32>
    %453 = arith.addf %452, %218 : vector<2x384xf32>
    %454 = vector.extract_strided_slice %451 {offsets = [0, 0], sizes = [2, 128], strides = [1, 1]} : vector<2x384xf32> to vector<2x128xf32>
    %455 = vector.extract_strided_slice %453 {offsets = [0, 0], sizes = [2, 128], strides = [1, 1]} : vector<2x384xf32> to vector<2x128xf32>
    %456 = arith.addf %454, %455 : vector<2x128xf32>
    %457 = arith.negf %456 : vector<2x128xf32>
    %458 = math.exp %457 : vector<2x128xf32>
    %cst_215 = arith.constant 1.000000e+00 : f32
    %459 = vector.broadcast %cst_215 : f32 to vector<2x128xf32>
    %460 = arith.addf %459, %458 : vector<2x128xf32>
    %461 = arith.divf %459, %460 : vector<2x128xf32>
    %462 = vector.extract_strided_slice %451 {offsets = [0, 128], sizes = [2, 128], strides = [1, 1]} : vector<2x384xf32> to vector<2x128xf32>
    %463 = vector.extract_strided_slice %453 {offsets = [0, 128], sizes = [2, 128], strides = [1, 1]} : vector<2x384xf32> to vector<2x128xf32>
    %464 = arith.addf %462, %463 : vector<2x128xf32>
    %465 = arith.negf %464 : vector<2x128xf32>
    %466 = math.exp %465 : vector<2x128xf32>
    %cst_216 = arith.constant 1.000000e+00 : f32
    %467 = vector.broadcast %cst_216 : f32 to vector<2x128xf32>
    %468 = arith.addf %467, %466 : vector<2x128xf32>
    %469 = arith.divf %467, %468 : vector<2x128xf32>
    %470 = vector.extract_strided_slice %451 {offsets = [0, 256], sizes = [2, 128], strides = [1, 1]} : vector<2x384xf32> to vector<2x128xf32>
    %471 = vector.extract_strided_slice %453 {offsets = [0, 256], sizes = [2, 128], strides = [1, 1]} : vector<2x384xf32> to vector<2x128xf32>
    %472 = arith.mulf %461, %471 : vector<2x128xf32>
    %473 = arith.addf %470, %472 : vector<2x128xf32>
    %474 = math.tanh %473 : vector<2x128xf32>
    %cst_217 = arith.constant 1.000000e+00 : f32
    %475 = vector.broadcast %cst_217 : f32 to vector<2x128xf32>
    %476 = arith.subf %475, %469 : vector<2x128xf32>
    %477 = arith.mulf %476, %474 : vector<2x128xf32>
    %478 = arith.mulf %469, %446 : vector<2x128xf32>
    %479 = arith.addf %477, %478 : vector<2x128xf32>
    %480 = vector.extract_strided_slice %479 {offsets = [0, 0], sizes = [1, 128], strides = [1, 1]} : vector<2x128xf32> to vector<1x128xf32>
    %c7_218 = arith.constant 7 : index
    %c0_219 = arith.constant 0 : index
    %481 = vector.load %arg11[%c7_218, %c0_219] : memref<16x128xf32, #tpu.memory_space<vmem>>, vector<1x128xf32>
    tpu.vector_store %arg11[%c7_218, %c0_219], %480 {strides = array<i32>} : memref<16x128xf32, #tpu.memory_space<vmem>>, vector<1x128xf32>,
    %482 = vector.extract_strided_slice %479 {offsets = [1, 0], sizes = [1, 128], strides = [1, 1]} : vector<2x128xf32> to vector<1x128xf32>
    %c15 = arith.constant 15 : index
    %c0_220 = arith.constant 0 : index
    %483 = vector.load %arg11[%c15, %c0_220] : memref<16x128xf32, #tpu.memory_space<vmem>>, vector<1x128xf32>
    tpu.vector_store %arg11[%c15, %c0_220], %482 {strides = array<i32>} : memref<16x128xf32, #tpu.memory_space<vmem>>, vector<1x128xf32>,
    %c0_221 = arith.constant 0 : index
    %c0_222 = arith.constant 0 : index
    %484 = vector.load %arg11[%c0_221, %c0_222] : memref<16x128xf32, #tpu.memory_space<vmem>>, vector<16x128xf32>
    %c0_223 = arith.constant 0 : index
    %c0_224 = arith.constant 0 : index
    %485 = vector.load %arg6[%c0_223, %c0_224] : memref<128x2048xf32, #tpu.memory_space<vmem>>, vector<128x2048xf32>
    %cst_225 = arith.constant dense<0.000000e+00> : vector<16x2048xf32>
    %486 = tpu.matmul %484, %485, %cst_225 {dimension_numbers = #tpu.dot_dimension_numbers<[1], [0], [0], [1], [0, 0, 1, 1], [], []>} : vector<16x128xf32>, vector<128x2048xf32>, vector<16x2048xf32> -> vector<16x2048xf32>
    %c0_226 = arith.constant 0 : index
    %c0_227 = arith.constant 0 : index
    %487 = vector.load %arg7[%c0_226, %c0_227] : memref<1x2048xf32, #tpu.memory_space<vmem>>, vector<1x2048xf32>
    %488 = vector.broadcast %487 : vector<1x2048xf32> to vector<16x2048xf32>
    %489 = arith.addf %486, %488 : vector<16x2048xf32>
    %490 = tpu.iota {dimensions = array<i32: 1>} : vector<16x2048xi32>
    %c2000_i32 = arith.constant 2000 : i32
    %491 = vector.broadcast %c2000_i32 : i32 to vector<16x2048xi32>
    %492 = arith.cmpi slt, %490, %491 : vector<16x2048xi32>
    %cst_228 = arith.constant -1.000000e+30 : f32
    %493 = vector.broadcast %cst_228 : f32 to vector<16x2048xf32>
    %494 = arith.select %492, %489, %493 : vector<16x2048xi1>, vector<16x2048xf32>
    %cst_229 = arith.constant dense<0xFF800000> : vector<16xf32>
    %495 = vector.multi_reduction <maximumf>, %494, %cst_229 [1] : vector<16x2048xf32> to vector<16xf32>
    %496 = vector.shape_cast %495 : vector<16xf32> to vector<16x1xf32>
    %497 = vector.broadcast %496 : vector<16x1xf32> to vector<16x2048xf32>
    %498 = arith.subf %494, %497 : vector<16x2048xf32>
    %499 = math.exp %498 : vector<16x2048xf32>
    %cst_230 = arith.constant dense<0.000000e+00> : vector<16xf32>
    %500 = vector.multi_reduction <add>, %499, %cst_230 [1] : vector<16x2048xf32> to vector<16xf32>
    %501 = vector.shape_cast %500 : vector<16xf32> to vector<16x1xf32>
    %502 = math.log %501 : vector<16x1xf32>
    %503 = vector.broadcast %502 : vector<16x1xf32> to vector<16x2048xf32>
    %504 = arith.subf %498, %503 : vector<16x2048xf32>
    %505 = vector.extract_strided_slice %504 {offsets = [0, 0], sizes = [16, 2000], strides = [1, 1]} : vector<16x2048xf32> to vector<16x2000xf32>
    %c0_231 = arith.constant 0 : index
    %c0_232 = arith.constant 0 : index
    %506 = vector.load %arg8[%c0_231, %c0_232] : memref<16x2000xf32, #tpu.memory_space<vmem>>, vector<16x2000xf32>
    tpu.vector_store %arg8[%c0_231, %c0_232], %505 {strides = array<i32>} : memref<16x2000xf32, #tpu.memory_space<vmem>>, vector<16x2000xf32>,
    return
  }
}

</mosaic_0001>

<llo_original>
// kernel: gru_speech_forward.1
$region0: #{gru_speech_forward.1}
  #allocation0 [shape = 'u32[]', space=smem, size = 0x4, offset = 0x4, fixed_abs, tag = 'smem constant byte address 0x4 - core index']
  #allocation1 [shape = 'u32[144,128]{1,0:T(1,128)}', space=vmem, size = 0x12000, scoped, tag = 'internal scratch']
  #allocation2 [shape = 'f32[16,128]{1,0:T(8,128)}', space=vmem, size = 0x2000, scoped, tag = 'scratch operand']
  #allocation3 [shape = 'f32[16,384]{1,0:T(8,128)}', space=vmem, size = 0x6000, scoped, tag = 'scratch operand']
  #allocation4 [shape = 'f32[16,128]{1,0:T(8,128)}', space=vmem, size = 0x2000, scoped, tag = 'scratch operand']
  #allocation5 [shape = 's32[16]{0}', space=sflag, size = 0x40, scoped, tag = 'scratch operand']
  #allocation17 [shape = 's32[]', space=sflag, size = 0x4, offset = 0, fixed_abs, tag = 'sflag constant byte address 0x0 - dummy sync flag']
  #allocation18 [shape = 's32[]', space=sflag, size = 0x4, offset = 0, fixed_abs, tag = 'sflag constant byte address 0x0 - dummy sync flag']
  #allocation19 [shape = 'u32[]', space=smem, size = 0x4, offset = 0x44, fixed_abs, tag = 'smem constant byte address 0x44 - assertion arg 0']
  #allocation20 [shape = 'u32[]', space=smem, size = 0x4, offset = 0x48, fixed_abs, tag = 'smem constant byte address 0x48 - assertion arg 1']
  #allocation21 [shape = 's32[]', space=sflag, size = 0x4, offset = 0, fixed_abs, tag = 'sflag constant byte address 0x0 - dummy sync flag']
  #allocation22 [shape = 's32[]', space=sflag, size = 0x4, offset = 0, fixed_abs, tag = 'sflag constant byte address 0x0 - dummy sync flag']
  #allocation23 [shape = 's32[]', space=sflag, size = 0x4, offset = 0, fixed_abs, tag = 'sflag constant byte address 0x0 - dummy sync flag']
  #allocation24 [shape = 's32[]', space=sflag, size = 0x4, offset = 0, fixed_abs, tag = 'sflag constant byte address 0x0 - dummy sync flag']
  #allocation25 [shape = 's32[]', space=sflag, size = 0x4, offset = 0, fixed_abs, tag = 'sflag constant byte address 0x0 - dummy sync flag']
  #allocation26 [shape = 's32[]', space=sflag, size = 0x4, offset = 0, fixed_abs, tag = 'sflag constant byte address 0x0 - dummy sync flag']
  #allocation27 [shape = 's32[]', space=sflag, size = 0x4, offset = 0, fixed_abs, tag = 'sflag constant byte address 0x0 - dummy sync flag']
  #allocation28 [shape = 's32[]', space=sflag, size = 0x4, offset = 0, fixed_abs, tag = 'sflag constant byte address 0x0 - dummy sync flag']
  #allocation29 [shape = 's32[]', space=sflag, size = 0x4, offset = 0, fixed_abs, tag = 'sflag constant byte address 0x0 - dummy sync flag']
  #allocation30 [shape = 's32[]', space=sflag, size = 0x4, offset = 0, fixed_abs, tag = 'sflag constant byte address 0x0 - dummy sync flag']
  #allocation31 [shape = 's32[]', space=sflag, size = 0x4, offset = 0, fixed_abs, tag = 'sflag constant byte address 0x0 - dummy sync flag']
  #allocation32 [shape = 's32[]', space=sflag, size = 0x4, offset = 0, fixed_abs, tag = 'sflag constant byte address 0x0 - dummy sync flag']
  #allocation33 [shape = 's32[]', space=sflag, size = 0x4, offset = 0, fixed_abs, tag = 'sflag constant byte address 0x0 - dummy sync flag']
  #allocation34 [shape = 's32[]', space=sflag, size = 0x4, offset = 0, fixed_abs, tag = 'sflag constant byte address 0x0 - dummy sync flag']
  #allocation35 [shape = 's32[]', space=sflag, size = 0x4, offset = 0, fixed_abs, tag = 'sflag constant byte address 0x0 - dummy sync flag']
  #allocation36 [shape = 's32[]', space=sflag, size = 0x4, offset = 0, fixed_abs, tag = 'sflag constant byte address 0x0 - dummy sync flag']
  #allocation37 [shape = 's32[]', space=sflag, size = 0x4, offset = 0, fixed_abs, tag = 'sflag constant byte address 0x0 - dummy sync flag']
  #allocation38 [shape = 's32[]', space=sflag, size = 0x4, offset = 0, fixed_abs, tag = 'sflag constant byte address 0x0 - dummy sync flag']
  #allocation39 [shape = 's32[]', space=sflag, size = 0x4, offset = 0, fixed_abs, tag = 'sflag constant byte address 0x0 - dummy sync flag']
  #allocation40 [shape = 's32[]', space=sflag, size = 0x4, offset = 0, fixed_abs, tag = 'sflag constant byte address 0x0 - dummy sync flag']
  #allocation41 [shape = 's32[]', space=sflag, size = 0x4, offset = 0, fixed_abs, tag = 'sflag constant byte address 0x0 - dummy sync flag']
  #allocation42 [shape = 's32[]', space=sflag, size = 0x4, offset = 0, fixed_abs, tag = 'sflag constant byte address 0x0 - dummy sync flag']
  #allocation43 [shape = 's32[]', space=sflag, size = 0x4, offset = 0, fixed_abs, tag = 'sflag constant byte address 0x0 - dummy sync flag']
  #allocation44 [shape = 's32[]', space=sflag, size = 0x4, offset = 0, fixed_abs, tag = 'sflag constant byte address 0x0 - dummy sync flag']
  #allocation45 [shape = 's32[]', space=sflag, size = 0x4, offset = 0, fixed_abs, tag = 'sflag constant byte address 0x0 - dummy sync flag']
  #allocation46 [shape = 's32[]', space=sflag, size = 0x4, offset = 0, fixed_abs, tag = 'sflag constant byte address 0x0 - dummy sync flag']
  #allocation47 [shape = 's32[]', space=sflag, size = 0x4, offset = 0, fixed_abs, tag = 'sflag constant byte address 0x0 - dummy sync flag']
  #allocation48 [shape = 's32[]', space=sflag, size = 0x4, offset = 0, fixed_abs, tag = 'sflag constant byte address 0x0 - dummy sync flag']
  #allocation49 [shape = 's32[]', space=sflag, size = 0x4, offset = 0, fixed_abs, tag = 'sflag constant byte address 0x0 - dummy sync flag']
  #allocation50 [shape = 's32[]', space=sflag, size = 0x4, offset = 0, fixed_abs, tag = 'sflag constant byte address 0x0 - dummy sync flag']
  %s0 = inlined_call_operand.hbm [shape: s32[2,8], index: 0, kind: input, shape index: {}]
  %s1 = inlined_call_operand.hbm [shape: f32[2000,128], index: 1, kind: input, shape index: {}]
  %s2 = inlined_call_operand.hbm [shape: f32[128,384], index: 2, kind: input, shape index: {}]
  %s3 = inlined_call_operand.vmem [shape: f32[1,384], index: 3, kind: input, shape index: {}]
  %s4 = inlined_call_operand.hbm [shape: f32[128,384], index: 4, kind: input, shape index: {}]
  %s5 = inlined_call_operand.vmem [shape: f32[1,384], index: 5, kind: input, shape index: {}]
  %s6 = inlined_call_operand.hbm [shape: f32[128,2048], index: 6, kind: input, shape index: {}]
  %s7 = inlined_call_operand.hbm [shape: f32[1,2048], index: 7, kind: input, shape index: {}]
  %s8 = inlined_call_operand.hbm [shape: f32[16,2000], index: 8, kind: output, shape index: {}]
  %s9 = sld [smem:[#allocation0]]
  $region122: #{gru_speech_forward.1} parent=0
    _
  %s11 = ssub.s32 1, %s9
  %s12 = scalar_select 0, %s11, %s9
  $region1: #{gru_speech_forward.1} parent=0
    #allocation6 [shape = 'u8[1024]{0}', space=smem, size = 0x400, scoped, tag = 'input window, operand 0, single buffered']
    #allocation7 [shape = 's32[1]{0}', space=sflag, size = 0x4, scoped, tag = 'scoped memory for gru_speech_forward.1']
    #allocation8 [shape = 's32[1]{0}', space=sflag, size = 0x4, scoped, tag = 'scoped memory for gru_speech_forward.1']
    #allocation9 [shape = 's32[1]{0}', space=sflag, size = 0x4, scoped, tag = 'scoped memory for gru_speech_forward.1']
    #allocation10 [shape = 'u8[196608]{0}', space=vmem, size = 0x30000, scoped, tag = 'input window, operand 2, single buffered']
    #allocation11 [shape = 'u8[196608]{0}', space=vmem, size = 0x30000, scoped, tag = 'input window, operand 4, single buffered']
    #allocation12 [shape = 's32[1]{0}', space=sflag, size = 0x4, scoped, tag = 'scoped memory for gru_speech_forward.1']
    #allocation13 [shape = 'u8[1048576]{0}', space=vmem, size = 0x100000, scoped, tag = 'input window, operand 6, single buffered']
    #allocation14 [shape = 'u8[8192]{0}', space=vmem, size = 0x2000, scoped, tag = 'input window, operand 7, single buffered']
    #allocation15 [shape = 's32[1]{0}', space=sflag, size = 0x4, scoped, tag = 'scoped memory for gru_speech_forward.1']
    #allocation16 [shape = 'u8[131072]{0}', space=vmem, size = 0x20000, scoped, tag = 'output window, operand 0, single buffered']
    %13 = vsyncpa [#allocation9], 0
    %14 = vsyncpa [#allocation7], 0
    %15 = vsyncpa [#allocation12], 0
    %16 = vsyncpa [#allocation15], 0
    %17 = vsyncpa [#allocation8], 0
    // Predicated region
    $region2: #{gru_speech_forward.1} parent=1 // pred_check
      _
    $region3: #{gru_speech_forward.1} parent=1 // pred_check_branch
      %19 = sbr.rel (0) target = $region5
    $region4: #{gru_speech_forward.1} parent=1 // pred_region
      %s21 = ssub.s32 32, 32
      %22 = vsyncadd [#allocation9], %s21
      %25 = dma.hbm_to_smem %s0, 32, [#allocation6], [#allocation9]
    $region5: #{gru_speech_forward.1} parent=1 // pred_fallthru
      _
    // Predicated region
    $region6: #{gru_speech_forward.1} parent=1 // pred_check
      _
    $region7: #{gru_speech_forward.1} parent=1 // pred_check_branch
      %27 = sbr.rel (0) target = $region9
    $region8: #{gru_speech_forward.1} parent=1 // pred_region
      %s29 = ssub.s32 6144, 6144
      %30 = vsyncadd [#allocation7], %s29
      %s31 = sshll.u32 [#allocation10], 4
      %s32 = int_to_ptr.vmem [resolvable:$true] %s31
      %37 = dma.hbm_to_vmem [thread:$0]  %s2, 6144, %s32, [#allocation7], 384, 384, 24
    $region9: #{gru_speech_forward.1} parent=1 // pred_fallthru
      _
    // Predicated region
    $region10: #{gru_speech_forward.1} parent=1 // pred_check
      _
    $region11: #{gru_speech_forward.1} parent=1 // pred_check_branch
      %39 = sbr.rel (0) target = $region13
    $region12: #{gru_speech_forward.1} parent=1 // pred_region
      _
    $region13: #{gru_speech_forward.1} parent=1 // pred_fallthru
      _
    // Predicated region
    $region14: #{gru_speech_forward.1} parent=1 // pred_check
      _
    $region15: #{gru_speech_forward.1} parent=1 // pred_check_branch
      %41 = sbr.rel (0) target = $region17
    $region16: #{gru_speech_forward.1} parent=1 // pred_region
      %s43 = ssub.s32 6144, 6144
      %44 = vsyncadd [#allocation12], %s43
      %s45 = sshll.u32 [#allocation11], 4
      %s46 = int_to_ptr.vmem [resolvable:$true] %s45
      %51 = dma.hbm_to_vmem [thread:$0]  %s4, 6144, %s46, [#allocation12], 384, 384, 24
    $region17: #{gru_speech_forward.1} parent=1 // pred_fallthru
      _
    // Predicated region
    $region18: #{gru_speech_forward.1} parent=1 // pred_check
      _
    $region19: #{gru_speech_forward.1} parent=1 // pred_check_branch
      %53 = sbr.rel (0) target = $region21
    $region20: #{gru_speech_forward.1} parent=1 // pred_region
      _
    $region21: #{gru_speech_forward.1} parent=1 // pred_fallthru
      _
    // Predicated region
    $region22: #{gru_speech_forward.1} parent=1 // pred_check
      _
    $region23: #{gru_speech_forward.1} parent=1 // pred_check_branch
      %55 = sbr.rel (0) target = $region25
    $region24: #{gru_speech_forward.1} parent=1 // pred_region
      %s57 = ssub.s32 32768, 32768
      %58 = vsyncadd [#allocation12], %s57
      %s59 = sshll.u32 [#allocation13], 4
      %s60 = int_to_ptr.vmem [resolvable:$true] %s59
      %65 = dma.hbm_to_vmem [thread:$0]  %s6, 32768, %s60, [#allocation12], 2048, 2048, 128
    $region25: #{gru_speech_forward.1} parent=1 // pred_fallthru
      _
    // Predicated region
    $region26: #{gru_speech_forward.1} parent=1 // pred_check
      _
    $region27: #{gru_speech_forward.1} parent=1 // pred_check_branch
      %67 = sbr.rel (0) target = $region29
    $region28: #{gru_speech_forward.1} parent=1 // pred_region
      %s69 = ssub.s32 256, 256
      %70 = vsyncadd [#allocation15], %s69
      %s72 = sshll.u32 [#allocation14], 4
      %s73 = int_to_ptr.vmem [resolvable:$true] %s72
      %75 = dma.hbm_to_vmem [thread:$0]  %s7, 256, %s73, [#allocation15]
    $region29: #{gru_speech_forward.1} parent=1 // pred_fallthru
      _
    // Predicated region
    $region30: #{gru_speech_forward.1} parent=1 // pred_check
      _
    $region31: #{gru_speech_forward.1} parent=1 // pred_check_branch
      %77 = sbr.rel (0) target = $region33
    $region32: #{gru_speech_forward.1} parent=1 // pred_region
      %78 = dma.done [#allocation9], 32
    $region33: #{gru_speech_forward.1} parent=1 // pred_fallthru
      _
    // Predicated region
    $region34: #{gru_speech_forward.1} parent=1 // pred_check
      _
    $region35: #{gru_speech_forward.1} parent=1 // pred_check_branch
      %80 = sbr.rel (0) target = $region37
    $region36: #{gru_speech_forward.1} parent=1 // pred_region
      %81 = dma.done [#allocation7], 6144
    $region37: #{gru_speech_forward.1} parent=1 // pred_fallthru
      _
    // Predicated region
    $region38: #{gru_speech_forward.1} parent=1 // pred_check
      _
    $region39: #{gru_speech_forward.1} parent=1 // pred_check_branch
      %83 = sbr.rel (0) target = $region41
    $region40: #{gru_speech_forward.1} parent=1 // pred_region
      %84 = dma.done [#allocation12], 6144
    $region41: #{gru_speech_forward.1} parent=1 // pred_fallthru
      _
    // Predicated region
    $region42: #{gru_speech_forward.1} parent=1 // pred_check
      _
    $region43: #{gru_speech_forward.1} parent=1 // pred_check_branch
      %86 = sbr.rel (0) target = $region45
    $region44: #{gru_speech_forward.1} parent=1 // pred_region
      %87 = dma.done [#allocation12], 32768
    $region45: #{gru_speech_forward.1} parent=1 // pred_fallthru
      _
    // Predicated region
    $region46: #{gru_speech_forward.1} parent=1 // pred_check
      _
    $region47: #{gru_speech_forward.1} parent=1 // pred_check_branch
      %89 = sbr.rel (0) target = $region49
    $region48: #{gru_speech_forward.1} parent=1 // pred_region
      %90 = dma.done [#allocation15], 256
    $region49: #{gru_speech_forward.1} parent=1 // pred_fallthru
      _
    %91 = sfence
    %s92 = sld [smem:[#allocation6]]
    %s93 = smul.addr %s92, 16
    %s94 = scalar_lea.hbm %s1, %s93
    // Predicated region
    $region50: #{gru_speech_forward.1} parent=1 // pred_check
      _
    $region51: #{gru_speech_forward.1} parent=1 // pred_check_branch
      %96 = sbr.rel target = $region53
    $region52: #{gru_speech_forward.1} parent=1 // pred_region
      %97 = sst [smem:[#allocation19]] [#allocation18]
      %98 = sst [smem:[#allocation20]] [#allocation17]
    $region53: #{gru_speech_forward.1} parent=1 // pred_fallthru
      _
    %100 = shalt.err (0)
    %s102 = sshll.u32 [#allocation2], 4
    %s103 = int_to_ptr.vmem [resolvable:$true] %s102
    %105 = dma.hbm_to_vmem [thread:$0]  %s94, 16, %s103, [#allocation5]
    %s106 = sld [smem:[#allocation6 + $0x80]]
    %s107 = smul.addr %s106, 16
    %s108 = scalar_lea.hbm %s1, %s107
    %s109 = scalar_lea.vmem [#allocation2], 1
    %s110 = scalar_lea.sflag [#allocation5], 1
    // Predicated region
    $region54: #{gru_speech_forward.1} parent=1 // pred_check
      _
    $region55: #{gru_speech_forward.1} parent=1 // pred_check_branch
      %112 = sbr.rel target = $region57
    $region56: #{gru_speech_forward.1} parent=1 // pred_region
      %113 = sst [smem:[#allocation19]] [#allocation22]
      %114 = sst [smem:[#allocation20]] [#allocation21]
    $region57: #{gru_speech_forward.1} parent=1 // pred_fallthru
      _
    %116 = shalt.err (0)
    %s118 = sshll.u32 %s109, 4
    %s119 = int_to_ptr.vmem [resolvable:$true] %s118
    %121 = dma.hbm_to_vmem [thread:$0]  %s108, 16, %s119, %s110
    %s122 = sld [smem:[#allocation6 + $0x1]]
    %s123 = smul.addr %s122, 16
    %s124 = scalar_lea.hbm %s1, %s123
    %s125 = scalar_lea.vmem [#allocation2], 2
    %s126 = scalar_lea.sflag [#allocation5], 2
    // Predicated region
    $region58: #{gru_speech_forward.1} parent=1 // pred_check
      _
    $region59: #{gru_speech_forward.1} parent=1 // pred_check_branch
      %128 = sbr.rel target = $region61
    $region60: #{gru_speech_forward.1} parent=1 // pred_region
      %129 = sst [smem:[#allocation19]] [#allocation24]
      %130 = sst [smem:[#allocation20]] [#allocation23]
    $region61: #{gru_speech_forward.1} parent=1 // pred_fallthru
      _
    %132 = shalt.err (0)
    %s134 = sshll.u32 %s125, 4
    %s135 = int_to_ptr.vmem [resolvable:$true] %s134
    %137 = dma.hbm_to_vmem [thread:$0]  %s124, 16, %s135, %s126
    %s138 = sld [smem:[#allocation6 + $0x81]]
    %s139 = smul.addr %s138, 16
    %s140 = scalar_lea.hbm %s1, %s139
    %s141 = scalar_lea.vmem [#allocation2], 3
    %s142 = scalar_lea.sflag [#allocation5], 3
    // Predicated region
    $region62: #{gru_speech_forward.1} parent=1 // pred_check
      _
    $region63: #{gru_speech_forward.1} parent=1 // pred_check_branch
      %144 = sbr.rel target = $region65
    $region64: #{gru_speech_forward.1} parent=1 // pred_region
      %145 = sst [smem:[#allocation19]] [#allocation26]
      %146 = sst [smem:[#allocation20]] [#allocation25]
    $region65: #{gru_speech_forward.1} parent=1 // pred_fallthru
      _
    %148 = shalt.err (0)
    %s150 = sshll.u32 %s141, 4
    %s151 = int_to_ptr.vmem [resolvable:$true] %s150
    %153 = dma.hbm_to_vmem [thread:$0]  %s140, 16, %s151, %s142
    %s154 = sld [smem:[#allocation6 + $0x2]]
    %s155 = smul.addr %s154, 16
    %s156 = scalar_lea.hbm %s1, %s155
    %s157 = scalar_lea.vmem [#allocation2], 4
    %s158 = scalar_lea.sflag [#allocation5], 4
    // Predicated region
    $region66: #{gru_speech_forward.1} parent=1 // pred_check
      _
    $region67: #{gru_speech_forward.1} parent=1 // pred_check_branch
      %160 = sbr.rel target = $region69
    $region68: #{gru_speech_forward.1} parent=1 // pred_region
      %161 = sst [smem:[#allocation19]] [#allocation28]
      %162 = sst [smem:[#allocation20]] [#allocation27]
    $region69: #{gru_speech_forward.1} parent=1 // pred_fallthru
      _
    %164 = shalt.err (0)
    %s166 = sshll.u32 %s157, 4
    %s167 = int_to_ptr.vmem [resolvable:$true] %s166
    %169 = dma.hbm_to_vmem [thread:$0]  %s156, 16, %s167, %s158
    %s170 = sld [smem:[#allocation6 + $0x82]]
    %s171 = smul.addr %s170, 16
    %s172 = scalar_lea.hbm %s1, %s171
    %s173 = scalar_lea.vmem [#allocation2], 5
    %s174 = scalar_lea.sflag [#allocation5], 5
    // Predicated region
    $region70: #{gru_speech_forward.1} parent=1 // pred_check
      _
    $region71: #{gru_speech_forward.1} parent=1 // pred_check_branch
      %176 = sbr.rel target = $region73
    $region72: #{gru_speech_forward.1} parent=1 // pred_region
      %177 = sst [smem:[#allocation19]] [#allocation30]
      %178 = sst [smem:[#allocation20]] [#allocation29]
    $region73: #{gru_speech_forward.1} parent=1 // pred_fallthru
      _
    %180 = shalt.err (0)
    %s182 = sshll.u32 %s173, 4
    %s183 = int_to_ptr.vmem [resolvable:$true] %s182
    %185 = dma.hbm_to_vmem [thread:$0]  %s172, 16, %s183, %s174
    %s186 = sld [smem:[#allocation6 + $0x3]]
    %s187 = smul.addr %s186, 16
    %s188 = scalar_lea.hbm %s1, %s187
    %s189 = scalar_lea.vmem [#allocation2], 6
    %s190 = scalar_lea.sflag [#allocation5], 6
    // Predicated region
    $region74: #{gru_speech_forward.1} parent=1 // pred_check
      _
    $region75: #{gru_speech_forward.1} parent=1 // pred_check_branch
      %192 = sbr.rel target = $region77
    $region76: #{gru_speech_forward.1} parent=1 // pred_region
      %193 = sst [smem:[#allocation19]] [#allocation32]
      %194 = sst [smem:[#allocation20]] [#allocation31]
    $region77: #{gru_speech_forward.1} parent=1 // pred_fallthru
      _
    %196 = shalt.err (0)
    %s198 = sshll.u32 %s189, 4
    %s199 = int_to_ptr.vmem [resolvable:$true] %s198
    %201 = dma.hbm_to_vmem [thread:$0]  %s188, 16, %s199, %s190
    %s202 = sld [smem:[#allocation6 + $0x83]]
    %s203 = smul.addr %s202, 16
    %s204 = scalar_lea.hbm %s1, %s203
    %s205 = scalar_lea.vmem [#allocation2], 7
    %s206 = scalar_lea.sflag [#allocation5], 7
    // Predicated region
    $region78: #{gru_speech_forward.1} parent=1 // pred_check
      _
    $region79: #{gru_speech_forward.1} parent=1 // pred_check_branch
      %208 = sbr.rel target = $region81
    $region80: #{gru_speech_forward.1} parent=1 // pred_region
      %209 = sst [smem:[#allocation19]] [#allocation34]
      %210 = sst [smem:[#allocation20]] [#allocation33]
    $region81: #{gru_speech_forward.1} parent=1 // pred_fallthru
      _
    %212 = shalt.err (0)
    %s214 = sshll.u32 %s205, 4
    %s215 = int_to_ptr.vmem [resolvable:$true] %s214
    %217 = dma.hbm_to_vmem [thread:$0]  %s204, 16, %s215, %s206
    %s218 = sld [smem:[#allocation6 + $0x4]]
    %s219 = smul.addr %s218, 16
    %s220 = scalar_lea.hbm %s1, %s219
    %s221 = scalar_lea.vmem [#allocation2], 8
    %s222 = scalar_lea.sflag [#allocation5], 8
    // Predicated region
    $region82: #{gru_speech_forward.1} parent=1 // pred_check
      _
    $region83: #{gru_speech_forward.1} parent=1 // pred_check_branch
      %224 = sbr.rel target = $region85
    $region84: #{gru_speech_forward.1} parent=1 // pred_region
      %225 = sst [smem:[#allocation19]] [#allocation36]
      %226 = sst [smem:[#allocation20]] [#allocation35]
    $region85: #{gru_speech_forward.1} parent=1 // pred_fallthru
      _
    %228 = shalt.err (0)
    %s230 = sshll.u32 %s221, 4
    %s231 = int_to_ptr.vmem [resolvable:$true] %s230
    %233 = dma.hbm_to_vmem [thread:$0]  %s220, 16, %s231, %s222
    %s234 = sld [smem:[#allocation6 + $0x84]]
    %s235 = smul.addr %s234, 16
    %s236 = scalar_lea.hbm %s1, %s235
    %s237 = scalar_lea.vmem [#allocation2], 9
    %s238 = scalar_lea.sflag [#allocation5], 9
    // Predicated region
    $region86: #{gru_speech_forward.1} parent=1 // pred_check
      _
    $region87: #{gru_speech_forward.1} parent=1 // pred_check_branch
      %240 = sbr.rel target = $region89
    $region88: #{gru_speech_forward.1} parent=1 // pred_region
      %241 = sst [smem:[#allocation19]] [#allocation38]
      %242 = sst [smem:[#allocation20]] [#allocation37]
    $region89: #{gru_speech_forward.1} parent=1 // pred_fallthru
      _
    %244 = shalt.err (0)
    %s246 = sshll.u32 %s237, 4
    %s247 = int_to_ptr.vmem [resolvable:$true] %s246
    %249 = dma.hbm_to_vmem [thread:$0]  %s236, 16, %s247, %s238
    %s250 = sld [smem:[#allocation6 + $0x5]]
    %s251 = smul.addr %s250, 16
    %s252 = scalar_lea.hbm %s1, %s251
    %s253 = scalar_lea.vmem [#allocation2], 10
    %s254 = scalar_lea.sflag [#allocation5], 10
    // Predicated region
    $region90: #{gru_speech_forward.1} parent=1 // pred_check
      _
    $region91: #{gru_speech_forward.1} parent=1 // pred_check_branch
      %256 = sbr.rel target = $region93
    $region92: #{gru_speech_forward.1} parent=1 // pred_region
      %257 = sst [smem:[#allocation19]] [#allocation40]
      %258 = sst [smem:[#allocation20]] [#allocation39]
    $region93: #{gru_speech_forward.1} parent=1 // pred_fallthru
      _
    %260 = shalt.err (0)
    %s262 = sshll.u32 %s253, 4
    %s263 = int_to_ptr.vmem [resolvable:$true] %s262
    %265 = dma.hbm_to_vmem [thread:$0]  %s252, 16, %s263, %s254
    %s266 = sld [smem:[#allocation6 + $0x85]]
    %s267 = smul.addr %s266, 16
    %s268 = scalar_lea.hbm %s1, %s267
    %s269 = scalar_lea.vmem [#allocation2], 11
    %s270 = scalar_lea.sflag [#allocation5], 11
    // Predicated region
    $region94: #{gru_speech_forward.1} parent=1 // pred_check
      _
    $region95: #{gru_speech_forward.1} parent=1 // pred_check_branch
      %272 = sbr.rel target = $region97
    $region96: #{gru_speech_forward.1} parent=1 // pred_region
      %273 = sst [smem:[#allocation19]] [#allocation42]
      %274 = sst [smem:[#allocation20]] [#allocation41]
    $region97: #{gru_speech_forward.1} parent=1 // pred_fallthru
      _
    %276 = shalt.err (0)
    %s278 = sshll.u32 %s269, 4
    %s279 = int_to_ptr.vmem [resolvable:$true] %s278
    %281 = dma.hbm_to_vmem [thread:$0]  %s268, 16, %s279, %s270
    %s282 = sld [smem:[#allocation6 + $0x6]]
    %s283 = smul.addr %s282, 16
    %s284 = scalar_lea.hbm %s1, %s283
    %s285 = scalar_lea.vmem [#allocation2], 12
    %s286 = scalar_lea.sflag [#allocation5], 12
    // Predicated region
    $region98: #{gru_speech_forward.1} parent=1 // pred_check
      _
    $region99: #{gru_speech_forward.1} parent=1 // pred_check_branch
      %288 = sbr.rel target = $region101
    $region100: #{gru_speech_forward.1} parent=1 // pred_region
      %289 = sst [smem:[#allocation19]] [#allocation44]
      %290 = sst [smem:[#allocation20]] [#allocation43]
    $region101: #{gru_speech_forward.1} parent=1 // pred_fallthru
      _
    %292 = shalt.err (0)
    %s294 = sshll.u32 %s285, 4
    %s295 = int_to_ptr.vmem [resolvable:$true] %s294
    %297 = dma.hbm_to_vmem [thread:$0]  %s284, 16, %s295, %s286
    %s298 = sld [smem:[#allocation6 + $0x86]]
    %s299 = smul.addr %s298, 16
    %s300 = scalar_lea.hbm %s1, %s299
    %s301 = scalar_lea.vmem [#allocation2], 13
    %s302 = scalar_lea.sflag [#allocation5], 13
    // Predicated region
    $region102: #{gru_speech_forward.1} parent=1 // pred_check
      _
    $region103: #{gru_speech_forward.1} parent=1 // pred_check_branch
      %304 = sbr.rel target = $region105
    $region104: #{gru_speech_forward.1} parent=1 // pred_region
      %305 = sst [smem:[#allocation19]] [#allocation46]
      %306 = sst [smem:[#allocation20]] [#allocation45]
    $region105: #{gru_speech_forward.1} parent=1 // pred_fallthru
      _
    %308 = shalt.err (0)
    %s310 = sshll.u32 %s301, 4
    %s311 = int_to_ptr.vmem [resolvable:$true] %s310
    %313 = dma.hbm_to_vmem [thread:$0]  %s300, 16, %s311, %s302
    %s314 = sld [smem:[#allocation6 + $0x7]]
    %s315 = smul.addr %s314, 16
    %s316 = scalar_lea.hbm %s1, %s315
    %s317 = scalar_lea.vmem [#allocation2], 14
    %s318 = scalar_lea.sflag [#allocation5], 14
    // Predicated region
    $region106: #{gru_speech_forward.1} parent=1 // pred_check
      _
    $region107: #{gru_speech_forward.1} parent=1 // pred_check_branch
      %320 = sbr.rel target = $region109
    $region108: #{gru_speech_forward.1} parent=1 // pred_region
      %321 = sst [smem:[#allocation19]] [#allocation48]
      %322 = sst [smem:[#allocation20]] [#allocation47]
    $region109: #{gru_speech_forward.1} parent=1 // pred_fallthru
      _
    %324 = shalt.err (0)
    %s326 = sshll.u32 %s317, 4
    %s327 = int_to_ptr.vmem [resolvable:$true] %s326
    %329 = dma.hbm_to_vmem [thread:$0]  %s316, 16, %s327, %s318
    %s330 = sld [smem:[#allocation6 + $0x87]]
    %s331 = smul.addr %s330, 16
    %s332 = scalar_lea.hbm %s1, %s331
    %s333 = scalar_lea.vmem [#allocation2], 15
    %s334 = scalar_lea.sflag [#allocation5], 15
    // Predicated region
    $region110: #{gru_speech_forward.1} parent=1 // pred_check
      _
    $region111: #{gru_speech_forward.1} parent=1 // pred_check_branch
      %336 = sbr.rel target = $region113
    $region112: #{gru_speech_forward.1} parent=1 // pred_region
      %337 = sst [smem:[#allocation19]] [#allocation50]
      %338 = sst [smem:[#allocation20]] [#allocation49]
    $region113: #{gru_speech_forward.1} parent=1 // pred_fallthru
      _
    %340 = shalt.err (0)
    %s342 = sshll.u32 %s333, 4
    %s343 = int_to_ptr.vmem [resolvable:$true] %s342
    %345 = dma.hbm_to_vmem [thread:$0]  %s332, 16, %s343, %s334
    %347 = dma.done [#allocation5], 16
    %349 = dma.done %s110, 16
    %351 = dma.done %s126, 16
    %353 = dma.done %s142, 16
    %355 = dma.done %s158, 16
    %357 = dma.done %s174, 16
    %359 = dma.done %s190, 16
    %361 = dma.done %s206, 16
    %363 = dma.done %s222, 16
    %365 = dma.done %s238, 16
    %367 = dma.done %s254, 16
    %369 = dma.done %s270, 16
    %371 = dma.done %s286, 16
    %373 = dma.done %s302, 16
    %375 = dma.done %s318, 16
    %377 = dma.done %s334, 16
    %v378 = vld [vmem:[#allocation2] sm:$0xff]
    %v379 = vld [vmem:[#allocation2 + $0x8] sm:$0xff]
    %v380 = vld [vmem:[#allocation10] sm:$0xff]
    %v381 = vld [vmem:[#allocation10 + $0x8] sm:$0xff]
    %v382 = vld [vmem:[#allocation10 + $0x10] sm:$0xff]
    %v383 = vld [vmem:[#allocation10 + $0x18] sm:$0xff]
    %v384 = vld [vmem:[#allocation10 + $0x20] sm:$0xff]
    %v385 = vld [vmem:[#allocation10 + $0x28] sm:$0xff]
    %v386 = vld [vmem:[#allocation10 + $0x30] sm:$0xff]
    %v387 = vld [vmem:[#allocation10 + $0x38] sm:$0xff]
    %v388 = vld [vmem:[#allocation10 + $0x40] sm:$0xff]
    %v389 = vld [vmem:[#allocation10 + $0x48] sm:$0xff]
    %v390 = vld [vmem:[#allocation10 + $0x50] sm:$0xff]
    %v391 = vld [vmem:[#allocation10 + $0x58] sm:$0xff]
    %v392 = vld [vmem:[#allocation10 + $0x60] sm:$0xff]
    %v393 = vld [vmem:[#allocation10 + $0x68] sm:$0xff]
    %v394 = vld [vmem:[#allocation10 + $0x70] sm:$0xff]
    %v395 = vld [vmem:[#allocation10 + $0x78] sm:$0xff]
    %v396 = vld [vmem:[#allocation10 + $0x80] sm:$0xff]
    %v397 = vld [vmem:[#allocation10 + $0x88] sm:$0xff]
    %v398 = vld [vmem:[#allocation10 + $0x90] sm:$0xff]
    %v399 = vld [vmem:[#allocation10 + $0x98] sm:$0xff]
    %v400 = vld [vmem:[#allocation10 + $0xa0] sm:$0xff]
    %v401 = vld [vmem:[#allocation10 + $0xa8] sm:$0xff]
    %v402 = vld [vmem:[#allocation10 + $0xb0] sm:$0xff]
    %v403 = vld [vmem:[#allocation10 + $0xb8] sm:$0xff]
    %v404 = vld [vmem:[#allocation10 + $0xc0] sm:$0xff]
    %v405 = vld [vmem:[#allocation10 + $0xc8] sm:$0xff]
    %v406 = vld [vmem:[#allocation10 + $0xd0] sm:$0xff]
    %v407 = vld [vmem:[#allocation10 + $0xd8] sm:$0xff]
    %v408 = vld [vmem:[#allocation10 + $0xe0] sm:$0xff]
    %v409 = vld [vmem:[#allocation10 + $0xe8] sm:$0xff]
    %v410 = vld [vmem:[#allocation10 + $0xf0] sm:$0xff]
    %v411 = vld [vmem:[#allocation10 + $0xf8] sm:$0xff]
    %v412 = vld [vmem:[#allocation10 + $0x100] sm:$0xff]
    %v413 = vld [vmem:[#allocation10 + $0x108] sm:$0xff]
    %v414 = vld [vmem:[#allocation10 + $0x110] sm:$0xff]
    %v415 = vld [vmem:[#allocation10 + $0x118] sm:$0xff]
    %v416 = vld [vmem:[#allocation10 + $0x120] sm:$0xff]
    %v417 = vld [vmem:[#allocation10 + $0x128] sm:$0xff]
    %v418 = vld [vmem:[#allocation10 + $0x130] sm:$0xff]
    %v419 = vld [vmem:[#allocation10 + $0x138] sm:$0xff]
    %v420 = vld [vmem:[#allocation10 + $0x140] sm:$0xff]
    %v421 = vld [vmem:[#allocation10 + $0x148] sm:$0xff]
    %v422 = vld [vmem:[#allocation10 + $0x150] sm:$0xff]
    %v423 = vld [vmem:[#allocation10 + $0x158] sm:$0xff]
    %v424 = vld [vmem:[#allocation10 + $0x160] sm:$0xff]
    %v425 = vld [vmem:[#allocation10 + $0x168] sm:$0xff]
    %v426 = vld [vmem:[#allocation10 + $0x170] sm:$0xff]
    %v427 = vld [vmem:[#allocation10 + $0x178] sm:$0xff]
    %v428 = vld [vmem:[%s3] sm:$0x7]
    %v430 = vlaneseq
    %v431 = vshrl.u32 %v430, 7
    %v432 = vsub.s32 0, %v431
    %v433 = vrot.slane %v428, %v432
    %v434 = vlaneseq
    %v435 = vshrl.u32 %v434, 7
    %v436 = vsub.s32 1, %v435
    %v437 = vrot.slane %v428, %v436
    %v438 = vlaneseq
    %v439 = vshrl.u32 %v438, 7
    %v440 = vsub.s32 2, %v439
    %v441 = vrot.slane %v428, %v440
    %445 = vmatprep.subr.mxu0 %v381
    %446 = vmatpush1.msra.mxu0 %v380
    %447 = vmatprep.subr.mxu0 %v384
    %448 = vmatpush1.msra.mxu0 %v383
    %449 = vmatprep.subr.mxu0 %v387
    %450 = vmatpush1.msra.mxu0 %v386
    %451 = vmatprep.subr.mxu0 %v390
    %452 = vmatpush1.msra.mxu0 %v389
    %453 = vmatprep.subr.mxu0 %v393
    %454 = vmatpush1.msra.mxu0 %v392
    %455 = vmatprep.subr.mxu0 %v396
    %456 = vmatpush1.msra.mxu0 %v395
    %457 = vmatprep.subr.mxu0 %v399
    %458 = vmatpush1.msra.mxu0 %v398
    %459 = vmatprep.subr.mxu0 %v402
    %460 = vmatpush1.msra.mxu0 %v401
    %461 = vmatprep.subr.mxu0 %v405
    %462 = vmatpush1.msra.mxu0 %v404
    %463 = vmatprep.subr.mxu0 %v408
    %464 = vmatpush1.msra.mxu0 %v407
    %465 = vmatprep.subr.mxu0 %v411
    %466 = vmatpush1.msra.mxu0 %v410
    %467 = vmatprep.subr.mxu0 %v414
    %468 = vmatpush1.msra.mxu0 %v413
    %469 = vmatprep.subr.mxu0 %v417
    %470 = vmatpush1.msra.mxu0 %v416
    %471 = vmatprep.subr.mxu0 %v420
    %472 = vmatpush1.msra.mxu0 %v419
    %473 = vmatprep.subr.mxu0 %v423
    %474 = vmatpush1.msra.mxu0 %v422
    %475 = vmatprep.subr.mxu0 %v426
    %476 = vmatpush1.msra.mxu0 %v425
    %477 = vmatprep.subr.mxu0 0.0
    %478 = vmatpush1.msra.mxu0 0.0
    %479 = vmatprep.subr.mxu0 0.0
    %480 = vmatpush1.msra.mxu0 0.0
    %481 = vmatprep.subr.mxu0 0.0
    %482 = vmatpush1.msra.mxu0 0.0
    %483 = vmatprep.subr.mxu0 0.0
    %484 = vmatpush1.msra.mxu0 0.0
    %485 = vmatprep.subr.mxu0 0.0
    %486 = vmatpush1.msra.mxu0 0.0
    %487 = vmatprep.subr.mxu0 0.0
    %488 = vmatpush1.msra.mxu0 0.0
    %489 = vmatprep.subr.mxu0 0.0
    %490 = vmatpush1.msra.mxu0 0.0
    %491 = vmatprep.subr.mxu0 0.0
    %492 = vmatpush1.msra.mxu0 0.0
    %493 = vmatprep.subr.mxu0 0.0
    %494 = vmatpush1.msra.mxu0 0.0
    %495 = vmatprep.subr.mxu0 0.0
    %496 = vmatpush1.msra.mxu0 0.0
    %497 = vmatprep.subr.mxu0 0.0
    %498 = vmatpush1.msra.mxu0 0.0
    %499 = vmatprep.subr.mxu0 0.0
    %500 = vmatpush1.msra.mxu0 0.0
    %501 = vmatprep.subr.mxu0 0.0
    %502 = vmatpush1.msra.mxu0 0.0
    %503 = vmatprep.subr.mxu0 0.0
    %504 = vmatpush1.msra.mxu0 0.0
    %505 = vmatprep.subr.mxu0 0.0
    %506 = vmatpush1.msra.mxu0 0.0
    %507 = vmatprep.subr.mxu0 0.0
    %508 = vmatpush1.msra.mxu0 0.0
    %509 = vmatprep.mubr.f32.mxu0 0.0
    %510 = vmatmul.mubr.f32.gmra.mrb[0].mxu0 %v378
    %v511 = vpop.f32.mrb[0].mxu0
    %v512 = vadd.f32 %v433, %v511
    %v513 = vpop.f32.mrb[0].mxu0
    %v514 = vadd.f32 %v437, %v513
    %515 = vmatprep.mubr.f32.mxu0 0.0
    %516 = vmatmul.mubr.f32.gmra.mrb[0].mxu0 %v379
    %v517 = vpop.f32.mrb[0].mxu0
    %v518 = vadd.f32 %v433, %v517
    %v519 = vpop.f32.mrb[0].mxu0
    %v520 = vadd.f32 %v437, %v519
    %521 = vdwg.mxu0
    %522 = vmatprep.subr.mxu0 0.0
    %523 = vmatpush1.msra.mxu0 %v382
    %524 = vmatprep.subr.mxu0 0.0
    %525 = vmatpush1.msra.mxu0 %v385
    %526 = vmatprep.subr.mxu0 0.0
    %527 = vmatpush1.msra.mxu0 %v388
    %528 = vmatprep.subr.mxu0 0.0
    %529 = vmatpush1.msra.mxu0 %v391
    %530 = vmatprep.subr.mxu0 0.0
    %531 = vmatpush1.msra.mxu0 %v394
    %532 = vmatprep.subr.mxu0 0.0
    %533 = vmatpush1.msra.mxu0 %v397
    %534 = vmatprep.subr.mxu0 0.0
    %535 = vmatpush1.msra.mxu0 %v400
    %536 = vmatprep.subr.mxu0 0.0
    %537 = vmatpush1.msra.mxu0 %v403
    %538 = vmatprep.subr.mxu0 0.0
    %539 = vmatpush1.msra.mxu0 %v406
    %540 = vmatprep.subr.mxu0 0.0
    %541 = vmatpush1.msra.mxu0 %v409
    %542 = vmatprep.subr.mxu0 0.0
    %543 = vmatpush1.msra.mxu0 %v412
    %544 = vmatprep.subr.mxu0 0.0
    %545 = vmatpush1.msra.mxu0 %v415
    %546 = vmatprep.subr.mxu0 0.0
    %547 = vmatpush1.msra.mxu0 %v418
    %548 = vmatprep.subr.mxu0 0.0
    %549 = vmatpush1.msra.mxu0 %v421
    %550 = vmatprep.subr.mxu0 0.0
    %551 = vmatpush1.msra.mxu0 %v424
    %552 = vmatprep.subr.mxu0 0.0
    %553 = vmatpush1.msra.mxu0 %v427
    %554 = vmatprep.subr.mxu0 0.0
    %555 = vmatpush1.msra.mxu0 0.0
    %556 = vmatprep.subr.mxu0 0.0
    %557 = vmatpush1.msra.mxu0 0.0
    %558 = vmatprep.subr.mxu0 0.0
    %559 = vmatpush1.msra.mxu0 0.0
    %560 = vmatprep.subr.mxu0 0.0
    %561 = vmatpush1.msra.mxu0 0.0
    %562 = vmatprep.subr.mxu0 0.0
    %563 = vmatpush1.msra.mxu0 0.0
    %564 = vmatprep.subr.mxu0 0.0
    %565 = vmatpush1.msra.mxu0 0.0
    %566 = vmatprep.subr.mxu0 0.0
    %567 = vmatpush1.msra.mxu0 0.0
    %568 = vmatprep.subr.mxu0 0.0
    %569 = vmatpush1.msra.mxu0 0.0
    %570 = vmatprep.subr.mxu0 0.0
    %571 = vmatpush1.msra.mxu0 0.0
    %572 = vmatprep.subr.mxu0 0.0
    %573 = vmatpush1.msra.mxu0 0.0
    %574 = vmatprep.subr.mxu0 0.0
    %575 = vmatpush1.msra.mxu0 0.0
    %576 = vmatprep.subr.mxu0 0.0
    %577 = vmatpush1.msra.mxu0 0.0
    %578 = vmatprep.subr.mxu0 0.0
    %579 = vmatpush1.msra.mxu0 0.0
    %580 = vmatprep.subr.mxu0 0.0
    %581 = vmatpush1.msra.mxu0 0.0
    %582 = vmatprep.subr.mxu0 0.0
    %583 = vmatpush1.msra.mxu0 0.0
    %584 = vmatprep.subr.mxu0 0.0
    %585 = vmatpush1.msra.mxu0 0.0
    %586 = vmatprep.mubr.f32.mxu0 0.0
    %587 = vmatmul.mubr.f32.gmra.mrb[0].mxu0 %v378
    %v588 = vpop.f32.mrb[0].mxu0
    %v589 = vadd.f32 %v441, %v588
    %v590 = vpop.f32.mrb[0].mxu0
    %591 = vmatprep.mubr.f32.mxu0 0.0
    %592 = vmatmul.mubr.f32.gmra.mrb[0].mxu0 %v379
    %v593 = vpop.f32.mrb[0].mxu0
    %v594 = vadd.f32 %v441, %v593
    %v595 = vpop.f32.mrb[0].mxu0
    %596 = vdwg.mxu0
    %597 = vst [vmem:[#allocation3] sm:$0xff] %v512
    %598 = vst [vmem:[#allocation3 + $0x8] sm:$0xff] %v514
    %599 = vst [vmem:[#allocation3 + $0x10] sm:$0xff] %v589
    %600 = vst [vmem:[#allocation3 + $0x18] sm:$0xff] %v518
    %601 = vst [vmem:[#allocation3 + $0x20] sm:$0xff] %v520
    %602 = vst [vmem:[#allocation3 + $0x28] sm:$0xff] %v594
    %v603 = vld [vmem:[#allocation11] sm:$0xff]
    %v604 = vld [vmem:[#allocation11 + $0x8] sm:$0xff]
    %v605 = vld [vmem:[#allocation11 + $0x10] sm:$0xff]
    %v606 = vld [vmem:[#allocation11 + $0x18] sm:$0xff]
    %v607 = vld [vmem:[#allocation11 + $0x20] sm:$0xff]
    %v608 = vld [vmem:[#allocation11 + $0x28] sm:$0xff]
    %v609 = vld [vmem:[#allocation11 + $0x30] sm:$0xff]
    %v610 = vld [vmem:[#allocation11 + $0x38] sm:$0xff]
    %v611 = vld [vmem:[#allocation11 + $0x40] sm:$0xff]
    %v612 = vld [vmem:[#allocation11 + $0x48] sm:$0xff]
    %v613 = vld [vmem:[#allocation11 + $0x50] sm:$0xff]
    %v614 = vld [vmem:[#allocation11 + $0x58] sm:$0xff]
    %v615 = vld [vmem:[#allocation11 + $0x60] sm:$0xff]
    %v616 = vld [vmem:[#allocation11 + $0x68] sm:$0xff]
    %v617 = vld [vmem:[#allocation11 + $0x70] sm:$0xff]
    %v618 = vld [vmem:[#allocation11 + $0x78] sm:$0xff]
    %v619 = vld [vmem:[#allocation11 + $0x80] sm:$0xff]
    %v620 = vld [vmem:[#allocation11 + $0x88] sm:$0xff]
    %v621 = vld [vmem:[#allocation11 + $0x90] sm:$0xff]
    %v622 = vld [vmem:[#allocation11 + $0x98] sm:$0xff]
    %v623 = vld [vmem:[#allocation11 + $0xa0] sm:$0xff]
    %v624 = vld [vmem:[#allocation11 + $0xa8] sm:$0xff]
    %v625 = vld [vmem:[#allocation11 + $0xb0] sm:$0xff]
    %v626 = vld [vmem:[#allocation11 + $0xb8] sm:$0xff]
    %v627 = vld [vmem:[#allocation11 + $0xc0] sm:$0xff]
    %v628 = vld [vmem:[#allocation11 + $0xc8] sm:$0xff]
    %v629 = vld [vmem:[#allocation11 + $0xd0] sm:$0xff]
    %v630 = vld [vmem:[#allocation11 + $0xd8] sm:$0xff]
    %v631 = vld [vmem:[#allocation11 + $0xe0] sm:$0xff]
    %v632 = vld [vmem:[#allocation11 + $0xe8] sm:$0xff]
    %v633 = vld [vmem:[#allocation11 + $0xf0] sm:$0xff]
    %v634 = vld [vmem:[#allocation11 + $0xf8] sm:$0xff]
    %v635 = vld [vmem:[#allocation11 + $0x100] sm:$0xff]
    %v636 = vld [vmem:[#allocation11 + $0x108] sm:$0xff]
    %v637 = vld [vmem:[#allocation11 + $0x110] sm:$0xff]
    %v638 = vld [vmem:[#allocation11 + $0x118] sm:$0xff]
    %v639 = vld [vmem:[#allocation11 + $0x120] sm:$0xff]
    %v640 = vld [vmem:[#allocation11 + $0x128] sm:$0xff]
    %v641 = vld [vmem:[#allocation11 + $0x130] sm:$0xff]
    %v642 = vld [vmem:[#allocation11 + $0x138] sm:$0xff]
    %v643 = vld [vmem:[#allocation11 + $0x140] sm:$0xff]
    %v644 = vld [vmem:[#allocation11 + $0x148] sm:$0xff]
    %v645 = vld [vmem:[#allocation11 + $0x150] sm:$0xff]
    %v646 = vld [vmem:[#allocation11 + $0x158] sm:$0xff]
    %v647 = vld [vmem:[#allocation11 + $0x160] sm:$0xff]
    %v648 = vld [vmem:[#allocation11 + $0x168] sm:$0xff]
    %v649 = vld [vmem:[#allocation11 + $0x170] sm:$0xff]
    %v650 = vld [vmem:[#allocation11 + $0x178] sm:$0xff]
    %v651 = vld [vmem:[%s5] sm:$0x7]
    %v653 = vlaneseq
    %v654 = vshrl.u32 %v653, 7
    %v655 = vsub.s32 0, %v654
    %v656 = vrot.slane %v651, %v655
    %v657 = vlaneseq
    %v658 = vshrl.u32 %v657, 7
    %v659 = vsub.s32 1, %v658
    %v660 = vrot.slane %v651, %v659
    %v661 = vlaneseq
    %v662 = vshrl.u32 %v661, 7
    %v663 = vsub.s32 2, %v662
    %v664 = vrot.slane %v651, %v663
    %v668 = vld [vmem:[#allocation3] sm:$0x3]
    %v669 = vld [vmem:[#allocation3 + $0x8] sm:$0x3]
    %v670 = vld [vmem:[#allocation3 + $0x10] sm:$0x3]
    %671 = vmatprep.subr.mxu0 %v604
    %672 = vmatpush1.msra.mxu0 %v603
    %673 = vmatprep.subr.mxu0 %v607
    %674 = vmatpush1.msra.mxu0 %v606
    %675 = vmatprep.subr.mxu0 %v610
    %676 = vmatpush1.msra.mxu0 %v609
    %677 = vmatprep.subr.mxu0 %v613
    %678 = vmatpush1.msra.mxu0 %v612
    %679 = vmatprep.subr.mxu0 %v616
    %680 = vmatpush1.msra.mxu0 %v615
    %681 = vmatprep.subr.mxu0 %v619
    %682 = vmatpush1.msra.mxu0 %v618
    %683 = vmatprep.subr.mxu0 %v622
    %684 = vmatpush1.msra.mxu0 %v621
    %685 = vmatprep.subr.mxu0 %v625
    %686 = vmatpush1.msra.mxu0 %v624
    %687 = vmatprep.subr.mxu0 %v628
    %688 = vmatpush1.msra.mxu0 %v627
    %689 = vmatprep.subr.mxu0 %v631
    %690 = vmatpush1.msra.mxu0 %v630
    %691 = vmatprep.subr.mxu0 %v634
    %692 = vmatpush1.msra.mxu0 %v633
    %693 = vmatprep.subr.mxu0 %v637
    %694 = vmatpush1.msra.mxu0 %v636
    %695 = vmatprep.subr.mxu0 %v640
    %696 = vmatpush1.msra.mxu0 %v639
    %697 = vmatprep.subr.mxu0 %v643
    %698 = vmatpush1.msra.mxu0 %v642
    %699 = vmatprep.subr.mxu0 %v646
    %700 = vmatpush1.msra.mxu0 %v645
    %701 = vmatprep.subr.mxu0 %v649
    %702 = vmatpush1.msra.mxu0 %v648
    %703 = vmatprep.subr.mxu0 0.0
    %704 = vmatpush1.msra.mxu0 0.0
    %705 = vmatprep.subr.mxu0 0.0
    %706 = vmatpush1.msra.mxu0 0.0
    %707 = vmatprep.subr.mxu0 0.0
    %708 = vmatpush1.msra.mxu0 0.0
    %709 = vmatprep.subr.mxu0 0.0
    %710 = vmatpush1.msra.mxu0 0.0
    %711 = vmatprep.subr.mxu0 0.0
    %712 = vmatpush1.msra.mxu0 0.0
    %713 = vmatprep.subr.mxu0 0.0
    %714 = vmatpush1.msra.mxu0 0.0
    %715 = vmatprep.subr.mxu0 0.0
    %716 = vmatpush1.msra.mxu0 0.0
    %717 = vmatprep.subr.mxu0 0.0
    %718 = vmatpush1.msra.mxu0 0.0
    %719 = vmatprep.subr.mxu0 0.0
    %720 = vmatpush1.msra.mxu0 0.0
    %721 = vmatprep.subr.mxu0 0.0
    %722 = vmatpush1.msra.mxu0 0.0
    %723 = vmatprep.subr.mxu0 0.0
    %724 = vmatpush1.msra.mxu0 0.0
    %725 = vmatprep.subr.mxu0 0.0
    %726 = vmatpush1.msra.mxu0 0.0
    %727 = vmatprep.subr.mxu0 0.0
    %728 = vmatpush1.msra.mxu0 0.0
    %729 = vmatprep.subr.mxu0 0.0
    %730 = vmatpush1.msra.mxu0 0.0
    %731 = vmatprep.subr.mxu0 0.0
    %732 = vmatpush1.msra.mxu0 0.0
    %733 = vmatprep.subr.mxu0 0.0
    %734 = vmatpush1.msra.mxu0 0.0
    %735 = vmatprep.mubr.f32.mxu0 0.0
    %736 = vmatmul.mubr.f32.gmra.mrb[0].mxu0 0.0
    %v737 = vpop.f32.mrb[0].mxu0
    %v738 = vadd.f32 %v656, %v737
    %v739 = vpop.f32.mrb[0].mxu0
    %v740 = vadd.f32 %v660, %v739
    %741 = vdwg.mxu0
    %742 = vmatprep.subr.mxu0 0.0
    %743 = vmatpush1.msra.mxu0 %v605
    %744 = vmatprep.subr.mxu0 0.0
    %745 = vmatpush1.msra.mxu0 %v608
    %746 = vmatprep.subr.mxu0 0.0
    %747 = vmatpush1.msra.mxu0 %v611
    %748 = vmatprep.subr.mxu0 0.0
    %749 = vmatpush1.msra.mxu0 %v614
    %750 = vmatprep.subr.mxu0 0.0
    %751 = vmatpush1.msra.mxu0 %v617
    %752 = vmatprep.subr.mxu0 0.0
    %753 = vmatpush1.msra.mxu0 %v620
    %754 = vmatprep.subr.mxu0 0.0
    %755 = vmatpush1.msra.mxu0 %v623
    %756 = vmatprep.subr.mxu0 0.0
    %757 = vmatpush1.msra.mxu0 %v626
    %758 = vmatprep.subr.mxu0 0.0
    %759 = vmatpush1.msra.mxu0 %v629
    %760 = vmatprep.subr.mxu0 0.0
    %761 = vmatpush1.msra.mxu0 %v632
    %762 = vmatprep.subr.mxu0 0.0
    %763 = vmatpush1.msra.mxu0 %v635
    %764 = vmatprep.subr.mxu0 0.0
    %765 = vmatpush1.msra.mxu0 %v638
    %766 = vmatprep.subr.mxu0 0.0
    %767 = vmatpush1.msra.mxu0 %v641
    %768 = vmatprep.subr.mxu0 0.0
    %769 = vmatpush1.msra.mxu0 %v644
    %770 = vmatprep.subr.mxu0 0.0
    %771 = vmatpush1.msra.mxu0 %v647
    %772 = vmatprep.subr.mxu0 0.0
    %773 = vmatpush1.msra.mxu0 %v650
    %774 = vmatprep.subr.mxu0 0.0
    %775 = vmatpush1.msra.mxu0 0.0
    %776 = vmatprep.subr.mxu0 0.0
    %777 = vmatpush1.msra.mxu0 0.0
    %778 = vmatprep.subr.mxu0 0.0
    %779 = vmatpush1.msra.mxu0 0.0
    %780 = vmatprep.subr.mxu0 0.0
    %781 = vmatpush1.msra.mxu0 0.0
    %782 = vmatprep.subr.mxu0 0.0
    %783 = vmatpush1.msra.mxu0 0.0
    %784 = vmatprep.subr.mxu0 0.0
    %785 = vmatpush1.msra.mxu0 0.0
    %786 = vmatprep.subr.mxu0 0.0
    %787 = vmatpush1.msra.mxu0 0.0
    %788 = vmatprep.subr.mxu0 0.0
    %789 = vmatpush1.msra.mxu0 0.0
    %790 = vmatprep.subr.mxu0 0.0
    %791 = vmatpush1.msra.mxu0 0.0
    %792 = vmatprep.subr.mxu0 0.0
    %793 = vmatpush1.msra.mxu0 0.0
    %794 = vmatprep.subr.mxu0 0.0
    %795 = vmatpush1.msra.mxu0 0.0
    %796 = vmatprep.subr.mxu0 0.0
    %797 = vmatpush1.msra.mxu0 0.0
    %798 = vmatprep.subr.mxu0 0.0
    %799 = vmatpush1.msra.mxu0 0.0
    %800 = vmatprep.subr.mxu0 0.0
    %801 = vmatpush1.msra.mxu0 0.0
    %802 = vmatprep.subr.mxu0 0.0
    %803 = vmatpush1.msra.mxu0 0.0
    %804 = vmatprep.subr.mxu0 0.0
    %805 = vmatpush1.msra.mxu0 0.0
    %806 = vmatprep.mubr.f32.mxu0 0.0
    %807 = vmatmul.mubr.f32.gmra.mrb[0].mxu0 0.0
    %v808 = vpop.f32.mrb[0].mxu0
    %v809 = vadd.f32 %v664, %v808
    %v810 = vpop.f32.mrb[0].mxu0
    %811 = vdwg.mxu0
    %v812 = vadd.f32 %v668, %v738
    %v813 = vxor.u32 %v812, 2147483648
    %v814 = vmul.f32 %v813, 1.442695
    %v815 = vpow.pop %v814
    %v816 = vadd.f32 %v815, 1.0
    %v817 = vrcp.pop %v816
    %v818 = vmul.f32 1.0, %v817
    %v819 = vadd.f32 %v669, %v740
    %v820 = vxor.u32 %v819, 2147483648
    %v821 = vmul.f32 %v820, 1.442695
    %v822 = vpow.pop %v821
    %v823 = vadd.f32 %v822, 1.0
    %v824 = vrcp.pop %v823
    %v825 = vmul.f32 1.0, %v824
    %v826 = vmul.f32 %v818, %v809
    %v827 = vadd.f32 %v670, %v826
    %v828 = vtanh.pop %v827
    %v829 = vsub.f32 1.0, %v825
    %v830 = vmul.f32 %v829, %v828
    %v831 = vmul.f32 %v825, 0.0
    %v832 = vadd.f32 %v830, %v831
    %833 = vst [vmem:[#allocation4] sm:$0x1] %v832
    %834 = vst [vmem:[#allocation4 + $0x7] sm:$0x2] %v832
    %v835 = vld [vmem:[#allocation3] sm:$0xc]
    %v836 = vld [vmem:[#allocation3 + $0x8] sm:$0xc]
    %v837 = vld [vmem:[#allocation3 + $0x10] sm:$0xc]
    %838 = vmatprep.subr.mxu0 %v604
    %839 = vmatpush1.msra.mxu0 %v603
    %840 = vmatprep.subr.mxu0 %v607
    %841 = vmatpush1.msra.mxu0 %v606
    %842 = vmatprep.subr.mxu0 %v610
    %843 = vmatpush1.msra.mxu0 %v609
    %844 = vmatprep.subr.mxu0 %v613
    %845 = vmatpush1.msra.mxu0 %v612
    %846 = vmatprep.subr.mxu0 %v616
    %847 = vmatpush1.msra.mxu0 %v615
    %848 = vmatprep.subr.mxu0 %v619
    %849 = vmatpush1.msra.mxu0 %v618
    %850 = vmatprep.subr.mxu0 %v622
    %851 = vmatpush1.msra.mxu0 %v621
    %852 = vmatprep.subr.mxu0 %v625
    %853 = vmatpush1.msra.mxu0 %v624
    %854 = vmatprep.subr.mxu0 %v628
    %855 = vmatpush1.msra.mxu0 %v627
    %856 = vmatprep.subr.mxu0 %v631
    %857 = vmatpush1.msra.mxu0 %v630
    %858 = vmatprep.subr.mxu0 %v634
    %859 = vmatpush1.msra.mxu0 %v633
    %860 = vmatprep.subr.mxu0 %v637
    %861 = vmatpush1.msra.mxu0 %v636
    %862 = vmatprep.subr.mxu0 %v640
    %863 = vmatpush1.msra.mxu0 %v639
    %864 = vmatprep.subr.mxu0 %v643
    %865 = vmatpush1.msra.mxu0 %v642
    %866 = vmatprep.subr.mxu0 %v646
    %867 = vmatpush1.msra.mxu0 %v645
    %868 = vmatprep.subr.mxu0 %v649
    %869 = vmatpush1.msra.mxu0 %v648
    %870 = vmatprep.subr.mxu0 0.0
    %871 = vmatpush1.msra.mxu0 0.0
    %872 = vmatprep.subr.mxu0 0.0
    %873 = vmatpush1.msra.mxu0 0.0
    %874 = vmatprep.subr.mxu0 0.0
    %875 = vmatpush1.msra.mxu0 0.0
    %876 = vmatprep.subr.mxu0 0.0
    %877 = vmatpush1.msra.mxu0 0.0
    %878 = vmatprep.subr.mxu0 0.0
    %879 = vmatpush1.msra.mxu0 0.0
    %880 = vmatprep.subr.mxu0 0.0
    %881 = vmatpush1.msra.mxu0 0.0
    %882 = vmatprep.subr.mxu0 0.0
    %883 = vmatpush1.msra.mxu0 0.0
    %884 = vmatprep.subr.mxu0 0.0
    %885 = vmatpush1.msra.mxu0 0.0
    %886 = vmatprep.subr.mxu0 0.0
    %887 = vmatpush1.msra.mxu0 0.0
    %888 = vmatprep.subr.mxu0 0.0
    %889 = vmatpush1.msra.mxu0 0.0
    %890 = vmatprep.subr.mxu0 0.0
    %891 = vmatpush1.msra.mxu0 0.0
    %892 = vmatprep.subr.mxu0 0.0
    %893 = vmatpush1.msra.mxu0 0.0
    %894 = vmatprep.subr.mxu0 0.0
    %895 = vmatpush1.msra.mxu0 0.0
    %896 = vmatprep.subr.mxu0 0.0
    %897 = vmatpush1.msra.mxu0 0.0
    %898 = vmatprep.subr.mxu0 0.0
    %899 = vmatpush1.msra.mxu0 0.0
    %900 = vmatprep.subr.mxu0 0.0
    %901 = vmatpush1.msra.mxu0 0.0
    %902 = vmatprep.mubr.f32.mxu0 0.0
    %903 = vmatmul.mubr.f32.gmra.mrb[0].mxu0 %v832
    %v904 = vpop.f32.mrb[0].mxu0
    %v905 = vadd.f32 %v656, %v904
    %v906 = vpop.f32.mrb[0].mxu0
    %v907 = vadd.f32 %v660, %v906
    %908 = vdwg.mxu0
    %909 = vmatprep.subr.mxu0 0.0
    %910 = vmatpush1.msra.mxu0 %v605
    %911 = vmatprep.subr.mxu0 0.0
    %912 = vmatpush1.msra.mxu0 %v608
    %913 = vmatprep.subr.mxu0 0.0
    %914 = vmatpush1.msra.mxu0 %v611
    %915 = vmatprep.subr.mxu0 0.0
    %916 = vmatpush1.msra.mxu0 %v614
    %917 = vmatprep.subr.mxu0 0.0
    %918 = vmatpush1.msra.mxu0 %v617
    %919 = vmatprep.subr.mxu0 0.0
    %920 = vmatpush1.msra.mxu0 %v620
    %921 = vmatprep.subr.mxu0 0.0
    %922 = vmatpush1.msra.mxu0 %v623
    %923 = vmatprep.subr.mxu0 0.0
    %924 = vmatpush1.msra.mxu0 %v626
    %925 = vmatprep.subr.mxu0 0.0
    %926 = vmatpush1.msra.mxu0 %v629
    %927 = vmatprep.subr.mxu0 0.0
    %928 = vmatpush1.msra.mxu0 %v632
    %929 = vmatprep.subr.mxu0 0.0
    %930 = vmatpush1.msra.mxu0 %v635
    %931 = vmatprep.subr.mxu0 0.0
    %932 = vmatpush1.msra.mxu0 %v638
    %933 = vmatprep.subr.mxu0 0.0
    %934 = vmatpush1.msra.mxu0 %v641
    %935 = vmatprep.subr.mxu0 0.0
    %936 = vmatpush1.msra.mxu0 %v644
    %937 = vmatprep.subr.mxu0 0.0
    %938 = vmatpush1.msra.mxu0 %v647
    %939 = vmatprep.subr.mxu0 0.0
    %940 = vmatpush1.msra.mxu0 %v650
    %941 = vmatprep.subr.mxu0 0.0
    %942 = vmatpush1.msra.mxu0 0.0
    %943 = vmatprep.subr.mxu0 0.0
    %944 = vmatpush1.msra.mxu0 0.0
    %945 = vmatprep.subr.mxu0 0.0
    %946 = vmatpush1.msra.mxu0 0.0
    %947 = vmatprep.subr.mxu0 0.0
    %948 = vmatpush1.msra.mxu0 0.0
    %949 = vmatprep.subr.mxu0 0.0
    %950 = vmatpush1.msra.mxu0 0.0
    %951 = vmatprep.subr.mxu0 0.0
    %952 = vmatpush1.msra.mxu0 0.0
    %953 = vmatprep.subr.mxu0 0.0
    %954 = vmatpush1.msra.mxu0 0.0
    %955 = vmatprep.subr.mxu0 0.0
    %956 = vmatpush1.msra.mxu0 0.0
    %957 = vmatprep.subr.mxu0 0.0
    %958 = vmatpush1.msra.mxu0 0.0
    %959 = vmatprep.subr.mxu0 0.0
    %960 = vmatpush1.msra.mxu0 0.0
    %961 = vmatprep.subr.mxu0 0.0
    %962 = vmatpush1.msra.mxu0 0.0
    %963 = vmatprep.subr.mxu0 0.0
    %964 = vmatpush1.msra.mxu0 0.0
    %965 = vmatprep.subr.mxu0 0.0
    %966 = vmatpush1.msra.mxu0 0.0
    %967 = vmatprep.subr.mxu0 0.0
    %968 = vmatpush1.msra.mxu0 0.0
    %969 = vmatprep.subr.mxu0 0.0
    %970 = vmatpush1.msra.mxu0 0.0
    %971 = vmatprep.subr.mxu0 0.0
    %972 = vmatpush1.msra.mxu0 0.0
    %973 = vmatprep.mubr.f32.mxu0 0.0
    %974 = vmatmul.mubr.f32.gmra.mrb[0].mxu0 %v832
    %v975 = vpop.f32.mrb[0].mxu0
    %v976 = vadd.f32 %v664, %v975
    %v977 = vpop.f32.mrb[0].mxu0
    %978 = vdwg.mxu0
    %v980 = vrot.slane %v905, 6
    %v982 = vadd.f32 %v835, %v980
    %v983 = vxor.u32 %v982, 2147483648
    %v984 = vmul.f32 %v983, 1.442695
    %v985 = vpow.pop %v984
    %v986 = vadd.f32 %v985, 1.0
    %v987 = vrcp.pop %v986
    %v988 = vmul.f32 1.0, %v987
    %v990 = vrot.slane %v907, 6
    %v992 = vadd.f32 %v836, %v990
    %v993 = vxor.u32 %v992, 2147483648
    %v994 = vmul.f32 %v993, 1.442695
    %v995 = vpow.pop %v994
    %v996 = vadd.f32 %v995, 1.0
    %v997 = vrcp.pop %v996
    %v998 = vmul.f32 1.0, %v997
    %v1000 = vrot.slane %v976, 6
    %v1002 = vmul.f32 %v988, %v1000
    %v1003 = vadd.f32 %v837, %v1002
    %v1004 = vtanh.pop %v1003
    %v1005 = vsub.f32 1.0, %v998
    %v1006 = vmul.f32 %v1005, %v1004
    %v1008 = vrot.slane %v832, 6
    %v1010 = vmul.f32 %v998, %v1008
    %v1011 = vadd.f32 %v1006, %v1010
    %1012 = vst [vmem:[#allocation4 - $0x1] sm:$0x4] %v1011
    %1013 = vst [vmem:[#allocation4 + $0x6] sm:$0x8] %v1011
    %v1014 = vld [vmem:[#allocation3] sm:$0x30]
    %v1015 = vld [vmem:[#allocation3 + $0x8] sm:$0x30]
    %v1016 = vld [vmem:[#allocation3 + $0x10] sm:$0x30]
    %v1018 = vrot.slane %v1011, 2
    %1020 = vmatprep.subr.mxu0 %v604
    %1021 = vmatpush1.msra.mxu0 %v603
    %1022 = vmatprep.subr.mxu0 %v607
    %1023 = vmatpush1.msra.mxu0 %v606
    %1024 = vmatprep.subr.mxu0 %v610
    %1025 = vmatpush1.msra.mxu0 %v609
    %1026 = vmatprep.subr.mxu0 %v613
    %1027 = vmatpush1.msra.mxu0 %v612
    %1028 = vmatprep.subr.mxu0 %v616
    %1029 = vmatpush1.msra.mxu0 %v615
    %1030 = vmatprep.subr.mxu0 %v619
    %1031 = vmatpush1.msra.mxu0 %v618
    %1032 = vmatprep.subr.mxu0 %v622
    %1033 = vmatpush1.msra.mxu0 %v621
    %1034 = vmatprep.subr.mxu0 %v625
    %1035 = vmatpush1.msra.mxu0 %v624
    %1036 = vmatprep.subr.mxu0 %v628
    %1037 = vmatpush1.msra.mxu0 %v627
    %1038 = vmatprep.subr.mxu0 %v631
    %1039 = vmatpush1.msra.mxu0 %v630
    %1040 = vmatprep.subr.mxu0 %v634
    %1041 = vmatpush1.msra.mxu0 %v633
    %1042 = vmatprep.subr.mxu0 %v637
    %1043 = vmatpush1.msra.mxu0 %v636
    %1044 = vmatprep.subr.mxu0 %v640
    %1045 = vmatpush1.msra.mxu0 %v639
    %1046 = vmatprep.subr.mxu0 %v643
    %1047 = vmatpush1.msra.mxu0 %v642
    %1048 = vmatprep.subr.mxu0 %v646
    %1049 = vmatpush1.msra.mxu0 %v645
    %1050 = vmatprep.subr.mxu0 %v649
    %1051 = vmatpush1.msra.mxu0 %v648
    %1052 = vmatprep.subr.mxu0 0.0
    %1053 = vmatpush1.msra.mxu0 0.0
    %1054 = vmatprep.subr.mxu0 0.0
    %1055 = vmatpush1.msra.mxu0 0.0
    %1056 = vmatprep.subr.mxu0 0.0
    %1057 = vmatpush1.msra.mxu0 0.0
    %1058 = vmatprep.subr.mxu0 0.0
    %1059 = vmatpush1.msra.mxu0 0.0
    %1060 = vmatprep.subr.mxu0 0.0
    %1061 = vmatpush1.msra.mxu0 0.0
    %1062 = vmatprep.subr.mxu0 0.0
    %1063 = vmatpush1.msra.mxu0 0.0
    %1064 = vmatprep.subr.mxu0 0.0
    %1065 = vmatpush1.msra.mxu0 0.0
    %1066 = vmatprep.subr.mxu0 0.0
    %1067 = vmatpush1.msra.mxu0 0.0
    %1068 = vmatprep.subr.mxu0 0.0
    %1069 = vmatpush1.msra.mxu0 0.0
    %1070 = vmatprep.subr.mxu0 0.0
    %1071 = vmatpush1.msra.mxu0 0.0
    %1072 = vmatprep.subr.mxu0 0.0
    %1073 = vmatpush1.msra.mxu0 0.0
    %1074 = vmatprep.subr.mxu0 0.0
    %1075 = vmatpush1.msra.mxu0 0.0
    %1076 = vmatprep.subr.mxu0 0.0
    %1077 = vmatpush1.msra.mxu0 0.0
    %1078 = vmatprep.subr.mxu0 0.0
    %1079 = vmatpush1.msra.mxu0 0.0
    %1080 = vmatprep.subr.mxu0 0.0
    %1081 = vmatpush1.msra.mxu0 0.0
    %1082 = vmatprep.subr.mxu0 0.0
    %1083 = vmatpush1.msra.mxu0 0.0
    %1084 = vmatprep.mubr.f32.mxu0 0.0
    %1085 = vmatmul.mubr.f32.gmra.mrb[0].mxu0 %v1018
    %v1086 = vpop.f32.mrb[0].mxu0
    %v1087 = vadd.f32 %v656, %v1086
    %v1088 = vpop.f32.mrb[0].mxu0
    %v1089 = vadd.f32 %v660, %v1088
    %1090 = vdwg.mxu0
    %1091 = vmatprep.subr.mxu0 0.0
    %1092 = vmatpush1.msra.mxu0 %v605
    %1093 = vmatprep.subr.mxu0 0.0
    %1094 = vmatpush1.msra.mxu0 %v608
    %1095 = vmatprep.subr.mxu0 0.0
    %1096 = vmatpush1.msra.mxu0 %v611
    %1097 = vmatprep.subr.mxu0 0.0
    %1098 = vmatpush1.msra.mxu0 %v614
    %1099 = vmatprep.subr.mxu0 0.0
    %1100 = vmatpush1.msra.mxu0 %v617
    %1101 = vmatprep.subr.mxu0 0.0
    %1102 = vmatpush1.msra.mxu0 %v620
    %1103 = vmatprep.subr.mxu0 0.0
    %1104 = vmatpush1.msra.mxu0 %v623
    %1105 = vmatprep.subr.mxu0 0.0
    %1106 = vmatpush1.msra.mxu0 %v626
    %1107 = vmatprep.subr.mxu0 0.0
    %1108 = vmatpush1.msra.mxu0 %v629
    %1109 = vmatprep.subr.mxu0 0.0
    %1110 = vmatpush1.msra.mxu0 %v632
    %1111 = vmatprep.subr.mxu0 0.0
    %1112 = vmatpush1.msra.mxu0 %v635
    %1113 = vmatprep.subr.mxu0 0.0
    %1114 = vmatpush1.msra.mxu0 %v638
    %1115 = vmatprep.subr.mxu0 0.0
    %1116 = vmatpush1.msra.mxu0 %v641
    %1117 = vmatprep.subr.mxu0 0.0
    %1118 = vmatpush1.msra.mxu0 %v644
    %1119 = vmatprep.subr.mxu0 0.0
    %1120 = vmatpush1.msra.mxu0 %v647
    %1121 = vmatprep.subr.mxu0 0.0
    %1122 = vmatpush1.msra.mxu0 %v650
    %1123 = vmatprep.subr.mxu0 0.0
    %1124 = vmatpush1.msra.mxu0 0.0
    %1125 = vmatprep.subr.mxu0 0.0
    %1126 = vmatpush1.msra.mxu0 0.0
    %1127 = vmatprep.subr.mxu0 0.0
    %1128 = vmatpush1.msra.mxu0 0.0
    %1129 = vmatprep.subr.mxu0 0.0
    %1130 = vmatpush1.msra.mxu0 0.0
    %1131 = vmatprep.subr.mxu0 0.0
    %1132 = vmatpush1.msra.mxu0 0.0
    %1133 = vmatprep.subr.mxu0 0.0
    %1134 = vmatpush1.msra.mxu0 0.0
    %1135 = vmatprep.subr.mxu0 0.0
    %1136 = vmatpush1.msra.mxu0 0.0
    %1137 = vmatprep.subr.mxu0 0.0
    %1138 = vmatpush1.msra.mxu0 0.0
    %1139 = vmatprep.subr.mxu0 0.0
    %1140 = vmatpush1.msra.mxu0 0.0
    %1141 = vmatprep.subr.mxu0 0.0
    %1142 = vmatpush1.msra.mxu0 0.0
    %1143 = vmatprep.subr.mxu0 0.0
    %1144 = vmatpush1.msra.mxu0 0.0
    %1145 = vmatprep.subr.mxu0 0.0
    %1146 = vmatpush1.msra.mxu0 0.0
    %1147 = vmatprep.subr.mxu0 0.0
    %1148 = vmatpush1.msra.mxu0 0.0
    %1149 = vmatprep.subr.mxu0 0.0
    %1150 = vmatpush1.msra.mxu0 0.0
    %1151 = vmatprep.subr.mxu0 0.0
    %1152 = vmatpush1.msra.mxu0 0.0
    %1153 = vmatprep.subr.mxu0 0.0
    %1154 = vmatpush1.msra.mxu0 0.0
    %1155 = vmatprep.mubr.f32.mxu0 0.0
    %1156 = vmatmul.mubr.f32.gmra.mrb[0].mxu0 %v1018
    %v1157 = vpop.f32.mrb[0].mxu0
    %v1158 = vadd.f32 %v664, %v1157
    %v1159 = vpop.f32.mrb[0].mxu0
    %1160 = vdwg.mxu0
    %v1162 = vrot.slane %v1087, 4
    %v1164 = vadd.f32 %v1014, %v1162
    %v1165 = vxor.u32 %v1164, 2147483648
    %v1166 = vmul.f32 %v1165, 1.442695
    %v1167 = vpow.pop %v1166
    %v1168 = vadd.f32 %v1167, 1.0
    %v1169 = vrcp.pop %v1168
    %v1170 = vmul.f32 1.0, %v1169
    %v1172 = vrot.slane %v1089, 4
    %v1174 = vadd.f32 %v1015, %v1172
    %v1175 = vxor.u32 %v1174, 2147483648
    %v1176 = vmul.f32 %v1175, 1.442695
    %v1177 = vpow.pop %v1176
    %v1178 = vadd.f32 %v1177, 1.0
    %v1179 = vrcp.pop %v1178
    %v1180 = vmul.f32 1.0, %v1179
    %v1182 = vrot.slane %v1158, 4
    %v1184 = vmul.f32 %v1170, %v1182
    %v1185 = vadd.f32 %v1016, %v1184
    %v1186 = vtanh.pop %v1185
    %v1187 = vsub.f32 1.0, %v1180
    %v1188 = vmul.f32 %v1187, %v1186
    %v1189 = vrot.slane %v1011, 6
    %v1191 = vmul.f32 %v1180, %v1189
    %v1192 = vadd.f32 %v1188, %v1191
    %1193 = vst [vmem:[#allocation4 - $0x2] sm:$0x10] %v1192
    %1194 = vst [vmem:[#allocation4 + $0x5] sm:$0x20] %v1192
    %v1195 = vld [vmem:[#allocation3] sm:$0xc0]
    %v1196 = vld [vmem:[#allocation3 + $0x8] sm:$0xc0]
    %v1197 = vld [vmem:[#allocation3 + $0x10] sm:$0xc0]
    %v1199 = vrot.slane %v1192, 4
    %1201 = vmatprep.subr.mxu0 %v604
    %1202 = vmatpush1.msra.mxu0 %v603
    %1203 = vmatprep.subr.mxu0 %v607
    %1204 = vmatpush1.msra.mxu0 %v606
    %1205 = vmatprep.subr.mxu0 %v610
    %1206 = vmatpush1.msra.mxu0 %v609
    %1207 = vmatprep.subr.mxu0 %v613
    %1208 = vmatpush1.msra.mxu0 %v612
    %1209 = vmatprep.subr.mxu0 %v616
    %1210 = vmatpush1.msra.mxu0 %v615
    %1211 = vmatprep.subr.mxu0 %v619
    %1212 = vmatpush1.msra.mxu0 %v618
    %1213 = vmatprep.subr.mxu0 %v622
    %1214 = vmatpush1.msra.mxu0 %v621
    %1215 = vmatprep.subr.mxu0 %v625
    %1216 = vmatpush1.msra.mxu0 %v624
    %1217 = vmatprep.subr.mxu0 %v628
    %1218 = vmatpush1.msra.mxu0 %v627
    %1219 = vmatprep.subr.mxu0 %v631
    %1220 = vmatpush1.msra.mxu0 %v630
    %1221 = vmatprep.subr.mxu0 %v634
    %1222 = vmatpush1.msra.mxu0 %v633
    %1223 = vmatprep.subr.mxu0 %v637
    %1224 = vmatpush1.msra.mxu0 %v636
    %1225 = vmatprep.subr.mxu0 %v640
    %1226 = vmatpush1.msra.mxu0 %v639
    %1227 = vmatprep.subr.mxu0 %v643
    %1228 = vmatpush1.msra.mxu0 %v642
    %1229 = vmatprep.subr.mxu0 %v646
    %1230 = vmatpush1.msra.mxu0 %v645
    %1231 = vmatprep.subr.mxu0 %v649
    %1232 = vmatpush1.msra.mxu0 %v648
    %1233 = vmatprep.subr.mxu0 0.0
    %1234 = vmatpush1.msra.mxu0 0.0
    %1235 = vmatprep.subr.mxu0 0.0
    %1236 = vmatpush1.msra.mxu0 0.0
    %1237 = vmatprep.subr.mxu0 0.0
    %1238 = vmatpush1.msra.mxu0 0.0
    %1239 = vmatprep.subr.mxu0 0.0
    %1240 = vmatpush1.msra.mxu0 0.0
    %1241 = vmatprep.subr.mxu0 0.0
    %1242 = vmatpush1.msra.mxu0 0.0
    %1243 = vmatprep.subr.mxu0 0.0
    %1244 = vmatpush1.msra.mxu0 0.0
    %1245 = vmatprep.subr.mxu0 0.0
    %1246 = vmatpush1.msra.mxu0 0.0
    %1247 = vmatprep.subr.mxu0 0.0
    %1248 = vmatpush1.msra.mxu0 0.0
    %1249 = vmatprep.subr.mxu0 0.0
    %1250 = vmatpush1.msra.mxu0 0.0
    %1251 = vmatprep.subr.mxu0 0.0
    %1252 = vmatpush1.msra.mxu0 0.0
    %1253 = vmatprep.subr.mxu0 0.0
    %1254 = vmatpush1.msra.mxu0 0.0
    %1255 = vmatprep.subr.mxu0 0.0
    %1256 = vmatpush1.msra.mxu0 0.0
    %1257 = vmatprep.subr.mxu0 0.0
    %1258 = vmatpush1.msra.mxu0 0.0
    %1259 = vmatprep.subr.mxu0 0.0
    %1260 = vmatpush1.msra.mxu0 0.0
    %1261 = vmatprep.subr.mxu0 0.0
    %1262 = vmatpush1.msra.mxu0 0.0
    %1263 = vmatprep.subr.mxu0 0.0
    %1264 = vmatpush1.msra.mxu0 0.0
    %1265 = vmatprep.mubr.f32.mxu0 0.0
    %1266 = vmatmul.mubr.f32.gmra.mrb[0].mxu0 %v1199
    %v1267 = vpop.f32.mrb[0].mxu0
    %v1268 = vadd.f32 %v656, %v1267
    %v1269 = vpop.f32.mrb[0].mxu0
    %v1270 = vadd.f32 %v660, %v1269
    %1271 = vdwg.mxu0
    %1272 = vmatprep.subr.mxu0 0.0
    %1273 = vmatpush1.msra.mxu0 %v605
    %1274 = vmatprep.subr.mxu0 0.0
    %1275 = vmatpush1.msra.mxu0 %v608
    %1276 = vmatprep.subr.mxu0 0.0
    %1277 = vmatpush1.msra.mxu0 %v611
    %1278 = vmatprep.subr.mxu0 0.0
    %1279 = vmatpush1.msra.mxu0 %v614
    %1280 = vmatprep.subr.mxu0 0.0
    %1281 = vmatpush1.msra.mxu0 %v617
    %1282 = vmatprep.subr.mxu0 0.0
    %1283 = vmatpush1.msra.mxu0 %v620
    %1284 = vmatprep.subr.mxu0 0.0
    %1285 = vmatpush1.msra.mxu0 %v623
    %1286 = vmatprep.subr.mxu0 0.0
    %1287 = vmatpush1.msra.mxu0 %v626
    %1288 = vmatprep.subr.mxu0 0.0
    %1289 = vmatpush1.msra.mxu0 %v629
    %1290 = vmatprep.subr.mxu0 0.0
    %1291 = vmatpush1.msra.mxu0 %v632
    %1292 = vmatprep.subr.mxu0 0.0
    %1293 = vmatpush1.msra.mxu0 %v635
    %1294 = vmatprep.subr.mxu0 0.0
    %1295 = vmatpush1.msra.mxu0 %v638
    %1296 = vmatprep.subr.mxu0 0.0
    %1297 = vmatpush1.msra.mxu0 %v641
    %1298 = vmatprep.subr.mxu0 0.0
    %1299 = vmatpush1.msra.mxu0 %v644
    %1300 = vmatprep.subr.mxu0 0.0
    %1301 = vmatpush1.msra.mxu0 %v647
    %1302 = vmatprep.subr.mxu0 0.0
    %1303 = vmatpush1.msra.mxu0 %v650
    %1304 = vmatprep.subr.mxu0 0.0
    %1305 = vmatpush1.msra.mxu0 0.0
    %1306 = vmatprep.subr.mxu0 0.0
    %1307 = vmatpush1.msra.mxu0 0.0
    %1308 = vmatprep.subr.mxu0 0.0
    %1309 = vmatpush1.msra.mxu0 0.0
    %1310 = vmatprep.subr.mxu0 0.0
    %1311 = vmatpush1.msra.mxu0 0.0
    %1312 = vmatprep.subr.mxu0 0.0
    %1313 = vmatpush1.msra.mxu0 0.0
    %1314 = vmatprep.subr.mxu0 0.0
    %1315 = vmatpush1.msra.mxu0 0.0
    %1316 = vmatprep.subr.mxu0 0.0
    %1317 = vmatpush1.msra.mxu0 0.0
    %1318 = vmatprep.subr.mxu0 0.0
    %1319 = vmatpush1.msra.mxu0 0.0
    %1320 = vmatprep.subr.mxu0 0.0
    %1321 = vmatpush1.msra.mxu0 0.0
    %1322 = vmatprep.subr.mxu0 0.0
    %1323 = vmatpush1.msra.mxu0 0.0
    %1324 = vmatprep.subr.mxu0 0.0
    %1325 = vmatpush1.msra.mxu0 0.0
    %1326 = vmatprep.subr.mxu0 0.0
    %1327 = vmatpush1.msra.mxu0 0.0
    %1328 = vmatprep.subr.mxu0 0.0
    %1329 = vmatpush1.msra.mxu0 0.0
    %1330 = vmatprep.subr.mxu0 0.0
    %1331 = vmatpush1.msra.mxu0 0.0
    %1332 = vmatprep.subr.mxu0 0.0
    %1333 = vmatpush1.msra.mxu0 0.0
    %1334 = vmatprep.subr.mxu0 0.0
    %1335 = vmatpush1.msra.mxu0 0.0
    %1336 = vmatprep.mubr.f32.mxu0 0.0
    %1337 = vmatmul.mubr.f32.gmra.mrb[0].mxu0 %v1199
    %v1338 = vpop.f32.mrb[0].mxu0
    %v1339 = vadd.f32 %v664, %v1338
    %v1340 = vpop.f32.mrb[0].mxu0
    %1341 = vdwg.mxu0
    %v1343 = vrot.slane %v1268, 2
    %v1345 = vadd.f32 %v1195, %v1343
    %v1346 = vxor.u32 %v1345, 2147483648
    %v1347 = vmul.f32 %v1346, 1.442695
    %v1348 = vpow.pop %v1347
    %v1349 = vadd.f32 %v1348, 1.0
    %v1350 = vrcp.pop %v1349
    %v1351 = vmul.f32 1.0, %v1350
    %v1353 = vrot.slane %v1270, 2
    %v1355 = vadd.f32 %v1196, %v1353
    %v1356 = vxor.u32 %v1355, 2147483648
    %v1357 = vmul.f32 %v1356, 1.442695
    %v1358 = vpow.pop %v1357
    %v1359 = vadd.f32 %v1358, 1.0
    %v1360 = vrcp.pop %v1359
    %v1361 = vmul.f32 1.0, %v1360
    %v1363 = vrot.slane %v1339, 2
    %v1365 = vmul.f32 %v1351, %v1363
    %v1366 = vadd.f32 %v1197, %v1365
    %v1367 = vtanh.pop %v1366
    %v1368 = vsub.f32 1.0, %v1361
    %v1369 = vmul.f32 %v1368, %v1367
    %v1370 = vrot.slane %v1192, 6
    %v1372 = vmul.f32 %v1361, %v1370
    %v1373 = vadd.f32 %v1369, %v1372
    %1374 = vst [vmem:[#allocation4 - $0x3] sm:$0x40] %v1373
    %1375 = vst [vmem:[#allocation4 + $0x4] sm:$0x80] %v1373
    %v1376 = vld [vmem:[#allocation3 + $0x18] sm:$0x3]
    %v1377 = vld [vmem:[#allocation3 + $0x20] sm:$0x3]
    %v1378 = vld [vmem:[#allocation3 + $0x28] sm:$0x3]
    %v1380 = vrot.slane %v1373, 6
    %1382 = vmatprep.subr.mxu0 %v604
    %1383 = vmatpush1.msra.mxu0 %v603
    %1384 = vmatprep.subr.mxu0 %v607
    %1385 = vmatpush1.msra.mxu0 %v606
    %1386 = vmatprep.subr.mxu0 %v610
    %1387 = vmatpush1.msra.mxu0 %v609
    %1388 = vmatprep.subr.mxu0 %v613
    %1389 = vmatpush1.msra.mxu0 %v612
    %1390 = vmatprep.subr.mxu0 %v616
    %1391 = vmatpush1.msra.mxu0 %v615
    %1392 = vmatprep.subr.mxu0 %v619
    %1393 = vmatpush1.msra.mxu0 %v618
    %1394 = vmatprep.subr.mxu0 %v622
    %1395 = vmatpush1.msra.mxu0 %v621
    %1396 = vmatprep.subr.mxu0 %v625
    %1397 = vmatpush1.msra.mxu0 %v624
    %1398 = vmatprep.subr.mxu0 %v628
    %1399 = vmatpush1.msra.mxu0 %v627
    %1400 = vmatprep.subr.mxu0 %v631
    %1401 = vmatpush1.msra.mxu0 %v630
    %1402 = vmatprep.subr.mxu0 %v634
    %1403 = vmatpush1.msra.mxu0 %v633
    %1404 = vmatprep.subr.mxu0 %v637
    %1405 = vmatpush1.msra.mxu0 %v636
    %1406 = vmatprep.subr.mxu0 %v640
    %1407 = vmatpush1.msra.mxu0 %v639
    %1408 = vmatprep.subr.mxu0 %v643
    %1409 = vmatpush1.msra.mxu0 %v642
    %1410 = vmatprep.subr.mxu0 %v646
    %1411 = vmatpush1.msra.mxu0 %v645
    %1412 = vmatprep.subr.mxu0 %v649
    %1413 = vmatpush1.msra.mxu0 %v648
    %1414 = vmatprep.subr.mxu0 0.0
    %1415 = vmatpush1.msra.mxu0 0.0
    %1416 = vmatprep.subr.mxu0 0.0
    %1417 = vmatpush1.msra.mxu0 0.0
    %1418 = vmatprep.subr.mxu0 0.0
    %1419 = vmatpush1.msra.mxu0 0.0
    %1420 = vmatprep.subr.mxu0 0.0
    %1421 = vmatpush1.msra.mxu0 0.0
    %1422 = vmatprep.subr.mxu0 0.0
    %1423 = vmatpush1.msra.mxu0 0.0
    %1424 = vmatprep.subr.mxu0 0.0
    %1425 = vmatpush1.msra.mxu0 0.0
    %1426 = vmatprep.subr.mxu0 0.0
    %1427 = vmatpush1.msra.mxu0 0.0
    %1428 = vmatprep.subr.mxu0 0.0
    %1429 = vmatpush1.msra.mxu0 0.0
    %1430 = vmatprep.subr.mxu0 0.0
    %1431 = vmatpush1.msra.mxu0 0.0
    %1432 = vmatprep.subr.mxu0 0.0
    %1433 = vmatpush1.msra.mxu0 0.0
    %1434 = vmatprep.subr.mxu0 0.0
    %1435 = vmatpush1.msra.mxu0 0.0
    %1436 = vmatprep.subr.mxu0 0.0
    %1437 = vmatpush1.msra.mxu0 0.0
    %1438 = vmatprep.subr.mxu0 0.0
    %1439 = vmatpush1.msra.mxu0 0.0
    %1440 = vmatprep.subr.mxu0 0.0
    %1441 = vmatpush1.msra.mxu0 0.0
    %1442 = vmatprep.subr.mxu0 0.0
    %1443 = vmatpush1.msra.mxu0 0.0
    %1444 = vmatprep.subr.mxu0 0.0
    %1445 = vmatpush1.msra.mxu0 0.0
    %1446 = vmatprep.mubr.f32.mxu0 0.0
    %1447 = vmatmul.mubr.f32.gmra.mrb[0].mxu0 %v1380
    %v1448 = vpop.f32.mrb[0].mxu0
    %v1449 = vadd.f32 %v656, %v1448
    %v1450 = vpop.f32.mrb[0].mxu0
    %v1451 = vadd.f32 %v660, %v1450
    %1452 = vdwg.mxu0
    %1453 = vmatprep.subr.mxu0 0.0
    %1454 = vmatpush1.msra.mxu0 %v605
    %1455 = vmatprep.subr.mxu0 0.0
    %1456 = vmatpush1.msra.mxu0 %v608
    %1457 = vmatprep.subr.mxu0 0.0
    %1458 = vmatpush1.msra.mxu0 %v611
    %1459 = vmatprep.subr.mxu0 0.0
    %1460 = vmatpush1.msra.mxu0 %v614
    %1461 = vmatprep.subr.mxu0 0.0
    %1462 = vmatpush1.msra.mxu0 %v617
    %1463 = vmatprep.subr.mxu0 0.0
    %1464 = vmatpush1.msra.mxu0 %v620
    %1465 = vmatprep.subr.mxu0 0.0
    %1466 = vmatpush1.msra.mxu0 %v623
    %1467 = vmatprep.subr.mxu0 0.0
    %1468 = vmatpush1.msra.mxu0 %v626
    %1469 = vmatprep.subr.mxu0 0.0
    %1470 = vmatpush1.msra.mxu0 %v629
    %1471 = vmatprep.subr.mxu0 0.0
    %1472 = vmatpush1.msra.mxu0 %v632
    %1473 = vmatprep.subr.mxu0 0.0
    %1474 = vmatpush1.msra.mxu0 %v635
    %1475 = vmatprep.subr.mxu0 0.0
    %1476 = vmatpush1.msra.mxu0 %v638
    %1477 = vmatprep.subr.mxu0 0.0
    %1478 = vmatpush1.msra.mxu0 %v641
    %1479 = vmatprep.subr.mxu0 0.0
    %1480 = vmatpush1.msra.mxu0 %v644
    %1481 = vmatprep.subr.mxu0 0.0
    %1482 = vmatpush1.msra.mxu0 %v647
    %1483 = vmatprep.subr.mxu0 0.0
    %1484 = vmatpush1.msra.mxu0 %v650
    %1485 = vmatprep.subr.mxu0 0.0
    %1486 = vmatpush1.msra.mxu0 0.0
    %1487 = vmatprep.subr.mxu0 0.0
    %1488 = vmatpush1.msra.mxu0 0.0
    %1489 = vmatprep.subr.mxu0 0.0
    %1490 = vmatpush1.msra.mxu0 0.0
    %1491 = vmatprep.subr.mxu0 0.0
    %1492 = vmatpush1.msra.mxu0 0.0
    %1493 = vmatprep.subr.mxu0 0.0
    %1494 = vmatpush1.msra.mxu0 0.0
    %1495 = vmatprep.subr.mxu0 0.0
    %1496 = vmatpush1.msra.mxu0 0.0
    %1497 = vmatprep.subr.mxu0 0.0
    %1498 = vmatpush1.msra.mxu0 0.0
    %1499 = vmatprep.subr.mxu0 0.0
    %1500 = vmatpush1.msra.mxu0 0.0
    %1501 = vmatprep.subr.mxu0 0.0
    %1502 = vmatpush1.msra.mxu0 0.0
    %1503 = vmatprep.subr.mxu0 0.0
    %1504 = vmatpush1.msra.mxu0 0.0
    %1505 = vmatprep.subr.mxu0 0.0
    %1506 = vmatpush1.msra.mxu0 0.0
    %1507 = vmatprep.subr.mxu0 0.0
    %1508 = vmatpush1.msra.mxu0 0.0
    %1509 = vmatprep.subr.mxu0 0.0
    %1510 = vmatpush1.msra.mxu0 0.0
    %1511 = vmatprep.subr.mxu0 0.0
    %1512 = vmatpush1.msra.mxu0 0.0
    %1513 = vmatprep.subr.mxu0 0.0
    %1514 = vmatpush1.msra.mxu0 0.0
    %1515 = vmatprep.subr.mxu0 0.0
    %1516 = vmatpush1.msra.mxu0 0.0
    %1517 = vmatprep.mubr.f32.mxu0 0.0
    %1518 = vmatmul.mubr.f32.gmra.mrb[0].mxu0 %v1380
    %v1519 = vpop.f32.mrb[0].mxu0
    %v1520 = vadd.f32 %v664, %v1519
    %v1521 = vpop.f32.mrb[0].mxu0
    %1522 = vdwg.mxu0
    %v1523 = vadd.f32 %v1376, %v1449
    %v1524 = vxor.u32 %v1523, 2147483648
    %v1525 = vmul.f32 %v1524, 1.442695
    %v1526 = vpow.pop %v1525
    %v1527 = vadd.f32 %v1526, 1.0
    %v1528 = vrcp.pop %v1527
    %v1529 = vmul.f32 1.0, %v1528
    %v1530 = vadd.f32 %v1377, %v1451
    %v1531 = vxor.u32 %v1530, 2147483648
    %v1532 = vmul.f32 %v1531, 1.442695
    %v1533 = vpow.pop %v1532
    %v1534 = vadd.f32 %v1533, 1.0
    %v1535 = vrcp.pop %v1534
    %v1536 = vmul.f32 1.0, %v1535
    %v1537 = vmul.f32 %v1529, %v1520
    %v1538 = vadd.f32 %v1378, %v1537
    %v1539 = vtanh.pop %v1538
    %v1540 = vsub.f32 1.0, %v1536
    %v1541 = vmul.f32 %v1540, %v1539
    %v1542 = vmul.f32 %v1536, %v1380
    %v1543 = vadd.f32 %v1541, %v1542
    %1544 = vst [vmem:[#allocation4 + $0x4] sm:$0x1] %v1543
    %1545 = vst [vmem:[#allocation4 + $0xb] sm:$0x2] %v1543
    %v1546 = vld [vmem:[#allocation3 + $0x18] sm:$0xc]
    %v1547 = vld [vmem:[#allocation3 + $0x20] sm:$0xc]
    %v1548 = vld [vmem:[#allocation3 + $0x28] sm:$0xc]
    %1549 = vmatprep.subr.mxu0 %v604
    %1550 = vmatpush1.msra.mxu0 %v603
    %1551 = vmatprep.subr.mxu0 %v607
    %1552 = vmatpush1.msra.mxu0 %v606
    %1553 = vmatprep.subr.mxu0 %v610
    %1554 = vmatpush1.msra.mxu0 %v609
    %1555 = vmatprep.subr.mxu0 %v613
    %1556 = vmatpush1.msra.mxu0 %v612
    %1557 = vmatprep.subr.mxu0 %v616
    %1558 = vmatpush1.msra.mxu0 %v615
    %1559 = vmatprep.subr.mxu0 %v619
    %1560 = vmatpush1.msra.mxu0 %v618
    %1561 = vmatprep.subr.mxu0 %v622
    %1562 = vmatpush1.msra.mxu0 %v621
    %1563 = vmatprep.subr.mxu0 %v625
    %1564 = vmatpush1.msra.mxu0 %v624
    %1565 = vmatprep.subr.mxu0 %v628
    %1566 = vmatpush1.msra.mxu0 %v627
    %1567 = vmatprep.subr.mxu0 %v631
    %1568 = vmatpush1.msra.mxu0 %v630
    %1569 = vmatprep.subr.mxu0 %v634
    %1570 = vmatpush1.msra.mxu0 %v633
    %1571 = vmatprep.subr.mxu0 %v637
    %1572 = vmatpush1.msra.mxu0 %v636
    %1573 = vmatprep.subr.mxu0 %v640
    %1574 = vmatpush1.msra.mxu0 %v639
    %1575 = vmatprep.subr.mxu0 %v643
    %1576 = vmatpush1.msra.mxu0 %v642
    %1577 = vmatprep.subr.mxu0 %v646
    %1578 = vmatpush1.msra.mxu0 %v645
    %1579 = vmatprep.subr.mxu0 %v649
    %1580 = vmatpush1.msra.mxu0 %v648
    %1581 = vmatprep.subr.mxu0 0.0
    %1582 = vmatpush1.msra.mxu0 0.0
    %1583 = vmatprep.subr.mxu0 0.0
    %1584 = vmatpush1.msra.mxu0 0.0
    %1585 = vmatprep.subr.mxu0 0.0
    %1586 = vmatpush1.msra.mxu0 0.0
    %1587 = vmatprep.subr.mxu0 0.0
    %1588 = vmatpush1.msra.mxu0 0.0
    %1589 = vmatprep.subr.mxu0 0.0
    %1590 = vmatpush1.msra.mxu0 0.0
    %1591 = vmatprep.subr.mxu0 0.0
    %1592 = vmatpush1.msra.mxu0 0.0
    %1593 = vmatprep.subr.mxu0 0.0
    %1594 = vmatpush1.msra.mxu0 0.0
    %1595 = vmatprep.subr.mxu0 0.0
    %1596 = vmatpush1.msra.mxu0 0.0
    %1597 = vmatprep.subr.mxu0 0.0
    %1598 = vmatpush1.msra.mxu0 0.0
    %1599 = vmatprep.subr.mxu0 0.0
    %1600 = vmatpush1.msra.mxu0 0.0
    %1601 = vmatprep.subr.mxu0 0.0
    %1602 = vmatpush1.msra.mxu0 0.0
    %1603 = vmatprep.subr.mxu0 0.0
    %1604 = vmatpush1.msra.mxu0 0.0
    %1605 = vmatprep.subr.mxu0 0.0
    %1606 = vmatpush1.msra.mxu0 0.0
    %1607 = vmatprep.subr.mxu0 0.0
    %1608 = vmatpush1.msra.mxu0 0.0
    %1609 = vmatprep.subr.mxu0 0.0
    %1610 = vmatpush1.msra.mxu0 0.0
    %1611 = vmatprep.subr.mxu0 0.0
    %1612 = vmatpush1.msra.mxu0 0.0
    %1613 = vmatprep.mubr.f32.mxu0 0.0
    %1614 = vmatmul.mubr.f32.gmra.mrb[0].mxu0 %v1543
    %v1615 = vpop.f32.mrb[0].mxu0
    %v1616 = vadd.f32 %v656, %v1615
    %v1617 = vpop.f32.mrb[0].mxu0
    %v1618 = vadd.f32 %v660, %v1617
    %1619 = vdwg.mxu0
    %1620 = vmatprep.subr.mxu0 0.0
    %1621 = vmatpush1.msra.mxu0 %v605
    %1622 = vmatprep.subr.mxu0 0.0
    %1623 = vmatpush1.msra.mxu0 %v608
    %1624 = vmatprep.subr.mxu0 0.0
    %1625 = vmatpush1.msra.mxu0 %v611
    %1626 = vmatprep.subr.mxu0 0.0
    %1627 = vmatpush1.msra.mxu0 %v614
    %1628 = vmatprep.subr.mxu0 0.0
    %1629 = vmatpush1.msra.mxu0 %v617
    %1630 = vmatprep.subr.mxu0 0.0
    %1631 = vmatpush1.msra.mxu0 %v620
    %1632 = vmatprep.subr.mxu0 0.0
    %1633 = vmatpush1.msra.mxu0 %v623
    %1634 = vmatprep.subr.mxu0 0.0
    %1635 = vmatpush1.msra.mxu0 %v626
    %1636 = vmatprep.subr.mxu0 0.0
    %1637 = vmatpush1.msra.mxu0 %v629
    %1638 = vmatprep.subr.mxu0 0.0
    %1639 = vmatpush1.msra.mxu0 %v632
    %1640 = vmatprep.subr.mxu0 0.0
    %1641 = vmatpush1.msra.mxu0 %v635
    %1642 = vmatprep.subr.mxu0 0.0
    %1643 = vmatpush1.msra.mxu0 %v638
    %1644 = vmatprep.subr.mxu0 0.0
    %1645 = vmatpush1.msra.mxu0 %v641
    %1646 = vmatprep.subr.mxu0 0.0
    %1647 = vmatpush1.msra.mxu0 %v644
    %1648 = vmatprep.subr.mxu0 0.0
    %1649 = vmatpush1.msra.mxu0 %v647
    %1650 = vmatprep.subr.mxu0 0.0
    %1651 = vmatpush1.msra.mxu0 %v650
    %1652 = vmatprep.subr.mxu0 0.0
    %1653 = vmatpush1.msra.mxu0 0.0
    %1654 = vmatprep.subr.mxu0 0.0
    %1655 = vmatpush1.msra.mxu0 0.0
    %1656 = vmatprep.subr.mxu0 0.0
    %1657 = vmatpush1.msra.mxu0 0.0
    %1658 = vmatprep.subr.mxu0 0.0
    %1659 = vmatpush1.msra.mxu0 0.0
    %1660 = vmatprep.subr.mxu0 0.0
    %1661 = vmatpush1.msra.mxu0 0.0
    %1662 = vmatprep.subr.mxu0 0.0
    %1663 = vmatpush1.msra.mxu0 0.0
    %1664 = vmatprep.subr.mxu0 0.0
    %1665 = vmatpush1.msra.mxu0 0.0
    %1666 = vmatprep.subr.mxu0 0.0
    %1667 = vmatpush1.msra.mxu0 0.0
    %1668 = vmatprep.subr.mxu0 0.0
    %1669 = vmatpush1.msra.mxu0 0.0
    %1670 = vmatprep.subr.mxu0 0.0
    %1671 = vmatpush1.msra.mxu0 0.0
    %1672 = vmatprep.subr.mxu0 0.0
    %1673 = vmatpush1.msra.mxu0 0.0
    %1674 = vmatprep.subr.mxu0 0.0
    %1675 = vmatpush1.msra.mxu0 0.0
    %1676 = vmatprep.subr.mxu0 0.0
    %1677 = vmatpush1.msra.mxu0 0.0
    %1678 = vmatprep.subr.mxu0 0.0
    %1679 = vmatpush1.msra.mxu0 0.0
    %1680 = vmatprep.subr.mxu0 0.0
    %1681 = vmatpush1.msra.mxu0 0.0
    %1682 = vmatprep.subr.mxu0 0.0
    %1683 = vmatpush1.msra.mxu0 0.0
    %1684 = vmatprep.mubr.f32.mxu0 0.0
    %1685 = vmatmul.mubr.f32.gmra.mrb[0].mxu0 %v1543
    %v1686 = vpop.f32.mrb[0].mxu0
    %v1687 = vadd.f32 %v664, %v1686
    %v1688 = vpop.f32.mrb[0].mxu0
    %1689 = vdwg.mxu0
    %v1691 = vrot.slane %v1616, 6
    %v1693 = vadd.f32 %v1546, %v1691
    %v1694 = vxor.u32 %v1693, 2147483648
    %v1695 = vmul.f32 %v1694, 1.442695
    %v1696 = vpow.pop %v1695
    %v1697 = vadd.f32 %v1696, 1.0
    %v1698 = vrcp.pop %v1697
    %v1699 = vmul.f32 1.0, %v1698
    %v1701 = vrot.slane %v1618, 6
    %v1703 = vadd.f32 %v1547, %v1701
    %v1704 = vxor.u32 %v1703, 2147483648
    %v1705 = vmul.f32 %v1704, 1.442695
    %v1706 = vpow.pop %v1705
    %v1707 = vadd.f32 %v1706, 1.0
    %v1708 = vrcp.pop %v1707
    %v1709 = vmul.f32 1.0, %v1708
    %v1711 = vrot.slane %v1687, 6
    %v1713 = vmul.f32 %v1699, %v1711
    %v1714 = vadd.f32 %v1548, %v1713
    %v1715 = vtanh.pop %v1714
    %v1716 = vsub.f32 1.0, %v1709
    %v1717 = vmul.f32 %v1716, %v1715
    %v1719 = vrot.slane %v1543, 6
    %v1721 = vmul.f32 %v1709, %v1719
    %v1722 = vadd.f32 %v1717, %v1721
    %1723 = vst [vmem:[#allocation4 + $0x3] sm:$0x4] %v1722
    %1724 = vst [vmem:[#allocation4 + $0xa] sm:$0x8] %v1722
    %v1725 = vld [vmem:[#allocation3 + $0x18] sm:$0x30]
    %v1726 = vld [vmem:[#allocation3 + $0x20] sm:$0x30]
    %v1727 = vld [vmem:[#allocation3 + $0x28] sm:$0x30]
    %v1729 = vrot.slane %v1722, 2
    %1731 = vmatprep.subr.mxu0 %v604
    %1732 = vmatpush1.msra.mxu0 %v603
    %1733 = vmatprep.subr.mxu0 %v607
    %1734 = vmatpush1.msra.mxu0 %v606
    %1735 = vmatprep.subr.mxu0 %v610
    %1736 = vmatpush1.msra.mxu0 %v609
    %1737 = vmatprep.subr.mxu0 %v613
    %1738 = vmatpush1.msra.mxu0 %v612
    %1739 = vmatprep.subr.mxu0 %v616
    %1740 = vmatpush1.msra.mxu0 %v615
    %1741 = vmatprep.subr.mxu0 %v619
    %1742 = vmatpush1.msra.mxu0 %v618
    %1743 = vmatprep.subr.mxu0 %v622
    %1744 = vmatpush1.msra.mxu0 %v621
    %1745 = vmatprep.subr.mxu0 %v625
    %1746 = vmatpush1.msra.mxu0 %v624
    %1747 = vmatprep.subr.mxu0 %v628
    %1748 = vmatpush1.msra.mxu0 %v627
    %1749 = vmatprep.subr.mxu0 %v631
    %1750 = vmatpush1.msra.mxu0 %v630
    %1751 = vmatprep.subr.mxu0 %v634
    %1752 = vmatpush1.msra.mxu0 %v633
    %1753 = vmatprep.subr.mxu0 %v637
    %1754 = vmatpush1.msra.mxu0 %v636
    %1755 = vmatprep.subr.mxu0 %v640
    %1756 = vmatpush1.msra.mxu0 %v639
    %1757 = vmatprep.subr.mxu0 %v643
    %1758 = vmatpush1.msra.mxu0 %v642
    %1759 = vmatprep.subr.mxu0 %v646
    %1760 = vmatpush1.msra.mxu0 %v645
    %1761 = vmatprep.subr.mxu0 %v649
    %1762 = vmatpush1.msra.mxu0 %v648
    %1763 = vmatprep.subr.mxu0 0.0
    %1764 = vmatpush1.msra.mxu0 0.0
    %1765 = vmatprep.subr.mxu0 0.0
    %1766 = vmatpush1.msra.mxu0 0.0
    %1767 = vmatprep.subr.mxu0 0.0
    %1768 = vmatpush1.msra.mxu0 0.0
    %1769 = vmatprep.subr.mxu0 0.0
    %1770 = vmatpush1.msra.mxu0 0.0
    %1771 = vmatprep.subr.mxu0 0.0
    %1772 = vmatpush1.msra.mxu0 0.0
    %1773 = vmatprep.subr.mxu0 0.0
    %1774 = vmatpush1.msra.mxu0 0.0
    %1775 = vmatprep.subr.mxu0 0.0
    %1776 = vmatpush1.msra.mxu0 0.0
    %1777 = vmatprep.subr.mxu0 0.0
    %1778 = vmatpush1.msra.mxu0 0.0
    %1779 = vmatprep.subr.mxu0 0.0
    %1780 = vmatpush1.msra.mxu0 0.0
    %1781 = vmatprep.subr.mxu0 0.0
    %1782 = vmatpush1.msra.mxu0 0.0
    %1783 = vmatprep.subr.mxu0 0.0
    %1784 = vmatpush1.msra.mxu0 0.0
    %1785 = vmatprep.subr.mxu0 0.0
    %1786 = vmatpush1.msra.mxu0 0.0
    %1787 = vmatprep.subr.mxu0 0.0
    %1788 = vmatpush1.msra.mxu0 0.0
    %1789 = vmatprep.subr.mxu0 0.0
    %1790 = vmatpush1.msra.mxu0 0.0
    %1791 = vmatprep.subr.mxu0 0.0
    %1792 = vmatpush1.msra.mxu0 0.0
    %1793 = vmatprep.subr.mxu0 0.0
    %1794 = vmatpush1.msra.mxu0 0.0
    %1795 = vmatprep.mubr.f32.mxu0 0.0
    %1796 = vmatmul.mubr.f32.gmra.mrb[0].mxu0 %v1729
    %v1797 = vpop.f32.mrb[0].mxu0
    %v1798 = vadd.f32 %v656, %v1797
    %v1799 = vpop.f32.mrb[0].mxu0
    %v1800 = vadd.f32 %v660, %v1799
    %1801 = vdwg.mxu0
    %1802 = vmatprep.subr.mxu0 0.0
    %1803 = vmatpush1.msra.mxu0 %v605
    %1804 = vmatprep.subr.mxu0 0.0
    %1805 = vmatpush1.msra.mxu0 %v608
    %1806 = vmatprep.subr.mxu0 0.0
    %1807 = vmatpush1.msra.mxu0 %v611
    %1808 = vmatprep.subr.mxu0 0.0
    %1809 = vmatpush1.msra.mxu0 %v614
    %1810 = vmatprep.subr.mxu0 0.0
    %1811 = vmatpush1.msra.mxu0 %v617
    %1812 = vmatprep.subr.mxu0 0.0
    %1813 = vmatpush1.msra.mxu0 %v620
    %1814 = vmatprep.subr.mxu0 0.0
    %1815 = vmatpush1.msra.mxu0 %v623
    %1816 = vmatprep.subr.mxu0 0.0
    %1817 = vmatpush1.msra.mxu0 %v626
    %1818 = vmatprep.subr.mxu0 0.0
    %1819 = vmatpush1.msra.mxu0 %v629
    %1820 = vmatprep.subr.mxu0 0.0
    %1821 = vmatpush1.msra.mxu0 %v632
    %1822 = vmatprep.subr.mxu0 0.0
    %1823 = vmatpush1.msra.mxu0 %v635
    %1824 = vmatprep.subr.mxu0 0.0
    %1825 = vmatpush1.msra.mxu0 %v638
    %1826 = vmatprep.subr.mxu0 0.0
    %1827 = vmatpush1.msra.mxu0 %v641
    %1828 = vmatprep.subr.mxu0 0.0
    %1829 = vmatpush1.msra.mxu0 %v644
    %1830 = vmatprep.subr.mxu0 0.0
    %1831 = vmatpush1.msra.mxu0 %v647
    %1832 = vmatprep.subr.mxu0 0.0
    %1833 = vmatpush1.msra.mxu0 %v650
    %1834 = vmatprep.subr.mxu0 0.0
    %1835 = vmatpush1.msra.mxu0 0.0
    %1836 = vmatprep.subr.mxu0 0.0
    %1837 = vmatpush1.msra.mxu0 0.0
    %1838 = vmatprep.subr.mxu0 0.0
    %1839 = vmatpush1.msra.mxu0 0.0
    %1840 = vmatprep.subr.mxu0 0.0
    %1841 = vmatpush1.msra.mxu0 0.0
    %1842 = vmatprep.subr.mxu0 0.0
    %1843 = vmatpush1.msra.mxu0 0.0
    %1844 = vmatprep.subr.mxu0 0.0
    %1845 = vmatpush1.msra.mxu0 0.0
    %1846 = vmatprep.subr.mxu0 0.0
    %1847 = vmatpush1.msra.mxu0 0.0
    %1848 = vmatprep.subr.mxu0 0.0
    %1849 = vmatpush1.msra.mxu0 0.0
    %1850 = vmatprep.subr.mxu0 0.0
    %1851 = vmatpush1.msra.mxu0 0.0
    %1852 = vmatprep.subr.mxu0 0.0
    %1853 = vmatpush1.msra.mxu0 0.0
    %1854 = vmatprep.subr.mxu0 0.0
    %1855 = vmatpush1.msra.mxu0 0.0
    %1856 = vmatprep.subr.mxu0 0.0
    %1857 = vmatpush1.msra.mxu0 0.0
    %1858 = vmatprep.subr.mxu0 0.0
    %1859 = vmatpush1.msra.mxu0 0.0
    %1860 = vmatprep.subr.mxu0 0.0
    %1861 = vmatpush1.msra.mxu0 0.0
    %1862 = vmatprep.subr.mxu0 0.0
    %1863 = vmatpush1.msra.mxu0 0.0
    %1864 = vmatprep.subr.mxu0 0.0
    %1865 = vmatpush1.msra.mxu0 0.0
    %1866 = vmatprep.mubr.f32.mxu0 0.0
    %1867 = vmatmul.mubr.f32.gmra.mrb[0].mxu0 %v1729
    %v1868 = vpop.f32.mrb[0].mxu0
    %v1869 = vadd.f32 %v664, %v1868
    %v1870 = vpop.f32.mrb[0].mxu0
    %1871 = vdwg.mxu0
    %v1873 = vrot.slane %v1798, 4
    %v1875 = vadd.f32 %v1725, %v1873
    %v1876 = vxor.u32 %v1875, 2147483648
    %v1877 = vmul.f32 %v1876, 1.442695
    %v1878 = vpow.pop %v1877
    %v1879 = vadd.f32 %v1878, 1.0
    %v1880 = vrcp.pop %v1879
    %v1881 = vmul.f32 1.0, %v1880
    %v1883 = vrot.slane %v1800, 4
    %v1885 = vadd.f32 %v1726, %v1883
    %v1886 = vxor.u32 %v1885, 2147483648
    %v1887 = vmul.f32 %v1886, 1.442695
    %v1888 = vpow.pop %v1887
    %v1889 = vadd.f32 %v1888, 1.0
    %v1890 = vrcp.pop %v1889
    %v1891 = vmul.f32 1.0, %v1890
    %v1893 = vrot.slane %v1869, 4
    %v1895 = vmul.f32 %v1881, %v1893
    %v1896 = vadd.f32 %v1727, %v1895
    %v1897 = vtanh.pop %v1896
    %v1898 = vsub.f32 1.0, %v1891
    %v1899 = vmul.f32 %v1898, %v1897
    %v1900 = vrot.slane %v1722, 6
    %v1902 = vmul.f32 %v1891, %v1900
    %v1903 = vadd.f32 %v1899, %v1902
    %1904 = vst [vmem:[#allocation4 + $0x2] sm:$0x10] %v1903
    %1905 = vst [vmem:[#allocation4 + $0x9] sm:$0x20] %v1903
    %v1906 = vld [vmem:[#allocation3 + $0x18] sm:$0xc0]
    %v1907 = vld [vmem:[#allocation3 + $0x20] sm:$0xc0]
    %v1908 = vld [vmem:[#allocation3 + $0x28] sm:$0xc0]
    %v1910 = vrot.slane %v1903, 4
    %1912 = vmatprep.subr.mxu0 %v604
    %1913 = vmatpush1.msra.mxu0 %v603
    %1914 = vmatprep.subr.mxu0 %v607
    %1915 = vmatpush1.msra.mxu0 %v606
    %1916 = vmatprep.subr.mxu0 %v610
    %1917 = vmatpush1.msra.mxu0 %v609
    %1918 = vmatprep.subr.mxu0 %v613
    %1919 = vmatpush1.msra.mxu0 %v612
    %1920 = vmatprep.subr.mxu0 %v616
    %1921 = vmatpush1.msra.mxu0 %v615
    %1922 = vmatprep.subr.mxu0 %v619
    %1923 = vmatpush1.msra.mxu0 %v618
    %1924 = vmatprep.subr.mxu0 %v622
    %1925 = vmatpush1.msra.mxu0 %v621
    %1926 = vmatprep.subr.mxu0 %v625
    %1927 = vmatpush1.msra.mxu0 %v624
    %1928 = vmatprep.subr.mxu0 %v628
    %1929 = vmatpush1.msra.mxu0 %v627
    %1930 = vmatprep.subr.mxu0 %v631
    %1931 = vmatpush1.msra.mxu0 %v630
    %1932 = vmatprep.subr.mxu0 %v634
    %1933 = vmatpush1.msra.mxu0 %v633
    %1934 = vmatprep.subr.mxu0 %v637
    %1935 = vmatpush1.msra.mxu0 %v636
    %1936 = vmatprep.subr.mxu0 %v640
    %1937 = vmatpush1.msra.mxu0 %v639
    %1938 = vmatprep.subr.mxu0 %v643
    %1939 = vmatpush1.msra.mxu0 %v642
    %1940 = vmatprep.subr.mxu0 %v646
    %1941 = vmatpush1.msra.mxu0 %v645
    %1942 = vmatprep.subr.mxu0 %v649
    %1943 = vmatpush1.msra.mxu0 %v648
    %1944 = vmatprep.subr.mxu0 0.0
    %1945 = vmatpush1.msra.mxu0 0.0
    %1946 = vmatprep.subr.mxu0 0.0
    %1947 = vmatpush1.msra.mxu0 0.0
    %1948 = vmatprep.subr.mxu0 0.0
    %1949 = vmatpush1.msra.mxu0 0.0
    %1950 = vmatprep.subr.mxu0 0.0
    %1951 = vmatpush1.msra.mxu0 0.0
    %1952 = vmatprep.subr.mxu0 0.0
    %1953 = vmatpush1.msra.mxu0 0.0
    %1954 = vmatprep.subr.mxu0 0.0
    %1955 = vmatpush1.msra.mxu0 0.0
    %1956 = vmatprep.subr.mxu0 0.0
    %1957 = vmatpush1.msra.mxu0 0.0
    %1958 = vmatprep.subr.mxu0 0.0
    %1959 = vmatpush1.msra.mxu0 0.0
    %1960 = vmatprep.subr.mxu0 0.0
    %1961 = vmatpush1.msra.mxu0 0.0
    %1962 = vmatprep.subr.mxu0 0.0
    %1963 = vmatpush1.msra.mxu0 0.0
    %1964 = vmatprep.subr.mxu0 0.0
    %1965 = vmatpush1.msra.mxu0 0.0
    %1966 = vmatprep.subr.mxu0 0.0
    %1967 = vmatpush1.msra.mxu0 0.0
    %1968 = vmatprep.subr.mxu0 0.0
    %1969 = vmatpush1.msra.mxu0 0.0
    %1970 = vmatprep.subr.mxu0 0.0
    %1971 = vmatpush1.msra.mxu0 0.0
    %1972 = vmatprep.subr.mxu0 0.0
    %1973 = vmatpush1.msra.mxu0 0.0
    %1974 = vmatprep.subr.mxu0 0.0
    %1975 = vmatpush1.msra.mxu0 0.0
    %1976 = vmatprep.mubr.f32.mxu0 0.0
    %1977 = vmatmul.mubr.f32.gmra.mrb[0].mxu0 %v1910
    %v1978 = vpop.f32.mrb[0].mxu0
    %v1979 = vadd.f32 %v656, %v1978
    %v1980 = vpop.f32.mrb[0].mxu0
    %v1981 = vadd.f32 %v660, %v1980
    %1982 = vdwg.mxu0
    %1983 = vmatprep.subr.mxu0 0.0
    %1984 = vmatpush1.msra.mxu0 %v605
    %1985 = vmatprep.subr.mxu0 0.0
    %1986 = vmatpush1.msra.mxu0 %v608
    %1987 = vmatprep.subr.mxu0 0.0
    %1988 = vmatpush1.msra.mxu0 %v611
    %1989 = vmatprep.subr.mxu0 0.0
    %1990 = vmatpush1.msra.mxu0 %v614
    %1991 = vmatprep.subr.mxu0 0.0
    %1992 = vmatpush1.msra.mxu0 %v617
    %1993 = vmatprep.subr.mxu0 0.0
    %1994 = vmatpush1.msra.mxu0 %v620
    %1995 = vmatprep.subr.mxu0 0.0
    %1996 = vmatpush1.msra.mxu0 %v623
    %1997 = vmatprep.subr.mxu0 0.0
    %1998 = vmatpush1.msra.mxu0 %v626
    %1999 = vmatprep.subr.mxu0 0.0
    %2000 = vmatpush1.msra.mxu0 %v629
    %2001 = vmatprep.subr.mxu0 0.0
    %2002 = vmatpush1.msra.mxu0 %v632
    %2003 = vmatprep.subr.mxu0 0.0
    %2004 = vmatpush1.msra.mxu0 %v635
    %2005 = vmatprep.subr.mxu0 0.0
    %2006 = vmatpush1.msra.mxu0 %v638
    %2007 = vmatprep.subr.mxu0 0.0
    %2008 = vmatpush1.msra.mxu0 %v641
    %2009 = vmatprep.subr.mxu0 0.0
    %2010 = vmatpush1.msra.mxu0 %v644
    %2011 = vmatprep.subr.mxu0 0.0
    %2012 = vmatpush1.msra.mxu0 %v647
    %2013 = vmatprep.subr.mxu0 0.0
    %2014 = vmatpush1.msra.mxu0 %v650
    %2015 = vmatprep.subr.mxu0 0.0
    %2016 = vmatpush1.msra.mxu0 0.0
    %2017 = vmatprep.subr.mxu0 0.0
    %2018 = vmatpush1.msra.mxu0 0.0
    %2019 = vmatprep.subr.mxu0 0.0
    %2020 = vmatpush1.msra.mxu0 0.0
    %2021 = vmatprep.subr.mxu0 0.0
    %2022 = vmatpush1.msra.mxu0 0.0
    %2023 = vmatprep.subr.mxu0 0.0
    %2024 = vmatpush1.msra.mxu0 0.0
    %2025 = vmatprep.subr.mxu0 0.0
    %2026 = vmatpush1.msra.mxu0 0.0
    %2027 = vmatprep.subr.mxu0 0.0
    %2028 = vmatpush1.msra.mxu0 0.0
    %2029 = vmatprep.subr.mxu0 0.0
    %2030 = vmatpush1.msra.mxu0 0.0
    %2031 = vmatprep.subr.mxu0 0.0
    %2032 = vmatpush1.msra.mxu0 0.0
    %2033 = vmatprep.subr.mxu0 0.0
    %2034 = vmatpush1.msra.mxu0 0.0
    %2035 = vmatprep.subr.mxu0 0.0
    %2036 = vmatpush1.msra.mxu0 0.0
    %2037 = vmatprep.subr.mxu0 0.0
    %2038 = vmatpush1.msra.mxu0 0.0
    %2039 = vmatprep.subr.mxu0 0.0
    %2040 = vmatpush1.msra.mxu0 0.0
    %2041 = vmatprep.subr.mxu0 0.0
    %2042 = vmatpush1.msra.mxu0 0.0
    %2043 = vmatprep.subr.mxu0 0.0
    %2044 = vmatpush1.msra.mxu0 0.0
    %2045 = vmatprep.subr.mxu0 0.0
    %2046 = vmatpush1.msra.mxu0 0.0
    %2047 = vmatprep.mubr.f32.mxu0 0.0
    %2048 = vmatmul.mubr.f32.gmra.mrb[0].mxu0 %v1910
    %v2049 = vpop.f32.mrb[0].mxu0
    %v2050 = vadd.f32 %v664, %v2049
    %v2051 = vpop.f32.mrb[0].mxu0
    %2052 = vdwg.mxu0
    %v2054 = vrot.slane %v1979, 2
    %v2056 = vadd.f32 %v1906, %v2054
    %v2057 = vxor.u32 %v2056, 2147483648
    %v2058 = vmul.f32 %v2057, 1.442695
    %v2059 = vpow.pop %v2058
    %v2060 = vadd.f32 %v2059, 1.0
    %v2061 = vrcp.pop %v2060
    %v2062 = vmul.f32 1.0, %v2061
    %v2064 = vrot.slane %v1981, 2
    %v2066 = vadd.f32 %v1907, %v2064
    %v2067 = vxor.u32 %v2066, 2147483648
    %v2068 = vmul.f32 %v2067, 1.442695
    %v2069 = vpow.pop %v2068
    %v2070 = vadd.f32 %v2069, 1.0
    %v2071 = vrcp.pop %v2070
    %v2072 = vmul.f32 1.0, %v2071
    %v2074 = vrot.slane %v2050, 2
    %v2076 = vmul.f32 %v2062, %v2074
    %v2077 = vadd.f32 %v1908, %v2076
    %v2078 = vtanh.pop %v2077
    %v2079 = vsub.f32 1.0, %v2072
    %v2080 = vmul.f32 %v2079, %v2078
    %v2081 = vrot.slane %v1903, 6
    %v2083 = vmul.f32 %v2072, %v2081
    %v2084 = vadd.f32 %v2080, %v2083
    %2085 = vst [vmem:[#allocation4 + $0x1] sm:$0x40] %v2084
    %2086 = vst [vmem:[#allocation4 + $0x8] sm:$0x80] %v2084
    %v2087 = vld [vmem:[#allocation4] sm:$0xff]
    %v2088 = vld [vmem:[#allocation4 + $0x8] sm:$0xff]
    %v2089 = vld [vmem:[#allocation13] sm:$0xff]
    %v2090 = vld [vmem:[#allocation13 + $0x8] sm:$0xff]
    %v2091 = vld [vmem:[#allocation13 + $0x10] sm:$0xff]
    %v2092 = vld [vmem:[#allocation13 + $0x18] sm:$0xff]
    %v2093 = vld [vmem:[#allocation13 + $0x20] sm:$0xff]
    %v2094 = vld [vmem:[#allocation13 + $0x28] sm:$0xff]
    %v2095 = vld [vmem:[#allocation13 + $0x30] sm:$0xff]
    %v2096 = vld [vmem:[#allocation13 + $0x38] sm:$0xff]
    %v2097 = vld [vmem:[#allocation13 + $0x40] sm:$0xff]
    %v2098 = vld [vmem:[#allocation13 + $0x48] sm:$0xff]
    %v2099 = vld [vmem:[#allocation13 + $0x50] sm:$0xff]
    %v2100 = vld [vmem:[#allocation13 + $0x58] sm:$0xff]
    %v2101 = vld [vmem:[#allocation13 + $0x60] sm:$0xff]
    %v2102 = vld [vmem:[#allocation13 + $0x68] sm:$0xff]
    %v2103 = vld [vmem:[#allocation13 + $0x70] sm:$0xff]
    %v2104 = vld [vmem:[#allocation13 + $0x78] sm:$0xff]
    %v2105 = vld [vmem:[#allocation13 + $0x80] sm:$0xff]
    %v2106 = vld [vmem:[#allocation13 + $0x88] sm:$0xff]
    %v2107 = vld [vmem:[#allocation13 + $0x90] sm:$0xff]
    %v2108 = vld [vmem:[#allocation13 + $0x98] sm:$0xff]
    %v2109 = vld [vmem:[#allocation13 + $0xa0] sm:$0xff]
    %v2110 = vld [vmem:[#allocation13 + $0xa8] sm:$0xff]
    %v2111 = vld [vmem:[#allocation13 + $0xb0] sm:$0xff]
    %v2112 = vld [vmem:[#allocation13 + $0xb8] sm:$0xff]
    %v2113 = vld [vmem:[#allocation13 + $0xc0] sm:$0xff]
    %v2114 = vld [vmem:[#allocation13 + $0xc8] sm:$0xff]
    %v2115 = vld [vmem:[#allocation13 + $0xd0] sm:$0xff]
    %v2116 = vld [vmem:[#allocation13 + $0xd8] sm:$0xff]
    %v2117 = vld [vmem:[#allocation13 + $0xe0] sm:$0xff]
    %v2118 = vld [vmem:[#allocation13 + $0xe8] sm:$0xff]
    %v2119 = vld [vmem:[#allocation13 + $0xf0] sm:$0xff]
    %v2120 = vld [vmem:[#allocation13 + $0xf8] sm:$0xff]
    %v2121 = vld [vmem:[#allocation13 + $0x100] sm:$0xff]
    %v2122 = vld [vmem:[#allocation13 + $0x108] sm:$0xff]
    %v2123 = vld [vmem:[#allocation13 + $0x110] sm:$0xff]
    %v2124 = vld [vmem:[#allocation13 + $0x118] sm:$0xff]
    %v2125 = vld [vmem:[#allocation13 + $0x120] sm:$0xff]
    %v2126 = vld [vmem:[#allocation13 + $0x128] sm:$0xff]
    %v2127 = vld [vmem:[#allocation13 + $0x130] sm:$0xff]
    %v2128 = vld [vmem:[#allocation13 + $0x138] sm:$0xff]
    %v2129 = vld [vmem:[#allocation13 + $0x140] sm:$0xff]
    %v2130 = vld [vmem:[#allocation13 + $0x148] sm:$0xff]
    %v2131 = vld [vmem:[#allocation13 + $0x150] sm:$0xff]
    %v2132 = vld [vmem:[#allocation13 + $0x158] sm:$0xff]
    %v2133 = vld [vmem:[#allocation13 + $0x160] sm:$0xff]
    %v2134 = vld [vmem:[#allocation13 + $0x168] sm:$0xff]
    %v2135 = vld [vmem:[#allocation13 + $0x170] sm:$0xff]
    %v2136 = vld [vmem:[#allocation13 + $0x178] sm:$0xff]
    %v2137 = vld [vmem:[#allocation13 + $0x180] sm:$0xff]
    %v2138 = vld [vmem:[#allocation13 + $0x188] sm:$0xff]
    %v2139 = vld [vmem:[#allocation13 + $0x190] sm:$0xff]
    %v2140 = vld [vmem:[#allocation13 + $0x198] sm:$0xff]
    %v2141 = vld [vmem:[#allocation13 + $0x1a0] sm:$0xff]
    %v2142 = vld [vmem:[#allocation13 + $0x1a8] sm:$0xff]
    %v2143 = vld [vmem:[#allocation13 + $0x1b0] sm:$0xff]
    %v2144 = vld [vmem:[#allocation13 + $0x1b8] sm:$0xff]
    %v2145 = vld [vmem:[#allocation13 + $0x1c0] sm:$0xff]
    %v2146 = vld [vmem:[#allocation13 + $0x1c8] sm:$0xff]
    %v2147 = vld [vmem:[#allocation13 + $0x1d0] sm:$0xff]
    %v2148 = vld [vmem:[#allocation13 + $0x1d8] sm:$0xff]
    %v2149 = vld [vmem:[#allocation13 + $0x1e0] sm:$0xff]
    %v2150 = vld [vmem:[#allocation13 + $0x1e8] sm:$0xff]
    %v2151 = vld [vmem:[#allocation13 + $0x1f0] sm:$0xff]
    %v2152 = vld [vmem:[#allocation13 + $0x1f8] sm:$0xff]
    %v2153 = vld [vmem:[#allocation13 + $0x200] sm:$0xff]
    %v2154 = vld [vmem:[#allocation13 + $0x208] sm:$0xff]
    %v2155 = vld [vmem:[#allocation13 + $0x210] sm:$0xff]
    %v2156 = vld [vmem:[#allocation13 + $0x218] sm:$0xff]
    %v2157 = vld [vmem:[#allocation13 + $0x220] sm:$0xff]
    %v2158 = vld [vmem:[#allocation13 + $0x228] sm:$0xff]
    %v2159 = vld [vmem:[#allocation13 + $0x230] sm:$0xff]
    %v2160 = vld [vmem:[#allocation13 + $0x238] sm:$0xff]
    %v2161 = vld [vmem:[#allocation13 + $0x240] sm:$0xff]
    %v2162 = vld [vmem:[#allocation13 + $0x248] sm:$0xff]
    %v2163 = vld [vmem:[#allocation13 + $0x250] sm:$0xff]
    %v2164 = vld [vmem:[#allocation13 + $0x258] sm:$0xff]
    %v2165 = vld [vmem:[#allocation13 + $0x260] sm:$0xff]
    %v2166 = vld [vmem:[#allocation13 + $0x268] sm:$0xff]
    %v2167 = vld [vmem:[#allocation13 + $0x270] sm:$0xff]
    %v2168 = vld [vmem:[#allocation13 + $0x278] sm:$0xff]
    %v2169 = vld [vmem:[#allocation13 + $0x280] sm:$0xff]
    %v2170 = vld [vmem:[#allocation13 + $0x288] sm:$0xff]
    %v2171 = vld [vmem:[#allocation13 + $0x290] sm:$0xff]
    %v2172 = vld [vmem:[#allocation13 + $0x298] sm:$0xff]
    %v2173 = vld [vmem:[#allocation13 + $0x2a0] sm:$0xff]
    %v2174 = vld [vmem:[#allocation13 + $0x2a8] sm:$0xff]
    %v2175 = vld [vmem:[#allocation13 + $0x2b0] sm:$0xff]
    %v2176 = vld [vmem:[#allocation13 + $0x2b8] sm:$0xff]
    %v2177 = vld [vmem:[#allocation13 + $0x2c0] sm:$0xff]
    %v2178 = vld [vmem:[#allocation13 + $0x2c8] sm:$0xff]
    %v2179 = vld [vmem:[#allocation13 + $0x2d0] sm:$0xff]
    %v2180 = vld [vmem:[#allocation13 + $0x2d8] sm:$0xff]
    %v2181 = vld [vmem:[#allocation13 + $0x2e0] sm:$0xff]
    %v2182 = vld [vmem:[#allocation13 + $0x2e8] sm:$0xff]
    %v2183 = vld [vmem:[#allocation13 + $0x2f0] sm:$0xff]
    %v2184 = vld [vmem:[#allocation13 + $0x2f8] sm:$0xff]
    %v2185 = vld [vmem:[#allocation13 + $0x300] sm:$0xff]
    %v2186 = vld [vmem:[#allocation13 + $0x308] sm:$0xff]
    %v2187 = vld [vmem:[#allocation13 + $0x310] sm:$0xff]
    %v2188 = vld [vmem:[#allocation13 + $0x318] sm:$0xff]
    %v2189 = vld [vmem:[#allocation13 + $0x320] sm:$0xff]
    %v2190 = vld [vmem:[#allocation13 + $0x328] sm:$0xff]
    %v2191 = vld [vmem:[#allocation13 + $0x330] sm:$0xff]
    %v2192 = vld [vmem:[#allocation13 + $0x338] sm:$0xff]
    %v2193 = vld [vmem:[#allocation13 + $0x340] sm:$0xff]
    %v2194 = vld [vmem:[#allocation13 + $0x348] sm:$0xff]
    %v2195 = vld [vmem:[#allocation13 + $0x350] sm:$0xff]
    %v2196 = vld [vmem:[#allocation13 + $0x358] sm:$0xff]
    %v2197 = vld [vmem:[#allocation13 + $0x360] sm:$0xff]
    %v2198 = vld [vmem:[#allocation13 + $0x368] sm:$0xff]
    %v2199 = vld [vmem:[#allocation13 + $0x370] sm:$0xff]
    %v2200 = vld [vmem:[#allocation13 + $0x378] sm:$0xff]
    %v2201 = vld [vmem:[#allocation13 + $0x380] sm:$0xff]
    %v2202 = vld [vmem:[#allocation13 + $0x388] sm:$0xff]
    %v2203 = vld [vmem:[#allocation13 + $0x390] sm:$0xff]
    %v2204 = vld [vmem:[#allocation13 + $0x398] sm:$0xff]
    %v2205 = vld [vmem:[#allocation13 + $0x3a0] sm:$0xff]
    %v2206 = vld [vmem:[#allocation13 + $0x3a8] sm:$0xff]
    %v2207 = vld [vmem:[#allocation13 + $0x3b0] sm:$0xff]
    %v2208 = vld [vmem:[#allocation13 + $0x3b8] sm:$0xff]
    %v2209 = vld [vmem:[#allocation13 + $0x3c0] sm:$0xff]
    %v2210 = vld [vmem:[#allocation13 + $0x3c8] sm:$0xff]
    %v2211 = vld [vmem:[#allocation13 + $0x3d0] sm:$0xff]
    %v2212 = vld [vmem:[#allocation13 + $0x3d8] sm:$0xff]
    %v2213 = vld [vmem:[#allocation13 + $0x3e0] sm:$0xff]
    %v2214 = vld [vmem:[#allocation13 + $0x3e8] sm:$0xff]
    %v2215 = vld [vmem:[#allocation13 + $0x3f0] sm:$0xff]
    %v2216 = vld [vmem:[#allocation13 + $0x3f8] sm:$0xff]
    %v2217 = vld [vmem:[#allocation13 + $0x400] sm:$0xff]
    %v2218 = vld [vmem:[#allocation13 + $0x408] sm:$0xff]
    %v2219 = vld [vmem:[#allocation13 + $0x410] sm:$0xff]
    %v2220 = vld [vmem:[#allocation13 + $0x418] sm:$0xff]
    %v2221 = vld [vmem:[#allocation13 + $0x420] sm:$0xff]
    %v2222 = vld [vmem:[#allocation13 + $0x428] sm:$0xff]
    %v2223 = vld [vmem:[#allocation13 + $0x430] sm:$0xff]
    %v2224 = vld [vmem:[#allocation13 + $0x438] sm:$0xff]
    %v2225 = vld [vmem:[#allocation13 + $0x440] sm:$0xff]
    %v2226 = vld [vmem:[#allocation13 + $0x448] sm:$0xff]
    %v2227 = vld [vmem:[#allocation13 + $0x450] sm:$0xff]
    %v2228 = vld [vmem:[#allocation13 + $0x458] sm:$0xff]
    %v2229 = vld [vmem:[#allocation13 + $0x460] sm:$0xff]
    %v2230 = vld [vmem:[#allocation13 + $0x468] sm:$0xff]
    %v2231 = vld [vmem:[#allocation13 + $0x470] sm:$0xff]
    %v2232 = vld [vmem:[#allocation13 + $0x478] sm:$0xff]
    %v2233 = vld [vmem:[#allocation13 + $0x480] sm:$0xff]
    %v2234 = vld [vmem:[#allocation13 + $0x488] sm:$0xff]
    %v2235 = vld [vmem:[#allocation13 + $0x490] sm:$0xff]
    %v2236 = vld [vmem:[#allocation13 + $0x498] sm:$0xff]
    %v2237 = vld [vmem:[#allocation13 + $0x4a0] sm:$0xff]
    %v2238 = vld [vmem:[#allocation13 + $0x4a8] sm:$0xff]
    %v2239 = vld [vmem:[#allocation13 + $0x4b0] sm:$0xff]
    %v2240 = vld [vmem:[#allocation13 + $0x4b8] sm:$0xff]
    %v2241 = vld [vmem:[#allocation13 + $0x4c0] sm:$0xff]
    %v2242 = vld [vmem:[#allocation13 + $0x4c8] sm:$0xff]
    %v2243 = vld [vmem:[#allocation13 + $0x4d0] sm:$0xff]
    %v2244 = vld [vmem:[#allocation13 + $0x4d8] sm:$0xff]
    %v2245 = vld [vmem:[#allocation13 + $0x4e0] sm:$0xff]
    %v2246 = vld [vmem:[#allocation13 + $0x4e8] sm:$0xff]
    %v2247 = vld [vmem:[#allocation13 + $0x4f0] sm:$0xff]
    %v2248 = vld [vmem:[#allocation13 + $0x4f8] sm:$0xff]
    %v2249 = vld [vmem:[#allocation13 + $0x500] sm:$0xff]
    %v2250 = vld [vmem:[#allocation13 + $0x508] sm:$0xff]
    %v2251 = vld [vmem:[#allocation13 + $0x510] sm:$0xff]
    %v2252 = vld [vmem:[#allocation13 + $0x518] sm:$0xff]
    %v2253 = vld [vmem:[#allocation13 + $0x520] sm:$0xff]
    %v2254 = vld [vmem:[#allocation13 + $0x528] sm:$0xff]
    %v2255 = vld [vmem:[#allocation13 + $0x530] sm:$0xff]
    %v2256 = vld [vmem:[#allocation13 + $0x538] sm:$0xff]
    %v2257 = vld [vmem:[#allocation13 + $0x540] sm:$0xff]
    %v2258 = vld [vmem:[#allocation13 + $0x548] sm:$0xff]
    %v2259 = vld [vmem:[#allocation13 + $0x550] sm:$0xff]
    %v2260 = vld [vmem:[#allocation13 + $0x558] sm:$0xff]
    %v2261 = vld [vmem:[#allocation13 + $0x560] sm:$0xff]
    %v2262 = vld [vmem:[#allocation13 + $0x568] sm:$0xff]
    %v2263 = vld [vmem:[#allocation13 + $0x570] sm:$0xff]
    %v2264 = vld [vmem:[#allocation13 + $0x578] sm:$0xff]
    %v2265 = vld [vmem:[#allocation13 + $0x580] sm:$0xff]
    %v2266 = vld [vmem:[#allocation13 + $0x588] sm:$0xff]
    %v2267 = vld [vmem:[#allocation13 + $0x590] sm:$0xff]
    %v2268 = vld [vmem:[#allocation13 + $0x598] sm:$0xff]
    %v2269 = vld [vmem:[#allocation13 + $0x5a0] sm:$0xff]
    %v2270 = vld [vmem:[#allocation13 + $0x5a8] sm:$0xff]
    %v2271 = vld [vmem:[#allocation13 + $0x5b0] sm:$0xff]
    %v2272 = vld [vmem:[#allocation13 + $0x5b8] sm:$0xff]
    %v2273 = vld [vmem:[#allocation13 + $0x5c0] sm:$0xff]
    %v2274 = vld [vmem:[#allocation13 + $0x5c8] sm:$0xff]
    %v2275 = vld [vmem:[#allocation13 + $0x5d0] sm:$0xff]
    %v2276 = vld [vmem:[#allocation13 + $0x5d8] sm:$0xff]
    %v2277 = vld [vmem:[#allocation13 + $0x5e0] sm:$0xff]
    %v2278 = vld [vmem:[#allocation13 + $0x5e8] sm:$0xff]
    %v2279 = vld [vmem:[#allocation13 + $0x5f0] sm:$0xff]
    %v2280 = vld [vmem:[#allocation13 + $0x5f8] sm:$0xff]
    %v2281 = vld [vmem:[#allocation13 + $0x600] sm:$0xff]
    %v2282 = vld [vmem:[#allocation13 + $0x608] sm:$0xff]
    %v2283 = vld [vmem:[#allocation13 + $0x610] sm:$0xff]
    %v2284 = vld [vmem:[#allocation13 + $0x618] sm:$0xff]
    %v2285 = vld [vmem:[#allocation13 + $0x620] sm:$0xff]
    %v2286 = vld [vmem:[#allocation13 + $0x628] sm:$0xff]
    %v2287 = vld [vmem:[#allocation13 + $0x630] sm:$0xff]
    %v2288 = vld [vmem:[#allocation13 + $0x638] sm:$0xff]
    %v2289 = vld [vmem:[#allocation13 + $0x640] sm:$0xff]
    %v2290 = vld [vmem:[#allocation13 + $0x648] sm:$0xff]
    %v2291 = vld [vmem:[#allocation13 + $0x650] sm:$0xff]
    %v2292 = vld [vmem:[#allocation13 + $0x658] sm:$0xff]
    %v2293 = vld [vmem:[#allocation13 + $0x660] sm:$0xff]
    %v2294 = vld [vmem:[#allocation13 + $0x668] sm:$0xff]
    %v2295 = vld [vmem:[#allocation13 + $0x670] sm:$0xff]
    %v2296 = vld [vmem:[#allocation13 + $0x678] sm:$0xff]
    %v2297 = vld [vmem:[#allocation13 + $0x680] sm:$0xff]
    %v2298 = vld [vmem:[#allocation13 + $0x688] sm:$0xff]
    %v2299 = vld [vmem:[#allocation13 + $0x690] sm:$0xff]
    %v2300 = vld [vmem:[#allocation13 + $0x698] sm:$0xff]
    %v2301 = vld [vmem:[#allocation13 + $0x6a0] sm:$0xff]
    %v2302 = vld [vmem:[#allocation13 + $0x6a8] sm:$0xff]
    %v2303 = vld [vmem:[#allocation13 + $0x6b0] sm:$0xff]
    %v2304 = vld [vmem:[#allocation13 + $0x6b8] sm:$0xff]
    %v2305 = vld [vmem:[#allocation13 + $0x6c0] sm:$0xff]
    %v2306 = vld [vmem:[#allocation13 + $0x6c8] sm:$0xff]
    %v2307 = vld [vmem:[#allocation13 + $0x6d0] sm:$0xff]
    %v2308 = vld [vmem:[#allocation13 + $0x6d8] sm:$0xff]
    %v2309 = vld [vmem:[#allocation13 + $0x6e0] sm:$0xff]
    %v2310 = vld [vmem:[#allocation13 + $0x6e8] sm:$0xff]
    %v2311 = vld [vmem:[#allocation13 + $0x6f0] sm:$0xff]
    %v2312 = vld [vmem:[#allocation13 + $0x6f8] sm:$0xff]
    %v2313 = vld [vmem:[#allocation13 + $0x700] sm:$0xff]
    %v2314 = vld [vmem:[#allocation13 + $0x708] sm:$0xff]
    %v2315 = vld [vmem:[#allocation13 + $0x710] sm:$0xff]
    %v2316 = vld [vmem:[#allocation13 + $0x718] sm:$0xff]
    %v2317 = vld [vmem:[#allocation13 + $0x720] sm:$0xff]
    %v2318 = vld [vmem:[#allocation13 + $0x728] sm:$0xff]
    %v2319 = vld [vmem:[#allocation13 + $0x730] sm:$0xff]
    %v2320 = vld [vmem:[#allocation13 + $0x738] sm:$0xff]
    %v2321 = vld [vmem:[#allocation13 + $0x740] sm:$0xff]
    %v2322 = vld [vmem:[#allocation13 + $0x748] sm:$0xff]
    %v2323 = vld [vmem:[#allocation13 + $0x750] sm:$0xff]
    %v2324 = vld [vmem:[#allocation13 + $0x758] sm:$0xff]
    %v2325 = vld [vmem:[#allocation13 + $0x760] sm:$0xff]
    %v2326 = vld [vmem:[#allocation13 + $0x768] sm:$0xff]
    %v2327 = vld [vmem:[#allocation13 + $0x770] sm:$0xff]
    %v2328 = vld [vmem:[#allocation13 + $0x778] sm:$0xff]
    %v2329 = vld [vmem:[#allocation13 + $0x780] sm:$0xff]
    %v2330 = vld [vmem:[#allocation13 + $0x788] sm:$0xff]
    %v2331 = vld [vmem:[#allocation13 + $0x790] sm:$0xff]
    %v2332 = vld [vmem:[#allocation13 + $0x798] sm:$0xff]
    %v2333 = vld [vmem:[#allocation13 + $0x7a0] sm:$0xff]
    %v2334 = vld [vmem:[#allocation13 + $0x7a8] sm:$0xff]
    %v2335 = vld [vmem:[#allocation13 + $0x7b0] sm:$0xff]
    %v2336 = vld [vmem:[#allocation13 + $0x7b8] sm:$0xff]
    %v2337 = vld [vmem:[#allocation13 + $0x7c0] sm:$0xff]
    %v2338 = vld [vmem:[#allocation13 + $0x7c8] sm:$0xff]
    %v2339 = vld [vmem:[#allocation13 + $0x7d0] sm:$0xff]
    %v2340 = vld [vmem:[#allocation13 + $0x7d8] sm:$0xff]
    %v2341 = vld [vmem:[#allocation13 + $0x7e0] sm:$0xff]
    %v2342 = vld [vmem:[#allocation13 + $0x7e8] sm:$0xff]
    %v2343 = vld [vmem:[#allocation13 + $0x7f0] sm:$0xff]
    %v2344 = vld [vmem:[#allocation13 + $0x7f8] sm:$0xff]
    %v2345 = vld [vmem:[#allocation14] sm:$0xff]
    %v2346 = vld [vmem:[#allocation14 + $0x8] sm:$0xff]
    %v2349 = vlaneseq
    %v2350 = vshrl.u32 %v2349, 7
    %v2351 = vsub.s32 0, %v2350
    %v2352 = vrot.slane %v2345, %v2351
    %v2353 = vlaneseq
    %v2354 = vshrl.u32 %v2353, 7
    %v2355 = vsub.s32 1, %v2354
    %v2356 = vrot.slane %v2345, %v2355
    %v2357 = vlaneseq
    %v2358 = vshrl.u32 %v2357, 7
    %v2359 = vsub.s32 2, %v2358
    %v2360 = vrot.slane %v2345, %v2359
    %v2361 = vlaneseq
    %v2362 = vshrl.u32 %v2361, 7
    %v2363 = vsub.s32 3, %v2362
    %v2364 = vrot.slane %v2345, %v2363
    %v2365 = vlaneseq
    %v2366 = vshrl.u32 %v2365, 7
    %v2367 = vsub.s32 4, %v2366
    %v2368 = vrot.slane %v2345, %v2367
    %v2369 = vlaneseq
    %v2370 = vshrl.u32 %v2369, 7
    %v2371 = vsub.s32 5, %v2370
    %v2372 = vrot.slane %v2345, %v2371
    %v2373 = vlaneseq
    %v2374 = vshrl.u32 %v2373, 7
    %v2375 = vsub.s32 6, %v2374
    %v2376 = vrot.slane %v2345, %v2375
    %v2377 = vlaneseq
    %v2378 = vshrl.u32 %v2377, 7
    %v2379 = vsub.s32 7, %v2378
    %v2380 = vrot.slane %v2345, %v2379
    %v2381 = vlaneseq
    %v2382 = vshrl.u32 %v2381, 7
    %v2383 = vsub.s32 0, %v2382
    %v2384 = vrot.slane %v2346, %v2383
    %v2385 = vlaneseq
    %v2386 = vshrl.u32 %v2385, 7
    %v2387 = vsub.s32 1, %v2386
    %v2388 = vrot.slane %v2346, %v2387
    %v2389 = vlaneseq
    %v2390 = vshrl.u32 %v2389, 7
    %v2391 = vsub.s32 2, %v2390
    %v2392 = vrot.slane %v2346, %v2391
    %v2393 = vlaneseq
    %v2394 = vshrl.u32 %v2393, 7
    %v2395 = vsub.s32 3, %v2394
    %v2396 = vrot.slane %v2346, %v2395
    %v2397 = vlaneseq
    %v2398 = vshrl.u32 %v2397, 7
    %v2399 = vsub.s32 4, %v2398
    %v2400 = vrot.slane %v2346, %v2399
    %v2401 = vlaneseq
    %v2402 = vshrl.u32 %v2401, 7
    %v2403 = vsub.s32 5, %v2402
    %v2404 = vrot.slane %v2346, %v2403
    %v2405 = vlaneseq
    %v2406 = vshrl.u32 %v2405, 7
    %v2407 = vsub.s32 6, %v2406
    %v2408 = vrot.slane %v2346, %v2407
    %v2409 = vlaneseq
    %v2410 = vshrl.u32 %v2409, 7
    %v2411 = vsub.s32 7, %v2410
    %v2412 = vrot.slane %v2346, %v2411
    %2429 = vmatprep.subr.mxu0 %v2090
    %2430 = vmatpush1.msra.mxu0 %v2089
    %2431 = vmatprep.subr.mxu0 %v2106
    %2432 = vmatpush1.msra.mxu0 %v2105
    %2433 = vmatprep.subr.mxu0 %v2122
    %2434 = vmatpush1.msra.mxu0 %v2121
    %2435 = vmatprep.subr.mxu0 %v2138
    %2436 = vmatpush1.msra.mxu0 %v2137
    %2437 = vmatprep.subr.mxu0 %v2154
    %2438 = vmatpush1.msra.mxu0 %v2153
    %2439 = vmatprep.subr.mxu0 %v2170
    %2440 = vmatpush1.msra.mxu0 %v2169
    %2441 = vmatprep.subr.mxu0 %v2186
    %2442 = vmatpush1.msra.mxu0 %v2185
    %2443 = vmatprep.subr.mxu0 %v2202
    %2444 = vmatpush1.msra.mxu0 %v2201
    %2445 = vmatprep.subr.mxu0 %v2218
    %2446 = vmatpush1.msra.mxu0 %v2217
    %2447 = vmatprep.subr.mxu0 %v2234
    %2448 = vmatpush1.msra.mxu0 %v2233
    %2449 = vmatprep.subr.mxu0 %v2250
    %2450 = vmatpush1.msra.mxu0 %v2249
    %2451 = vmatprep.subr.mxu0 %v2266
    %2452 = vmatpush1.msra.mxu0 %v2265
    %2453 = vmatprep.subr.mxu0 %v2282
    %2454 = vmatpush1.msra.mxu0 %v2281
    %2455 = vmatprep.subr.mxu0 %v2298
    %2456 = vmatpush1.msra.mxu0 %v2297
    %2457 = vmatprep.subr.mxu0 %v2314
    %2458 = vmatpush1.msra.mxu0 %v2313
    %2459 = vmatprep.subr.mxu0 %v2330
    %2460 = vmatpush1.msra.mxu0 %v2329
    %2461 = vmatprep.subr.mxu0 0.0
    %2462 = vmatpush1.msra.mxu0 0.0
    %2463 = vmatprep.subr.mxu0 0.0
    %2464 = vmatpush1.msra.mxu0 0.0
    %2465 = vmatprep.subr.mxu0 0.0
    %2466 = vmatpush1.msra.mxu0 0.0
    %2467 = vmatprep.subr.mxu0 0.0
    %2468 = vmatpush1.msra.mxu0 0.0
    %2469 = vmatprep.subr.mxu0 0.0
    %2470 = vmatpush1.msra.mxu0 0.0
    %2471 = vmatprep.subr.mxu0 0.0
    %2472 = vmatpush1.msra.mxu0 0.0
    %2473 = vmatprep.subr.mxu0 0.0
    %2474 = vmatpush1.msra.mxu0 0.0
    %2475 = vmatprep.subr.mxu0 0.0
    %2476 = vmatpush1.msra.mxu0 0.0
    %2477 = vmatprep.subr.mxu0 0.0
    %2478 = vmatpush1.msra.mxu0 0.0
    %2479 = vmatprep.subr.mxu0 0.0
    %2480 = vmatpush1.msra.mxu0 0.0
    %2481 = vmatprep.subr.mxu0 0.0
    %2482 = vmatpush1.msra.mxu0 0.0
    %2483 = vmatprep.subr.mxu0 0.0
    %2484 = vmatpush1.msra.mxu0 0.0
    %2485 = vmatprep.subr.mxu0 0.0
    %2486 = vmatpush1.msra.mxu0 0.0
    %2487 = vmatprep.subr.mxu0 0.0
    %2488 = vmatpush1.msra.mxu0 0.0
    %2489 = vmatprep.subr.mxu0 0.0
    %2490 = vmatpush1.msra.mxu0 0.0
    %2491 = vmatprep.subr.mxu0 0.0
    %2492 = vmatpush1.msra.mxu0 0.0
    %2493 = vmatprep.mubr.f32.mxu0 0.0
    %2494 = vmatmul.mubr.f32.gmra.mrb[0].mxu0 %v2087
    %v2495 = vpop.f32.mrb[0].mxu0
    %v2496 = vadd.f32 %v2352, %v2495
    %v2497 = vpop.f32.mrb[0].mxu0
    %v2498 = vadd.f32 %v2356, %v2497
    %2499 = vmatprep.mubr.f32.mxu0 0.0
    %2500 = vmatmul.mubr.f32.gmra.mrb[0].mxu0 %v2088
    %v2501 = vpop.f32.mrb[0].mxu0
    %v2502 = vadd.f32 %v2352, %v2501
    %v2503 = vpop.f32.mrb[0].mxu0
    %v2504 = vadd.f32 %v2356, %v2503
    %2505 = vdwg.mxu0
    %2506 = vmatprep.subr.mxu0 %v2092
    %2507 = vmatpush1.msra.mxu0 %v2091
    %2508 = vmatprep.subr.mxu0 %v2108
    %2509 = vmatpush1.msra.mxu0 %v2107
    %2510 = vmatprep.subr.mxu0 %v2124
    %2511 = vmatpush1.msra.mxu0 %v2123
    %2512 = vmatprep.subr.mxu0 %v2140
    %2513 = vmatpush1.msra.mxu0 %v2139
    %2514 = vmatprep.subr.mxu0 %v2156
    %2515 = vmatpush1.msra.mxu0 %v2155
    %2516 = vmatprep.subr.mxu0 %v2172
    %2517 = vmatpush1.msra.mxu0 %v2171
    %2518 = vmatprep.subr.mxu0 %v2188
    %2519 = vmatpush1.msra.mxu0 %v2187
    %2520 = vmatprep.subr.mxu0 %v2204
    %2521 = vmatpush1.msra.mxu0 %v2203
    %2522 = vmatprep.subr.mxu0 %v2220
    %2523 = vmatpush1.msra.mxu0 %v2219
    %2524 = vmatprep.subr.mxu0 %v2236
    %2525 = vmatpush1.msra.mxu0 %v2235
    %2526 = vmatprep.subr.mxu0 %v2252
    %2527 = vmatpush1.msra.mxu0 %v2251
    %2528 = vmatprep.subr.mxu0 %v2268
    %2529 = vmatpush1.msra.mxu0 %v2267
    %2530 = vmatprep.subr.mxu0 %v2284
    %2531 = vmatpush1.msra.mxu0 %v2283
    %2532 = vmatprep.subr.mxu0 %v2300
    %2533 = vmatpush1.msra.mxu0 %v2299
    %2534 = vmatprep.subr.mxu0 %v2316
    %2535 = vmatpush1.msra.mxu0 %v2315
    %2536 = vmatprep.subr.mxu0 %v2332
    %2537 = vmatpush1.msra.mxu0 %v2331
    %2538 = vmatprep.subr.mxu0 0.0
    %2539 = vmatpush1.msra.mxu0 0.0
    %2540 = vmatprep.subr.mxu0 0.0
    %2541 = vmatpush1.msra.mxu0 0.0
    %2542 = vmatprep.subr.mxu0 0.0
    %2543 = vmatpush1.msra.mxu0 0.0
    %2544 = vmatprep.subr.mxu0 0.0
    %2545 = vmatpush1.msra.mxu0 0.0
    %2546 = vmatprep.subr.mxu0 0.0
    %2547 = vmatpush1.msra.mxu0 0.0
    %2548 = vmatprep.subr.mxu0 0.0
    %2549 = vmatpush1.msra.mxu0 0.0
    %2550 = vmatprep.subr.mxu0 0.0
    %2551 = vmatpush1.msra.mxu0 0.0
    %2552 = vmatprep.subr.mxu0 0.0
    %2553 = vmatpush1.msra.mxu0 0.0
    %2554 = vmatprep.subr.mxu0 0.0
    %2555 = vmatpush1.msra.mxu0 0.0
    %2556 = vmatprep.subr.mxu0 0.0
    %2557 = vmatpush1.msra.mxu0 0.0
    %2558 = vmatprep.subr.mxu0 0.0
    %2559 = vmatpush1.msra.mxu0 0.0
    %2560 = vmatprep.subr.mxu0 0.0
    %2561 = vmatpush1.msra.mxu0 0.0
    %2562 = vmatprep.subr.mxu0 0.0
    %2563 = vmatpush1.msra.mxu0 0.0
    %2564 = vmatprep.subr.mxu0 0.0
    %2565 = vmatpush1.msra.mxu0 0.0
    %2566 = vmatprep.subr.mxu0 0.0
    %2567 = vmatpush1.msra.mxu0 0.0
    %2568 = vmatprep.subr.mxu0 0.0
    %2569 = vmatpush1.msra.mxu0 0.0
    %2570 = vmatprep.mubr.f32.mxu0 0.0
    %2571 = vmatmul.mubr.f32.gmra.mrb[0].mxu0 %v2087
    %v2572 = vpop.f32.mrb[0].mxu0
    %v2573 = vadd.f32 %v2360, %v2572
    %v2574 = vpop.f32.mrb[0].mxu0
    %v2575 = vadd.f32 %v2364, %v2574
    %2576 = vmatprep.mubr.f32.mxu0 0.0
    %2577 = vmatmul.mubr.f32.gmra.mrb[0].mxu0 %v2088
    %v2578 = vpop.f32.mrb[0].mxu0
    %v2579 = vadd.f32 %v2360, %v2578
    %v2580 = vpop.f32.mrb[0].mxu0
    %v2581 = vadd.f32 %v2364, %v2580
    %2582 = vdwg.mxu0
    %2583 = vmatprep.subr.mxu0 %v2094
    %2584 = vmatpush1.msra.mxu0 %v2093
    %2585 = vmatprep.subr.mxu0 %v2110
    %2586 = vmatpush1.msra.mxu0 %v2109
    %2587 = vmatprep.subr.mxu0 %v2126
    %2588 = vmatpush1.msra.mxu0 %v2125
    %2589 = vmatprep.subr.mxu0 %v2142
    %2590 = vmatpush1.msra.mxu0 %v2141
    %2591 = vmatprep.subr.mxu0 %v2158
    %2592 = vmatpush1.msra.mxu0 %v2157
    %2593 = vmatprep.subr.mxu0 %v2174
    %2594 = vmatpush1.msra.mxu0 %v2173
    %2595 = vmatprep.subr.mxu0 %v2190
    %2596 = vmatpush1.msra.mxu0 %v2189
    %2597 = vmatprep.subr.mxu0 %v2206
    %2598 = vmatpush1.msra.mxu0 %v2205
    %2599 = vmatprep.subr.mxu0 %v2222
    %2600 = vmatpush1.msra.mxu0 %v2221
    %2601 = vmatprep.subr.mxu0 %v2238
    %2602 = vmatpush1.msra.mxu0 %v2237
    %2603 = vmatprep.subr.mxu0 %v2254
    %2604 = vmatpush1.msra.mxu0 %v2253
    %2605 = vmatprep.subr.mxu0 %v2270
    %2606 = vmatpush1.msra.mxu0 %v2269
    %2607 = vmatprep.subr.mxu0 %v2286
    %2608 = vmatpush1.msra.mxu0 %v2285
    %2609 = vmatprep.subr.mxu0 %v2302
    %2610 = vmatpush1.msra.mxu0 %v2301
    %2611 = vmatprep.subr.mxu0 %v2318
    %2612 = vmatpush1.msra.mxu0 %v2317
    %2613 = vmatprep.subr.mxu0 %v2334
    %2614 = vmatpush1.msra.mxu0 %v2333
    %2615 = vmatprep.subr.mxu0 0.0
    %2616 = vmatpush1.msra.mxu0 0.0
    %2617 = vmatprep.subr.mxu0 0.0
    %2618 = vmatpush1.msra.mxu0 0.0
    %2619 = vmatprep.subr.mxu0 0.0
    %2620 = vmatpush1.msra.mxu0 0.0
    %2621 = vmatprep.subr.mxu0 0.0
    %2622 = vmatpush1.msra.mxu0 0.0
    %2623 = vmatprep.subr.mxu0 0.0
    %2624 = vmatpush1.msra.mxu0 0.0
    %2625 = vmatprep.subr.mxu0 0.0
    %2626 = vmatpush1.msra.mxu0 0.0
    %2627 = vmatprep.subr.mxu0 0.0
    %2628 = vmatpush1.msra.mxu0 0.0
    %2629 = vmatprep.subr.mxu0 0.0
    %2630 = vmatpush1.msra.mxu0 0.0
    %2631 = vmatprep.subr.mxu0 0.0
    %2632 = vmatpush1.msra.mxu0 0.0
    %2633 = vmatprep.subr.mxu0 0.0
    %2634 = vmatpush1.msra.mxu0 0.0
    %2635 = vmatprep.subr.mxu0 0.0
    %2636 = vmatpush1.msra.mxu0 0.0
    %2637 = vmatprep.subr.mxu0 0.0
    %2638 = vmatpush1.msra.mxu0 0.0
    %2639 = vmatprep.subr.mxu0 0.0
    %2640 = vmatpush1.msra.mxu0 0.0
    %2641 = vmatprep.subr.mxu0 0.0
    %2642 = vmatpush1.msra.mxu0 0.0
    %2643 = vmatprep.subr.mxu0 0.0
    %2644 = vmatpush1.msra.mxu0 0.0
    %2645 = vmatprep.subr.mxu0 0.0
    %2646 = vmatpush1.msra.mxu0 0.0
    %2647 = vmatprep.mubr.f32.mxu0 0.0
    %2648 = vmatmul.mubr.f32.gmra.mrb[0].mxu0 %v2087
    %v2649 = vpop.f32.mrb[0].mxu0
    %v2650 = vadd.f32 %v2368, %v2649
    %v2651 = vpop.f32.mrb[0].mxu0
    %v2652 = vadd.f32 %v2372, %v2651
    %2653 = vmatprep.mubr.f32.mxu0 0.0
    %2654 = vmatmul.mubr.f32.gmra.mrb[0].mxu0 %v2088
    %v2655 = vpop.f32.mrb[0].mxu0
    %v2656 = vadd.f32 %v2368, %v2655
    %v2657 = vpop.f32.mrb[0].mxu0
    %v2658 = vadd.f32 %v2372, %v2657
    %2659 = vdwg.mxu0
    %2660 = vmatprep.subr.mxu0 %v2096
    %2661 = vmatpush1.msra.mxu0 %v2095
    %2662 = vmatprep.subr.mxu0 %v2112
    %2663 = vmatpush1.msra.mxu0 %v2111
    %2664 = vmatprep.subr.mxu0 %v2128
    %2665 = vmatpush1.msra.mxu0 %v2127
    %2666 = vmatprep.subr.mxu0 %v2144
    %2667 = vmatpush1.msra.mxu0 %v2143
    %2668 = vmatprep.subr.mxu0 %v2160
    %2669 = vmatpush1.msra.mxu0 %v2159
    %2670 = vmatprep.subr.mxu0 %v2176
    %2671 = vmatpush1.msra.mxu0 %v2175
    %2672 = vmatprep.subr.mxu0 %v2192
    %2673 = vmatpush1.msra.mxu0 %v2191
    %2674 = vmatprep.subr.mxu0 %v2208
    %2675 = vmatpush1.msra.mxu0 %v2207
    %2676 = vmatprep.subr.mxu0 %v2224
    %2677 = vmatpush1.msra.mxu0 %v2223
    %2678 = vmatprep.subr.mxu0 %v2240
    %2679 = vmatpush1.msra.mxu0 %v2239
    %2680 = vmatprep.subr.mxu0 %v2256
    %2681 = vmatpush1.msra.mxu0 %v2255
    %2682 = vmatprep.subr.mxu0 %v2272
    %2683 = vmatpush1.msra.mxu0 %v2271
    %2684 = vmatprep.subr.mxu0 %v2288
    %2685 = vmatpush1.msra.mxu0 %v2287
    %2686 = vmatprep.subr.mxu0 %v2304
    %2687 = vmatpush1.msra.mxu0 %v2303
    %2688 = vmatprep.subr.mxu0 %v2320
    %2689 = vmatpush1.msra.mxu0 %v2319
    %2690 = vmatprep.subr.mxu0 %v2336
    %2691 = vmatpush1.msra.mxu0 %v2335
    %2692 = vmatprep.subr.mxu0 0.0
    %2693 = vmatpush1.msra.mxu0 0.0
    %2694 = vmatprep.subr.mxu0 0.0
    %2695 = vmatpush1.msra.mxu0 0.0
    %2696 = vmatprep.subr.mxu0 0.0
    %2697 = vmatpush1.msra.mxu0 0.0
    %2698 = vmatprep.subr.mxu0 0.0
    %2699 = vmatpush1.msra.mxu0 0.0
    %2700 = vmatprep.subr.mxu0 0.0
    %2701 = vmatpush1.msra.mxu0 0.0
    %2702 = vmatprep.subr.mxu0 0.0
    %2703 = vmatpush1.msra.mxu0 0.0
    %2704 = vmatprep.subr.mxu0 0.0
    %2705 = vmatpush1.msra.mxu0 0.0
    %2706 = vmatprep.subr.mxu0 0.0
    %2707 = vmatpush1.msra.mxu0 0.0
    %2708 = vmatprep.subr.mxu0 0.0
    %2709 = vmatpush1.msra.mxu0 0.0
    %2710 = vmatprep.subr.mxu0 0.0
    %2711 = vmatpush1.msra.mxu0 0.0
    %2712 = vmatprep.subr.mxu0 0.0
    %2713 = vmatpush1.msra.mxu0 0.0
    %2714 = vmatprep.subr.mxu0 0.0
    %2715 = vmatpush1.msra.mxu0 0.0
    %2716 = vmatprep.subr.mxu0 0.0
    %2717 = vmatpush1.msra.mxu0 0.0
    %2718 = vmatprep.subr.mxu0 0.0
    %2719 = vmatpush1.msra.mxu0 0.0
    %2720 = vmatprep.subr.mxu0 0.0
    %2721 = vmatpush1.msra.mxu0 0.0
    %2722 = vmatprep.subr.mxu0 0.0
    %2723 = vmatpush1.msra.mxu0 0.0
    %2724 = vmatprep.mubr.f32.mxu0 0.0
    %2725 = vmatmul.mubr.f32.gmra.mrb[0].mxu0 %v2087
    %v2726 = vpop.f32.mrb[0].mxu0
    %v2727 = vadd.f32 %v2376, %v2726
    %v2728 = vpop.f32.mrb[0].mxu0
    %v2729 = vadd.f32 %v2380, %v2728
    %2730 = vmatprep.mubr.f32.mxu0 0.0
    %2731 = vmatmul.mubr.f32.gmra.mrb[0].mxu0 %v2088
    %v2732 = vpop.f32.mrb[0].mxu0
    %v2733 = vadd.f32 %v2376, %v2732
    %v2734 = vpop.f32.mrb[0].mxu0
    %v2735 = vadd.f32 %v2380, %v2734
    %2736 = vdwg.mxu0
    %2737 = vmatprep.subr.mxu0 %v2098
    %2738 = vmatpush1.msra.mxu0 %v2097
    %2739 = vmatprep.subr.mxu0 %v2114
    %2740 = vmatpush1.msra.mxu0 %v2113
    %2741 = vmatprep.subr.mxu0 %v2130
    %2742 = vmatpush1.msra.mxu0 %v2129
    %2743 = vmatprep.subr.mxu0 %v2146
    %2744 = vmatpush1.msra.mxu0 %v2145
    %2745 = vmatprep.subr.mxu0 %v2162
    %2746 = vmatpush1.msra.mxu0 %v2161
    %2747 = vmatprep.subr.mxu0 %v2178
    %2748 = vmatpush1.msra.mxu0 %v2177
    %2749 = vmatprep.subr.mxu0 %v2194
    %2750 = vmatpush1.msra.mxu0 %v2193
    %2751 = vmatprep.subr.mxu0 %v2210
    %2752 = vmatpush1.msra.mxu0 %v2209
    %2753 = vmatprep.subr.mxu0 %v2226
    %2754 = vmatpush1.msra.mxu0 %v2225
    %2755 = vmatprep.subr.mxu0 %v2242
    %2756 = vmatpush1.msra.mxu0 %v2241
    %2757 = vmatprep.subr.mxu0 %v2258
    %2758 = vmatpush1.msra.mxu0 %v2257
    %2759 = vmatprep.subr.mxu0 %v2274
    %2760 = vmatpush1.msra.mxu0 %v2273
    %2761 = vmatprep.subr.mxu0 %v2290
    %2762 = vmatpush1.msra.mxu0 %v2289
    %2763 = vmatprep.subr.mxu0 %v2306
    %2764 = vmatpush1.msra.mxu0 %v2305
    %2765 = vmatprep.subr.mxu0 %v2322
    %2766 = vmatpush1.msra.mxu0 %v2321
    %2767 = vmatprep.subr.mxu0 %v2338
    %2768 = vmatpush1.msra.mxu0 %v2337
    %2769 = vmatprep.subr.mxu0 0.0
    %2770 = vmatpush1.msra.mxu0 0.0
    %2771 = vmatprep.subr.mxu0 0.0
    %2772 = vmatpush1.msra.mxu0 0.0
    %2773 = vmatprep.subr.mxu0 0.0
    %2774 = vmatpush1.msra.mxu0 0.0
    %2775 = vmatprep.subr.mxu0 0.0
    %2776 = vmatpush1.msra.mxu0 0.0
    %2777 = vmatprep.subr.mxu0 0.0
    %2778 = vmatpush1.msra.mxu0 0.0
    %2779 = vmatprep.subr.mxu0 0.0
    %2780 = vmatpush1.msra.mxu0 0.0
    %2781 = vmatprep.subr.mxu0 0.0
    %2782 = vmatpush1.msra.mxu0 0.0
    %2783 = vmatprep.subr.mxu0 0.0
    %2784 = vmatpush1.msra.mxu0 0.0
    %2785 = vmatprep.subr.mxu0 0.0
    %2786 = vmatpush1.msra.mxu0 0.0
    %2787 = vmatprep.subr.mxu0 0.0
    %2788 = vmatpush1.msra.mxu0 0.0
    %2789 = vmatprep.subr.mxu0 0.0
    %2790 = vmatpush1.msra.mxu0 0.0
    %2791 = vmatprep.subr.mxu0 0.0
    %2792 = vmatpush1.msra.mxu0 0.0
    %2793 = vmatprep.subr.mxu0 0.0
    %2794 = vmatpush1.msra.mxu0 0.0
    %2795 = vmatprep.subr.mxu0 0.0
    %2796 = vmatpush1.msra.mxu0 0.0
    %2797 = vmatprep.subr.mxu0 0.0
    %2798 = vmatpush1.msra.mxu0 0.0
    %2799 = vmatprep.subr.mxu0 0.0
    %2800 = vmatpush1.msra.mxu0 0.0
    %2801 = vmatprep.mubr.f32.mxu0 0.0
    %2802 = vmatmul.mubr.f32.gmra.mrb[0].mxu0 %v2087
    %v2803 = vpop.f32.mrb[0].mxu0
    %v2804 = vadd.f32 %v2384, %v2803
    %v2805 = vpop.f32.mrb[0].mxu0
    %v2806 = vadd.f32 %v2388, %v2805
    %2807 = vmatprep.mubr.f32.mxu0 0.0
    %2808 = vmatmul.mubr.f32.gmra.mrb[0].mxu0 %v2088
    %v2809 = vpop.f32.mrb[0].mxu0
    %v2810 = vadd.f32 %v2384, %v2809
    %v2811 = vpop.f32.mrb[0].mxu0
    %v2812 = vadd.f32 %v2388, %v2811
    %2813 = vdwg.mxu0
    %2814 = vmatprep.subr.mxu0 %v2100
    %2815 = vmatpush1.msra.mxu0 %v2099
    %2816 = vmatprep.subr.mxu0 %v2116
    %2817 = vmatpush1.msra.mxu0 %v2115
    %2818 = vmatprep.subr.mxu0 %v2132
    %2819 = vmatpush1.msra.mxu0 %v2131
    %2820 = vmatprep.subr.mxu0 %v2148
    %2821 = vmatpush1.msra.mxu0 %v2147
    %2822 = vmatprep.subr.mxu0 %v2164
    %2823 = vmatpush1.msra.mxu0 %v2163
    %2824 = vmatprep.subr.mxu0 %v2180
    %2825 = vmatpush1.msra.mxu0 %v2179
    %2826 = vmatprep.subr.mxu0 %v2196
    %2827 = vmatpush1.msra.mxu0 %v2195
    %2828 = vmatprep.subr.mxu0 %v2212
    %2829 = vmatpush1.msra.mxu0 %v2211
    %2830 = vmatprep.subr.mxu0 %v2228
    %2831 = vmatpush1.msra.mxu0 %v2227
    %2832 = vmatprep.subr.mxu0 %v2244
    %2833 = vmatpush1.msra.mxu0 %v2243
    %2834 = vmatprep.subr.mxu0 %v2260
    %2835 = vmatpush1.msra.mxu0 %v2259
    %2836 = vmatprep.subr.mxu0 %v2276
    %2837 = vmatpush1.msra.mxu0 %v2275
    %2838 = vmatprep.subr.mxu0 %v2292
    %2839 = vmatpush1.msra.mxu0 %v2291
    %2840 = vmatprep.subr.mxu0 %v2308
    %2841 = vmatpush1.msra.mxu0 %v2307
    %2842 = vmatprep.subr.mxu0 %v2324
    %2843 = vmatpush1.msra.mxu0 %v2323
    %2844 = vmatprep.subr.mxu0 %v2340
    %2845 = vmatpush1.msra.mxu0 %v2339
    %2846 = vmatprep.subr.mxu0 0.0
    %2847 = vmatpush1.msra.mxu0 0.0
    %2848 = vmatprep.subr.mxu0 0.0
    %2849 = vmatpush1.msra.mxu0 0.0
    %2850 = vmatprep.subr.mxu0 0.0
    %2851 = vmatpush1.msra.mxu0 0.0
    %2852 = vmatprep.subr.mxu0 0.0
    %2853 = vmatpush1.msra.mxu0 0.0
    %2854 = vmatprep.subr.mxu0 0.0
    %2855 = vmatpush1.msra.mxu0 0.0
    %2856 = vmatprep.subr.mxu0 0.0
    %2857 = vmatpush1.msra.mxu0 0.0
    %2858 = vmatprep.subr.mxu0 0.0
    %2859 = vmatpush1.msra.mxu0 0.0
    %2860 = vmatprep.subr.mxu0 0.0
    %2861 = vmatpush1.msra.mxu0 0.0
    %2862 = vmatprep.subr.mxu0 0.0
    %2863 = vmatpush1.msra.mxu0 0.0
    %2864 = vmatprep.subr.mxu0 0.0
    %2865 = vmatpush1.msra.mxu0 0.0
    %2866 = vmatprep.subr.mxu0 0.0
    %2867 = vmatpush1.msra.mxu0 0.0
    %2868 = vmatprep.subr.mxu0 0.0
    %2869 = vmatpush1.msra.mxu0 0.0
    %2870 = vmatprep.subr.mxu0 0.0
    %2871 = vmatpush1.msra.mxu0 0.0
    %2872 = vmatprep.subr.mxu0 0.0
    %2873 = vmatpush1.msra.mxu0 0.0
    %2874 = vmatprep.subr.mxu0 0.0
    %2875 = vmatpush1.msra.mxu0 0.0
    %2876 = vmatprep.subr.mxu0 0.0
    %2877 = vmatpush1.msra.mxu0 0.0
    %2878 = vmatprep.mubr.f32.mxu0 0.0
    %2879 = vmatmul.mubr.f32.gmra.mrb[0].mxu0 %v2087
    %v2880 = vpop.f32.mrb[0].mxu0
    %v2881 = vadd.f32 %v2392, %v2880
    %v2882 = vpop.f32.mrb[0].mxu0
    %v2883 = vadd.f32 %v2396, %v2882
    %2884 = vmatprep.mubr.f32.mxu0 0.0
    %2885 = vmatmul.mubr.f32.gmra.mrb[0].mxu0 %v2088
    %v2886 = vpop.f32.mrb[0].mxu0
    %v2887 = vadd.f32 %v2392, %v2886
    %v2888 = vpop.f32.mrb[0].mxu0
    %v2889 = vadd.f32 %v2396, %v2888
    %2890 = vdwg.mxu0
    %2891 = vmatprep.subr.mxu0 %v2102
    %2892 = vmatpush1.msra.mxu0 %v2101
    %2893 = vmatprep.subr.mxu0 %v2118
    %2894 = vmatpush1.msra.mxu0 %v2117
    %2895 = vmatprep.subr.mxu0 %v2134
    %2896 = vmatpush1.msra.mxu0 %v2133
    %2897 = vmatprep.subr.mxu0 %v2150
    %2898 = vmatpush1.msra.mxu0 %v2149
    %2899 = vmatprep.subr.mxu0 %v2166
    %2900 = vmatpush1.msra.mxu0 %v2165
    %2901 = vmatprep.subr.mxu0 %v2182
    %2902 = vmatpush1.msra.mxu0 %v2181
    %2903 = vmatprep.subr.mxu0 %v2198
    %2904 = vmatpush1.msra.mxu0 %v2197
    %2905 = vmatprep.subr.mxu0 %v2214
    %2906 = vmatpush1.msra.mxu0 %v2213
    %2907 = vmatprep.subr.mxu0 %v2230
    %2908 = vmatpush1.msra.mxu0 %v2229
    %2909 = vmatprep.subr.mxu0 %v2246
    %2910 = vmatpush1.msra.mxu0 %v2245
    %2911 = vmatprep.subr.mxu0 %v2262
    %2912 = vmatpush1.msra.mxu0 %v2261
    %2913 = vmatprep.subr.mxu0 %v2278
    %2914 = vmatpush1.msra.mxu0 %v2277
    %2915 = vmatprep.subr.mxu0 %v2294
    %2916 = vmatpush1.msra.mxu0 %v2293
    %2917 = vmatprep.subr.mxu0 %v2310
    %2918 = vmatpush1.msra.mxu0 %v2309
    %2919 = vmatprep.subr.mxu0 %v2326
    %2920 = vmatpush1.msra.mxu0 %v2325
    %2921 = vmatprep.subr.mxu0 %v2342
    %2922 = vmatpush1.msra.mxu0 %v2341
    %2923 = vmatprep.subr.mxu0 0.0
    %2924 = vmatpush1.msra.mxu0 0.0
    %2925 = vmatprep.subr.mxu0 0.0
    %2926 = vmatpush1.msra.mxu0 0.0
    %2927 = vmatprep.subr.mxu0 0.0
    %2928 = vmatpush1.msra.mxu0 0.0
    %2929 = vmatprep.subr.mxu0 0.0
    %2930 = vmatpush1.msra.mxu0 0.0
    %2931 = vmatprep.subr.mxu0 0.0
    %2932 = vmatpush1.msra.mxu0 0.0
    %2933 = vmatprep.subr.mxu0 0.0
    %2934 = vmatpush1.msra.mxu0 0.0
    %2935 = vmatprep.subr.mxu0 0.0
    %2936 = vmatpush1.msra.mxu0 0.0
    %2937 = vmatprep.subr.mxu0 0.0
    %2938 = vmatpush1.msra.mxu0 0.0
    %2939 = vmatprep.subr.mxu0 0.0
    %2940 = vmatpush1.msra.mxu0 0.0
    %2941 = vmatprep.subr.mxu0 0.0
    %2942 = vmatpush1.msra.mxu0 0.0
    %2943 = vmatprep.subr.mxu0 0.0
    %2944 = vmatpush1.msra.mxu0 0.0
    %2945 = vmatprep.subr.mxu0 0.0
    %2946 = vmatpush1.msra.mxu0 0.0
    %2947 = vmatprep.subr.mxu0 0.0
    %2948 = vmatpush1.msra.mxu0 0.0
    %2949 = vmatprep.subr.mxu0 0.0
    %2950 = vmatpush1.msra.mxu0 0.0
    %2951 = vmatprep.subr.mxu0 0.0
    %2952 = vmatpush1.msra.mxu0 0.0
    %2953 = vmatprep.subr.mxu0 0.0
    %2954 = vmatpush1.msra.mxu0 0.0
    %2955 = vmatprep.mubr.f32.mxu0 0.0
    %2956 = vmatmul.mubr.f32.gmra.mrb[0].mxu0 %v2087
    %v2957 = vpop.f32.mrb[0].mxu0
    %v2958 = vadd.f32 %v2400, %v2957
    %v2959 = vpop.f32.mrb[0].mxu0
    %v2960 = vadd.f32 %v2404, %v2959
    %2961 = vmatprep.mubr.f32.mxu0 0.0
    %2962 = vmatmul.mubr.f32.gmra.mrb[0].mxu0 %v2088
    %v2963 = vpop.f32.mrb[0].mxu0
    %v2964 = vadd.f32 %v2400, %v2963
    %v2965 = vpop.f32.mrb[0].mxu0
    %v2966 = vadd.f32 %v2404, %v2965
    %2967 = vdwg.mxu0
    %2968 = vmatprep.subr.mxu0 %v2104
    %2969 = vmatpush1.msra.mxu0 %v2103
    %2970 = vmatprep.subr.mxu0 %v2120
    %2971 = vmatpush1.msra.mxu0 %v2119
    %2972 = vmatprep.subr.mxu0 %v2136
    %2973 = vmatpush1.msra.mxu0 %v2135
    %2974 = vmatprep.subr.mxu0 %v2152
    %2975 = vmatpush1.msra.mxu0 %v2151
    %2976 = vmatprep.subr.mxu0 %v2168
    %2977 = vmatpush1.msra.mxu0 %v2167
    %2978 = vmatprep.subr.mxu0 %v2184
    %2979 = vmatpush1.msra.mxu0 %v2183
    %2980 = vmatprep.subr.mxu0 %v2200
    %2981 = vmatpush1.msra.mxu0 %v2199
    %2982 = vmatprep.subr.mxu0 %v2216
    %2983 = vmatpush1.msra.mxu0 %v2215
    %2984 = vmatprep.subr.mxu0 %v2232
    %2985 = vmatpush1.msra.mxu0 %v2231
    %2986 = vmatprep.subr.mxu0 %v2248
    %2987 = vmatpush1.msra.mxu0 %v2247
    %2988 = vmatprep.subr.mxu0 %v2264
    %2989 = vmatpush1.msra.mxu0 %v2263
    %2990 = vmatprep.subr.mxu0 %v2280
    %2991 = vmatpush1.msra.mxu0 %v2279
    %2992 = vmatprep.subr.mxu0 %v2296
    %2993 = vmatpush1.msra.mxu0 %v2295
    %2994 = vmatprep.subr.mxu0 %v2312
    %2995 = vmatpush1.msra.mxu0 %v2311
    %2996 = vmatprep.subr.mxu0 %v2328
    %2997 = vmatpush1.msra.mxu0 %v2327
    %2998 = vmatprep.subr.mxu0 %v2344
    %2999 = vmatpush1.msra.mxu0 %v2343
    %3000 = vmatprep.subr.mxu0 0.0
    %3001 = vmatpush1.msra.mxu0 0.0
    %3002 = vmatprep.subr.mxu0 0.0
    %3003 = vmatpush1.msra.mxu0 0.0
    %3004 = vmatprep.subr.mxu0 0.0
    %3005 = vmatpush1.msra.mxu0 0.0
    %3006 = vmatprep.subr.mxu0 0.0
    %3007 = vmatpush1.msra.mxu0 0.0
    %3008 = vmatprep.subr.mxu0 0.0
    %3009 = vmatpush1.msra.mxu0 0.0
    %3010 = vmatprep.subr.mxu0 0.0
    %3011 = vmatpush1.msra.mxu0 0.0
    %3012 = vmatprep.subr.mxu0 0.0
    %3013 = vmatpush1.msra.mxu0 0.0
    %3014 = vmatprep.subr.mxu0 0.0
    %3015 = vmatpush1.msra.mxu0 0.0
    %3016 = vmatprep.subr.mxu0 0.0
    %3017 = vmatpush1.msra.mxu0 0.0
    %3018 = vmatprep.subr.mxu0 0.0
    %3019 = vmatpush1.msra.mxu0 0.0
    %3020 = vmatprep.subr.mxu0 0.0
    %3021 = vmatpush1.msra.mxu0 0.0
    %3022 = vmatprep.subr.mxu0 0.0
    %3023 = vmatpush1.msra.mxu0 0.0
    %3024 = vmatprep.subr.mxu0 0.0
    %3025 = vmatpush1.msra.mxu0 0.0
    %3026 = vmatprep.subr.mxu0 0.0
    %3027 = vmatpush1.msra.mxu0 0.0
    %3028 = vmatprep.subr.mxu0 0.0
    %3029 = vmatpush1.msra.mxu0 0.0
    %3030 = vmatprep.subr.mxu0 0.0
    %3031 = vmatpush1.msra.mxu0 0.0
    %3032 = vmatprep.mubr.f32.mxu0 0.0
    %3033 = vmatmul.mubr.f32.gmra.mrb[0].mxu0 %v2087
    %v3034 = vpop.f32.mrb[0].mxu0
    %v3035 = vadd.f32 %v2408, %v3034
    %v3036 = vpop.f32.mrb[0].mxu0
    %v3037 = vadd.f32 %v2412, %v3036
    %3038 = vmatprep.mubr.f32.mxu0 0.0
    %3039 = vmatmul.mubr.f32.gmra.mrb[0].mxu0 %v2088
    %v3040 = vpop.f32.mrb[0].mxu0
    %v3041 = vadd.f32 %v2408, %v3040
    %v3042 = vpop.f32.mrb[0].mxu0
    %v3043 = vadd.f32 %v2412, %v3042
    %3044 = vdwg.mxu0
    %v3045 = vlaneseq
    %v3046 = vand.u32 %v3045, 127
    %v3047 = vadd.s32 %v3046, 128
    %v3048 = vadd.s32 %v3046, 256
    %v3049 = vadd.s32 %v3046, 384
    %v3050 = vadd.s32 %v3046, 512
    %v3051 = vadd.s32 %v3046, 640
    %v3052 = vadd.s32 %v3046, 768
    %v3053 = vadd.s32 %v3046, 896
    %v3054 = vadd.s32 %v3046, 1024
    %v3055 = vadd.s32 %v3046, 1152
    %v3056 = vadd.s32 %v3046, 1280
    %v3057 = vadd.s32 %v3046, 1408
    %v3058 = vadd.s32 %v3046, 1536
    %v3059 = vadd.s32 %v3046, 1664
    %v3060 = vadd.s32 %v3046, 1792
    %v3061 = vadd.s32 %v3046, 1920
    %vm3062 = vcmp.lt.s32.totalorder %v3046, 2000
    %vm3063 = vcmp.lt.s32.totalorder %v3047, 2000
    %vm3064 = vcmp.lt.s32.totalorder %v3048, 2000
    %vm3065 = vcmp.lt.s32.totalorder %v3049, 2000
    %vm3066 = vcmp.lt.s32.totalorder %v3050, 2000
    %vm3067 = vcmp.lt.s32.totalorder %v3051, 2000
    %vm3068 = vcmp.lt.s32.totalorder %v3052, 2000
    %vm3069 = vcmp.lt.s32.totalorder %v3053, 2000
    %vm3070 = vcmp.lt.s32.totalorder %v3054, 2000
    %vm3071 = vcmp.lt.s32.totalorder %v3055, 2000
    %vm3072 = vcmp.lt.s32.totalorder %v3056, 2000
    %vm3073 = vcmp.lt.s32.totalorder %v3057, 2000
    %vm3074 = vcmp.lt.s32.totalorder %v3058, 2000
    %vm3075 = vcmp.lt.s32.totalorder %v3059, 2000
    %vm3076 = vcmp.lt.s32.totalorder %v3060, 2000
    %vm3077 = vcmp.lt.s32.totalorder %v3061, 2000
    %v3078 = vsel %vm3062, %v2496, -1e+30
    %v3079 = vsel %vm3063, %v2498, -1e+30
    %v3080 = vsel %vm3064, %v2573, -1e+30
    %v3081 = vsel %vm3065, %v2575, -1e+30
    %v3082 = vsel %vm3066, %v2650, -1e+30
    %v3083 = vsel %vm3067, %v2652, -1e+30
    %v3084 = vsel %vm3068, %v2727, -1e+30
    %v3085 = vsel %vm3069, %v2729, -1e+30
    %v3086 = vsel %vm3070, %v2804, -1e+30
    %v3087 = vsel %vm3071, %v2806, -1e+30
    %v3088 = vsel %vm3072, %v2881, -1e+30
    %v3089 = vsel %vm3073, %v2883, -1e+30
    %v3090 = vsel %vm3074, %v2958, -1e+30
    %v3091 = vsel %vm3075, %v2960, -1e+30
    %v3092 = vsel %vm3076, %v3035, -1e+30
    %v3093 = vsel %vm3077, %v3037, -1e+30
    %v3094 = vsel %vm3062, %v2502, -1e+30
    %v3095 = vsel %vm3063, %v2504, -1e+30
    %v3096 = vsel %vm3064, %v2579, -1e+30
    %v3097 = vsel %vm3065, %v2581, -1e+30
    %v3098 = vsel %vm3066, %v2656, -1e+30
    %v3099 = vsel %vm3067, %v2658, -1e+30
    %v3100 = vsel %vm3068, %v2733, -1e+30
    %v3101 = vsel %vm3069, %v2735, -1e+30
    %v3102 = vsel %vm3070, %v2810, -1e+30
    %v3103 = vsel %vm3071, %v2812, -1e+30
    %v3104 = vsel %vm3072, %v2887, -1e+30
    %v3105 = vsel %vm3073, %v2889, -1e+30
    %v3106 = vsel %vm3074, %v2964, -1e+30
    %v3107 = vsel %vm3075, %v2966, -1e+30
    %v3108 = vsel %vm3076, %v3041, -1e+30
    %v3109 = vsel %vm3077, %v3043, -1e+30
    %v3110 = vmax.f32 %v3078, %v3080
    %v3111 = vmax.f32 %v3079, %v3081
    %v3112 = vmax.f32 %v3110, %v3082
    %v3113 = vmax.f32 %v3111, %v3083
    %v3114 = vmax.f32 %v3112, %v3084
    %v3115 = vmax.f32 %v3113, %v3085
    %v3116 = vmax.f32 %v3114, %v3086
    %v3117 = vmax.f32 %v3115, %v3087
    %v3118 = vmax.f32 %v3116, %v3088
    %v3119 = vmax.f32 %v3117, %v3089
    %v3120 = vmax.f32 %v3118, %v3090
    %v3121 = vmax.f32 %v3119, %v3091
    %v3122 = vmax.f32 %v3120, %v3092
    %v3123 = vmax.f32 %v3121, %v3093
    %v3124 = vmax.f32 %v3122, %v3123
    %3125 = vmax.xlane.f32.xlu0 %v3124
    %v3126 = vpop.xlane.xlu0 %3125
    %v3127 = vmax.f32 %v3094, %v3096
    %v3128 = vmax.f32 %v3095, %v3097
    %v3129 = vmax.f32 %v3127, %v3098
    %v3130 = vmax.f32 %v3128, %v3099
    %v3131 = vmax.f32 %v3129, %v3100
    %v3132 = vmax.f32 %v3130, %v3101
    %v3133 = vmax.f32 %v3131, %v3102
    %v3134 = vmax.f32 %v3132, %v3103
    %v3135 = vmax.f32 %v3133, %v3104
    %v3136 = vmax.f32 %v3134, %v3105
    %v3137 = vmax.f32 %v3135, %v3106
    %v3138 = vmax.f32 %v3136, %v3107
    %v3139 = vmax.f32 %v3137, %v3108
    %v3140 = vmax.f32 %v3138, %v3109
    %v3141 = vmax.f32 %v3139, %v3140
    %3142 = vmax.xlane.f32.xlu0 %v3141
    %v3143 = vpop.xlane.xlu0 %3142
    %v3144 = vsub.f32 %v3078, %v3126
    %v3145 = vsub.f32 %v3079, %v3126
    %v3146 = vsub.f32 %v3080, %v3126
    %v3147 = vsub.f32 %v3081, %v3126
    %v3148 = vsub.f32 %v3082, %v3126
    %v3149 = vsub.f32 %v3083, %v3126
    %v3150 = vsub.f32 %v3084, %v3126
    %v3151 = vsub.f32 %v3085, %v3126
    %v3152 = vsub.f32 %v3086, %v3126
    %v3153 = vsub.f32 %v3087, %v3126
    %v3154 = vsub.f32 %v3088, %v3126
    %v3155 = vsub.f32 %v3089, %v3126
    %v3156 = vsub.f32 %v3090, %v3126
    %v3157 = vsub.f32 %v3091, %v3126
    %v3158 = vsub.f32 %v3092, %v3126
    %v3159 = vsub.f32 %v3093, %v3126
    %v3160 = vsub.f32 %v3094, %v3143
    %v3161 = vsub.f32 %v3095, %v3143
    %v3162 = vsub.f32 %v3096, %v3143
    %v3163 = vsub.f32 %v3097, %v3143
    %v3164 = vsub.f32 %v3098, %v3143
    %v3165 = vsub.f32 %v3099, %v3143
    %v3166 = vsub.f32 %v3100, %v3143
    %v3167 = vsub.f32 %v3101, %v3143
    %v3168 = vsub.f32 %v3102, %v3143
    %v3169 = vsub.f32 %v3103, %v3143
    %v3170 = vsub.f32 %v3104, %v3143
    %v3171 = vsub.f32 %v3105, %v3143
    %v3172 = vsub.f32 %v3106, %v3143
    %v3173 = vsub.f32 %v3107, %v3143
    %v3174 = vsub.f32 %v3108, %v3143
    %v3175 = vsub.f32 %v3109, %v3143
    %v3176 = vmul.f32 %v3144, 1.442695
    %v3177 = vpow.pop %v3176
    %v3178 = vmul.f32 %v3145, 1.442695
    %v3179 = vpow.pop %v3178
    %v3180 = vmul.f32 %v3146, 1.442695
    %v3181 = vpow.pop %v3180
    %v3182 = vmul.f32 %v3147, 1.442695
    %v3183 = vpow.pop %v3182
    %v3184 = vmul.f32 %v3148, 1.442695
    %v3185 = vpow.pop %v3184
    %v3186 = vmul.f32 %v3149, 1.442695
    %v3187 = vpow.pop %v3186
    %v3188 = vmul.f32 %v3150, 1.442695
    %v3189 = vpow.pop %v3188
    %v3190 = vmul.f32 %v3151, 1.442695
    %v3191 = vpow.pop %v3190
    %v3192 = vmul.f32 %v3152, 1.442695
    %v3193 = vpow.pop %v3192
    %v3194 = vmul.f32 %v3153, 1.442695
    %v3195 = vpow.pop %v3194
    %v3196 = vmul.f32 %v3154, 1.442695
    %v3197 = vpow.pop %v3196
    %v3198 = vmul.f32 %v3155, 1.442695
    %v3199 = vpow.pop %v3198
    %v3200 = vmul.f32 %v3156, 1.442695
    %v3201 = vpow.pop %v3200
    %v3202 = vmul.f32 %v3157, 1.442695
    %v3203 = vpow.pop %v3202
    %v3204 = vmul.f32 %v3158, 1.442695
    %v3205 = vpow.pop %v3204
    %v3206 = vmul.f32 %v3159, 1.442695
    %v3207 = vpow.pop %v3206
    %v3208 = vmul.f32 %v3160, 1.442695
    %v3209 = vpow.pop %v3208
    %v3210 = vmul.f32 %v3161, 1.442695
    %v3211 = vpow.pop %v3210
    %v3212 = vmul.f32 %v3162, 1.442695
    %v3213 = vpow.pop %v3212
    %v3214 = vmul.f32 %v3163, 1.442695
    %v3215 = vpow.pop %v3214
    %v3216 = vmul.f32 %v3164, 1.442695
    %v3217 = vpow.pop %v3216
    %v3218 = vmul.f32 %v3165, 1.442695
    %v3219 = vpow.pop %v3218
    %v3220 = vmul.f32 %v3166, 1.442695
    %v3221 = vpow.pop %v3220
    %v3222 = vmul.f32 %v3167, 1.442695
    %v3223 = vpow.pop %v3222
    %v3224 = vmul.f32 %v3168, 1.442695
    %v3225 = vpow.pop %v3224
    %v3226 = vmul.f32 %v3169, 1.442695
    %v3227 = vpow.pop %v3226
    %v3228 = vmul.f32 %v3170, 1.442695
    %v3229 = vpow.pop %v3228
    %v3230 = vmul.f32 %v3171, 1.442695
    %v3231 = vpow.pop %v3230
    %v3232 = vmul.f32 %v3172, 1.442695
    %v3233 = vpow.pop %v3232
    %v3234 = vmul.f32 %v3173, 1.442695
    %v3235 = vpow.pop %v3234
    %v3236 = vmul.f32 %v3174, 1.442695
    %v3237 = vpow.pop %v3236
    %v3238 = vmul.f32 %v3175, 1.442695
    %v3239 = vpow.pop %v3238
    %v3240 = vadd.f32 %v3177, %v3179
    %v3241 = vadd.f32 %v3240, %v3181
    %v3242 = vadd.f32 %v3241, %v3183
    %v3243 = vadd.f32 %v3242, %v3185
    %v3244 = vadd.f32 %v3243, %v3187
    %v3245 = vadd.f32 %v3244, %v3189
    %v3246 = vadd.f32 %v3245, %v3191
    %v3247 = vadd.f32 %v3246, %v3193
    %v3248 = vadd.f32 %v3247, %v3195
    %v3249 = vadd.f32 %v3248, %v3197
    %v3250 = vadd.f32 %v3249, %v3199
    %v3251 = vadd.f32 %v3250, %v3201
    %v3252 = vadd.f32 %v3251, %v3203
    %v3253 = vadd.f32 %v3252, %v3205
    %v3254 = vadd.f32 %v3253, %v3207
    %3255 = vadd.xlane.f32.xlu0 %v3254
    %v3256 = vpop.xlane.xlu0 %3255
    %v3257 = vadd.f32 %v3209, %v3211
    %v3258 = vadd.f32 %v3257, %v3213
    %v3259 = vadd.f32 %v3258, %v3215
    %v3260 = vadd.f32 %v3259, %v3217
    %v3261 = vadd.f32 %v3260, %v3219
    %v3262 = vadd.f32 %v3261, %v3221
    %v3263 = vadd.f32 %v3262, %v3223
    %v3264 = vadd.f32 %v3263, %v3225
    %v3265 = vadd.f32 %v3264, %v3227
    %v3266 = vadd.f32 %v3265, %v3229
    %v3267 = vadd.f32 %v3266, %v3231
    %v3268 = vadd.f32 %v3267, %v3233
    %v3269 = vadd.f32 %v3268, %v3235
    %v3270 = vadd.f32 %v3269, %v3237
    %v3271 = vadd.f32 %v3270, %v3239
    %3272 = vadd.xlane.f32.xlu0 %v3271
    %v3273 = vpop.xlane.xlu0 %3272
    %v3274 = vlog2.pop %v3256
    %v3275 = vmul.f32 %v3274, 0.6931472
    %v3276 = vlog2.pop %v3273
    %v3277 = vmul.f32 %v3276, 0.6931472
    %v3278 = vsub.f32 %v3144, %v3275
    %v3279 = vsub.f32 %v3145, %v3275
    %v3280 = vsub.f32 %v3146, %v3275
    %v3281 = vsub.f32 %v3147, %v3275
    %v3282 = vsub.f32 %v3148, %v3275
    %v3283 = vsub.f32 %v3149, %v3275
    %v3284 = vsub.f32 %v3150, %v3275
    %v3285 = vsub.f32 %v3151, %v3275
    %v3286 = vsub.f32 %v3152, %v3275
    %v3287 = vsub.f32 %v3153, %v3275
    %v3288 = vsub.f32 %v3154, %v3275
    %v3289 = vsub.f32 %v3155, %v3275
    %v3290 = vsub.f32 %v3156, %v3275
    %v3291 = vsub.f32 %v3157, %v3275
    %v3292 = vsub.f32 %v3158, %v3275
    %v3293 = vsub.f32 %v3159, %v3275
    %v3294 = vsub.f32 %v3160, %v3277
    %v3295 = vsub.f32 %v3161, %v3277
    %v3296 = vsub.f32 %v3162, %v3277
    %v3297 = vsub.f32 %v3163, %v3277
    %v3298 = vsub.f32 %v3164, %v3277
    %v3299 = vsub.f32 %v3165, %v3277
    %v3300 = vsub.f32 %v3166, %v3277
    %v3301 = vsub.f32 %v3167, %v3277
    %v3302 = vsub.f32 %v3168, %v3277
    %v3303 = vsub.f32 %v3169, %v3277
    %v3304 = vsub.f32 %v3170, %v3277
    %v3305 = vsub.f32 %v3171, %v3277
    %v3306 = vsub.f32 %v3172, %v3277
    %v3307 = vsub.f32 %v3173, %v3277
    %v3308 = vsub.f32 %v3174, %v3277
    %v3309 = vsub.f32 %v3175, %v3277
    %3310 = vst [vmem:[#allocation16] sm:$0xff] %v3278
    %3311 = vst [vmem:[#allocation16 + $0x8] sm:$0xff] %v3279
    %3312 = vst [vmem:[#allocation16 + $0x10] sm:$0xff] %v3280
    %3313 = vst [vmem:[#allocation16 + $0x18] sm:$0xff] %v3281
    %3314 = vst [vmem:[#allocation16 + $0x20] sm:$0xff] %v3282
    %3315 = vst [vmem:[#allocation16 + $0x28] sm:$0xff] %v3283
    %3316 = vst [vmem:[#allocation16 + $0x30] sm:$0xff] %v3284
    %3317 = vst [vmem:[#allocation16 + $0x38] sm:$0xff] %v3285
    %3318 = vst [vmem:[#allocation16 + $0x40] sm:$0xff] %v3286
    %3319 = vst [vmem:[#allocation16 + $0x48] sm:$0xff] %v3287
    %3320 = vst [vmem:[#allocation16 + $0x50] sm:$0xff] %v3288
    %3321 = vst [vmem:[#allocation16 + $0x58] sm:$0xff] %v3289
    %3322 = vst [vmem:[#allocation16 + $0x60] sm:$0xff] %v3290
    %3323 = vst [vmem:[#allocation16 + $0x68] sm:$0xff] %v3291
    %3324 = vst [vmem:[#allocation16 + $0x70] sm:$0xff] %v3292
    %vm3325 = vcmask 654336
    %3326 = vst.msk [vmem:[#allocation16 + $0x78] sm:$0xff] %vm3325, %v3293
    %3327 = vst [vmem:[#allocation16 + $0x80] sm:$0xff] %v3294
    %3328 = vst [vmem:[#allocation16 + $0x88] sm:$0xff] %v3295
    %3329 = vst [vmem:[#allocation16 + $0x90] sm:$0xff] %v3296
    %3330 = vst [vmem:[#allocation16 + $0x98] sm:$0xff] %v3297
    %3331 = vst [vmem:[#allocation16 + $0xa0] sm:$0xff] %v3298
    %3332 = vst [vmem:[#allocation16 + $0xa8] sm:$0xff] %v3299
    %3333 = vst [vmem:[#allocation16 + $0xb0] sm:$0xff] %v3300
    %3334 = vst [vmem:[#allocation16 + $0xb8] sm:$0xff] %v3301
    %3335 = vst [vmem:[#allocation16 + $0xc0] sm:$0xff] %v3302
    %3336 = vst [vmem:[#allocation16 + $0xc8] sm:$0xff] %v3303
    %3337 = vst [vmem:[#allocation16 + $0xd0] sm:$0xff] %v3304
    %3338 = vst [vmem:[#allocation16 + $0xd8] sm:$0xff] %v3305
    %3339 = vst [vmem:[#allocation16 + $0xe0] sm:$0xff] %v3306
    %3340 = vst [vmem:[#allocation16 + $0xe8] sm:$0xff] %v3307
    %3341 = vst [vmem:[#allocation16 + $0xf0] sm:$0xff] %v3308
    %3342 = vst.msk [vmem:[#allocation16 + $0xf8] sm:$0xff] %vm3325, %v3309
    // Predicated region
    $region114: #{gru_speech_forward.1} parent=1 // pred_check
      _
    $region115: #{gru_speech_forward.1} parent=1 // pred_check_branch
      %3344 = sbr.rel (0) target = $region117
    $region116: #{gru_speech_forward.1} parent=1 // pred_region
      %s3346 = ssub.s32 4096, 4096
      %3347 = vsyncadd [#allocation8], %s3346
      %s3348 = sshll.u32 [#allocation16], 4
      %s3349 = int_to_ptr.vmem [resolvable:$true] %s3348
      %3354 = dma.vmem_to_hbm [thread:$0]  %s3349, 4096, %s8, [#allocation8], 2048, 2048, 128
    $region117: #{gru_speech_forward.1} parent=1 // pred_fallthru
      _
    // Predicated region
    $region118: #{gru_speech_forward.1} parent=1 // pred_check
      _
    $region119: #{gru_speech_forward.1} parent=1 // pred_check_branch
      %3356 = sbr.rel (0) target = $region121
    $region120: #{gru_speech_forward.1} parent=1 // pred_region
      %3357 = dma.done [#allocation8], 4096
    $region121: #{gru_speech_forward.1} parent=1 // pred_fallthru
      _
    %3358 = vsyncpa [#allocation7], 1
    %3359 = vsyncpa [#allocation12], 1
    %3360 = vsyncpa [#allocation15], 1
    %3361 = vsyncpa [#allocation8], 1
    %3362 = vsyncpa [#allocation9], 1
  %3363 = vsyncmov [#allocation5]
  %s3364 = vpop.sfrf %3363
  %p3365 = scmp.eq.s32.totalorder %s3364, 0
  %p3366 = pneg %p3365
  %3368 = shalt.err (%p3366)
  %s3369 = scalar_lea.sflag [#allocation5], 1
  %3370 = vsyncmov %s3369
  %s3371 = vpop.sfrf %3370
  %p3372 = scmp.eq.s32.totalorder %s3371, 0
  %p3373 = pneg %p3372
  %3375 = shalt.err (%p3373)
  %s3376 = scalar_lea.sflag [#allocation5], 2
  %3377 = vsyncmov %s3376
  %s3378 = vpop.sfrf %3377
  %p3379 = scmp.eq.s32.totalorder %s3378, 0
  %p3380 = pneg %p3379
  %3382 = shalt.err (%p3380)
  %s3383 = scalar_lea.sflag [#allocation5], 3
  %3384 = vsyncmov %s3383
  %s3385 = vpop.sfrf %3384
  %p3386 = scmp.eq.s32.totalorder %s3385, 0
  %p3387 = pneg %p3386
  %3389 = shalt.err (%p3387)
  %s3390 = scalar_lea.sflag [#allocation5], 4
  %3391 = vsyncmov %s3390
  %s3392 = vpop.sfrf %3391
  %p3393 = scmp.eq.s32.totalorder %s3392, 0
  %p3394 = pneg %p3393
  %3396 = shalt.err (%p3394)
  %s3397 = scalar_lea.sflag [#allocation5], 5
  %3398 = vsyncmov %s3397
  %s3399 = vpop.sfrf %3398
  %p3400 = scmp.eq.s32.totalorder %s3399, 0
  %p3401 = pneg %p3400
  %3403 = shalt.err (%p3401)
  %s3404 = scalar_lea.sflag [#allocation5], 6
  %3405 = vsyncmov %s3404
  %s3406 = vpop.sfrf %3405
  %p3407 = scmp.eq.s32.totalorder %s3406, 0
  %p3408 = pneg %p3407
  %3410 = shalt.err (%p3408)
  %s3411 = scalar_lea.sflag [#allocation5], 7
  %3412 = vsyncmov %s3411
  %s3413 = vpop.sfrf %3412
  %p3414 = scmp.eq.s32.totalorder %s3413, 0
  %p3415 = pneg %p3414
  %3417 = shalt.err (%p3415)
  %s3418 = scalar_lea.sflag [#allocation5], 8
  %3419 = vsyncmov %s3418
  %s3420 = vpop.sfrf %3419
  %p3421 = scmp.eq.s32.totalorder %s3420, 0
  %p3422 = pneg %p3421
  %3424 = shalt.err (%p3422)
  %s3425 = scalar_lea.sflag [#allocation5], 9
  %3426 = vsyncmov %s3425
  %s3427 = vpop.sfrf %3426
  %p3428 = scmp.eq.s32.totalorder %s3427, 0
  %p3429 = pneg %p3428
  %3431 = shalt.err (%p3429)
  %s3432 = scalar_lea.sflag [#allocation5], 10
  %3433 = vsyncmov %s3432
  %s3434 = vpop.sfrf %3433
  %p3435 = scmp.eq.s32.totalorder %s3434, 0
  %p3436 = pneg %p3435
  %3438 = shalt.err (%p3436)
  %s3439 = scalar_lea.sflag [#allocation5], 11
  %3440 = vsyncmov %s3439
  %s3441 = vpop.sfrf %3440
  %p3442 = scmp.eq.s32.totalorder %s3441, 0
  %p3443 = pneg %p3442
  %3445 = shalt.err (%p3443)
  %s3446 = scalar_lea.sflag [#allocation5], 12
  %3447 = vsyncmov %s3446
  %s3448 = vpop.sfrf %3447
  %p3449 = scmp.eq.s32.totalorder %s3448, 0
  %p3450 = pneg %p3449
  %3452 = shalt.err (%p3450)
  %s3453 = scalar_lea.sflag [#allocation5], 13
  %3454 = vsyncmov %s3453
  %s3455 = vpop.sfrf %3454
  %p3456 = scmp.eq.s32.totalorder %s3455, 0
  %p3457 = pneg %p3456
  %3459 = shalt.err (%p3457)
  %s3460 = scalar_lea.sflag [#allocation5], 14
  %3461 = vsyncmov %s3460
  %s3462 = vpop.sfrf %3461
  %p3463 = scmp.eq.s32.totalorder %s3462, 0
  %p3464 = pneg %p3463
  %3466 = shalt.err (%p3464)
  %s3467 = scalar_lea.sflag [#allocation5], 15
  %3468 = vsyncmov %s3467
  %s3469 = vpop.sfrf %3468
  %p3470 = scmp.eq.s32.totalorder %s3469, 0
  %p3471 = pneg %p3470
  %3473 = shalt.err (%p3471)

</llo_original>
